<compile_context>
chip_gen: v5e
topology: v5e:2x2
jax: 0.10.0
libtpu: 0.0.40
codegen_flags: <defaults>
</compile_context>

<pallas_src>
import numpy as np
import jax
import jax.numpy as jnp
from jax.experimental import pallas as pl
from jax.experimental.pallas import tpu as pltpu


# ----------------------------- fused Pallas kernel -----------------------------


def _discriminator_kernel(
    x_ref,                                             # (N*64, 64*Cin) bf16 input slab
    r1_ref, w1_ref,                                    # layer 1 (conv + LeakyReLU)
    r2_ref, w2_ref, k2_ref, kt2_ref, g2_ref, b2_ref,   # layer 2 (conv + BN + LeakyReLU)
    r3_ref, w3_ref, k3_ref, kt3_ref, g3_ref, b3_ref,   # layer 3
    r4_ref, w4_ref, k4_ref, kt4_ref, g4_ref, b4_ref,   # layer 4
    w5_ref, gsum_ref,                                  # layer 5 (4x4 valid conv + Sigmoid)
    o_ref,                                             # (N, 1) f32 output
):
    f32, bf16 = jnp.float32, jnp.bfloat16

    def conv(s_in, r_ref, w_ref):
        """k=4, s=2, p=1 conv on an (N*Hin, Win*Cin) bf16 slab -> f32 raw slab.

        R[kh] (0/1) selects padded input row 2*ho-1+kh for every output row
        (all-zero rows where that hits the zero padding); W[kh] is the
        block-Toeplitz-over-width matrix, so each term is one MXU matmul.
        """
        acc = None
        for kh in range(4):
            rows = jnp.dot(r_ref[kh], s_in, preferred_element_type=f32)
            part = jnp.dot(rows.astype(bf16), w_ref[kh], preferred_element_type=f32)
            acc = part if acc is None else acc + part
        return acc

    def bn_leaky(raw, k_ref, kt_ref, g_ref, b_ref):
        """Training-mode BatchNorm (biased variance, eps=1e-5) + LeakyReLU(0.2)."""
        c = g_ref.shape[1]
        count = raw.shape[0] * raw.shape[1] // c            # N * Hout * Wout (static)
        col_s = jnp.sum(raw, axis=0, keepdims=True)         # (1, Wout*C)
        col_ss = jnp.sum(raw * raw, axis=0, keepdims=True)  # (1, Wout*C)
        ch_s = jnp.dot(col_s, k_ref[...], preferred_element_type=f32)    # (1, C)
        ch_ss = jnp.dot(col_ss, k_ref[...], preferred_element_type=f32)  # (1, C)
        mean = ch_s * (1.0 / count)
        # TODO(synk): E[x^2]-E[x]^2 in f32 is fine at this scale; use a
        # two-pass variance if this kernel is reused with much larger batches.
        var = jnp.maximum(ch_ss * (1.0 / count) - mean * mean, 0.0)
        scale = g_ref[...] * jax.lax.rsqrt(var + 1e-5)       # (1, C)
        shift = b_ref[...] - mean * scale                    # (1, C)
        y = (raw * jnp.dot(scale, kt_ref[...], preferred_element_type=f32)
             + jnp.dot(shift, kt_ref[...], preferred_element_type=f32))
        return jnp.where(y >= 0.0, y, 0.2 * y)

    # layer 1: conv + LeakyReLU (no BatchNorm)
    raw1 = conv(x_ref[...], r1_ref, w1_ref)
    act1 = jnp.where(raw1 >= 0.0, raw1, 0.2 * raw1)
    # layers 2-4: conv + BatchNorm(batch stats) + LeakyReLU, all in VMEM
    act2 = bn_leaky(conv(act1.astype(bf16), r2_ref, w2_ref),
                    k2_ref, kt2_ref, g2_ref, b2_ref)
    act3 = bn_leaky(conv(act2.astype(bf16), r3_ref, w3_ref),
                    k3_ref, kt3_ref, g3_ref, b3_ref)
    act4 = bn_leaky(conv(act3.astype(bf16), r4_ref, w4_ref),
                    k4_ref, kt4_ref, g4_ref, b4_ref)
    # layer 5: 4x4 valid conv == full per-sample contraction, then Sigmoid
    prod = act4 * w5_ref[...]                                           # (N*4, 4*C4)
    pooled = jnp.dot(gsum_ref[...], prod, preferred_element_type=f32)   # (N, 4*C4)
    logits = jnp.sum(pooled, axis=1, keepdims=True)                     # (N, 1)
    o_ref[...] = 1.0 / (1.0 + jnp.exp(-logits))


# ------------------------- shape-only / weight constants -------------------------


def _row_select(n, hin):
    """(4, n*hout, n*hin) bf16 0/1 matrices: [kh, (b,ho), (b',hi)] = 1 iff
    b' == b and hi == 2*ho - 1 + kh (height stride-2 window incl. pad=1;
    out-of-range rows stay all-zero == exact zero padding)."""
    hout = hin // 2
    r = np.arange(n * hout)
    rb, rho = r // hout, r % hout
    c = np.arange(n * hin)
    cb, chi = c // hin, c % hin
    sel = np.zeros((4, n * hout, n * hin), np.float32)
    for kh in range(4):
        hi = 2 * rho - 1 + kh
        sel[kh] = (cb[None, :] == rb[:, None]) & (chi[None, :] == hi[:, None])
    return jnp.asarray(sel, dtype=jnp.bfloat16)


def _toeplitz_weight(w, win):
    """(Cout, Cin, 4, 4) conv weight -> (4, win*Cin, (win//2)*Cout) bf16
    block-Toeplitz-over-width matrices for a k=4, s=2, p=1 conv (width stride
    and width zero padding are encoded in the matrix)."""
    cout, cin = w.shape[:2]
    wout = win // 2
    wi = np.arange(win)[:, None]
    wo = np.arange(wout)[None, :]
    kw = wi - 2 * wo + 1                       # input col wi == 2*wo - 1 + kw
    valid = jnp.asarray((kw >= 0) & (kw <= 3), w.dtype)
    w_perm = jnp.transpose(w, (2, 3, 1, 0))                 # (kh, kw, cin, cout)
    t = w_perm[:, np.clip(kw, 0, 3), :, :]                  # (4, win, wout, cin, cout)
    t = t * valid[None, :, :, None, None]
    t = jnp.transpose(t, (0, 1, 3, 2, 4))                   # (4, win, cin, wout, cout)
    return t.reshape(4, win * cin, wout * cout).astype(jnp.bfloat16)


def _chan_fold(wout, c):
    """(wout*c, c) 0/1 matrix summing a slab row's wout column-groups per channel."""
    return np.tile(np.eye(c, dtype=np.float32), (wout, 1))


# ----------------------------- full forward -----------------------------


def discriminator_forward(x_nchw, params):
    """Matches Discriminator(nc, ndf).forward(x) with the module in train mode."""
    n, nc, h, w = x_nchw.shape
    assert h == 64 and w == 64, "4x stride-2 convs + final 4x4 valid conv need 64x64 input"
    ndf = params["w1"].shape[0]

    # NCHW -> (N*H, W*Cin) bf16 slab; pad Cin to an even count so the slab's
    # lane width (W*Cin) is a multiple of 128 (lane-dense loads).
    ncp = nc + (nc % 2)
    x = jnp.transpose(x_nchw, (0, 2, 3, 1))
    w1 = params["w1"]
    if ncp != nc:
        x = jnp.pad(x, ((0, 0), (0, 0), (0, 0), (0, ncp - nc)))
        w1 = jnp.pad(w1, ((0, 0), (0, ncp - nc), (0, 0), (0, 0)))
    x_slab = x.reshape(n * h, w * ncp).astype(jnp.bfloat16)

    chans = [ncp, ndf, ndf * 2, ndf * 4, ndf * 8]
    spatial = [h, h // 2, h // 4, h // 8, h // 16]
    conv_ws = [w1, params["w2"], params["w3"], params["w4"]]

    args = [x_slab]
    for l in range(4):
        hin, cout = spatial[l], chans[l + 1]
        args += [_row_select(n, hin), _toeplitz_weight(conv_ws[l], hin)]
        if l >= 1:                                          # layers 2-4 have BatchNorm
            fold = _chan_fold(hin // 2, cout)
            args += [jnp.asarray(fold),
                     jnp.asarray(np.ascontiguousarray(fold.T)),
                     params[f"g{l + 1}"].reshape(1, cout).astype(jnp.float32),
                     params[f"b{l + 1}"].reshape(1, cout).astype(jnp.float32)]

    # layer 5: 4x4 valid conv flattened to per-slab-row weights + a (n, 4n)
    # 0/1 group-sum matrix over each sample's 4 slab rows.
    c5 = chans[4]
    w5_rows = jnp.transpose(params["w5"][0], (1, 2, 0)).reshape(4, 4 * c5)
    args += [jnp.tile(w5_rows, (n, 1)).astype(jnp.float32),
             jnp.asarray(np.kron(np.eye(n, dtype=np.float32),
                                 np.ones((1, 4), np.float32)))]

    out = pl.pallas_call(
        _discriminator_kernel,
        out_shape=jax.ShapeDtypeStruct((n, 1), jnp.float32),
        # whole-array blocks, single grid-less invocation, everything in VMEM
        in_specs=[pl.BlockSpec(memory_space=pltpu.MemorySpace.VMEM) for _ in args],
        out_specs=pl.BlockSpec(memory_space=pltpu.MemorySpace.VMEM),
    )(*args)
    return out[:, 0]                                        # == view(-1,1).squeeze(1)


def init_params(key, nc, ndf):
    ks = jax.random.split(key, 5)

    def w(k, cout, cin):
        return 0.02 * jax.random.normal(k, (cout, cin, 4, 4), jnp.float32)

    return {
        "w1": w(ks[0], ndf, nc),
        "w2": w(ks[1], ndf * 2, ndf),
        "g2": jnp.ones((ndf * 2,), jnp.float32),
        "b2": jnp.zeros((ndf * 2,), jnp.float32),
        "w3": w(ks[2], ndf * 4, ndf * 2),
        "g3": jnp.ones((ndf * 4,), jnp.float32),
        "b3": jnp.zeros((ndf * 4,), jnp.float32),
        "w4": w(ks[3], ndf * 8, ndf * 4),
        "g4": jnp.ones((ndf * 8,), jnp.float32),
        "b4": jnp.zeros((ndf * 8,), jnp.float32),
        "w5": w(ks[4], 1, ndf * 8),
    }


if __name__ == "__main__":
    key = jax.random.PRNGKey(0)
    k_x, k_p = jax.random.split(key)

    # Smallest shapes the architecture admits: 64x64 spatial is fixed by the
    # four stride-2 convs + final 4x4 valid conv; batch and ndf kept tiny.
    N, nc, ndf, H = 2, 3, 8, 64
    x = jax.random.normal(k_x, (N, nc, H, H), jnp.float32)
    params = init_params(k_p, nc, ndf)

    out = jax.block_until_ready(jax.jit(discriminator_forward)(x, params))
    assert out.shape == (N,)
    assert bool(jnp.all(jnp.isfinite(out)))
    assert bool(jnp.all((out >= 0.0) & (out <= 1.0)))
    print("KERNEL_OK")
</pallas_src>

<mosaic_0001>
module attributes {stable_mosaic.version = 11 : i64} {
  func.func @_discriminator_kernel(%arg0: memref<128x256xbf16, #tpu.memory_space<vmem>>, %arg1: memref<4x64x128xbf16, #tpu.memory_space<vmem>>, %arg2: memref<4x256x256xbf16, #tpu.memory_space<vmem>>, %arg3: memref<4x32x64xbf16, #tpu.memory_space<vmem>>, %arg4: memref<4x256x256xbf16, #tpu.memory_space<vmem>>, %arg5: memref<256x16xf32, #tpu.memory_space<vmem>>, %arg6: memref<16x256xf32, #tpu.memory_space<vmem>>, %arg7: memref<1x16xf32, #tpu.memory_space<vmem>>, %arg8: memref<1x16xf32, #tpu.memory_space<vmem>>, %arg9: memref<4x16x32xbf16, #tpu.memory_space<vmem>>, %arg10: memref<4x256x256xbf16, #tpu.memory_space<vmem>>, %arg11: memref<256x32xf32, #tpu.memory_space<vmem>>, %arg12: memref<32x256xf32, #tpu.memory_space<vmem>>, %arg13: memref<1x32xf32, #tpu.memory_space<vmem>>, %arg14: memref<1x32xf32, #tpu.memory_space<vmem>>, %arg15: memref<4x8x16xbf16, #tpu.memory_space<vmem>>, %arg16: memref<4x256x256xbf16, #tpu.memory_space<vmem>>, %arg17: memref<256x64xf32, #tpu.memory_space<vmem>>, %arg18: memref<64x256xf32, #tpu.memory_space<vmem>>, %arg19: memref<1x64xf32, #tpu.memory_space<vmem>>, %arg20: memref<1x64xf32, #tpu.memory_space<vmem>>, %arg21: memref<8x256xf32, #tpu.memory_space<vmem>>, %arg22: memref<2x8xf32, #tpu.memory_space<vmem>>, %arg23: memref<2x1xf32, #tpu.memory_space<vmem>>) attributes {dimension_semantics = [], scalar_prefetch = 0 : i64, scratch_operands = 0 : i64, tpu.core_type = #tpu.core_type<tc>} {
    %c0 = arith.constant 0 : index
    %c0_0 = arith.constant 0 : index
    %0 = vector.load %arg0[%c0, %c0_0] : memref<128x256xbf16, #tpu.memory_space<vmem>>, vector<128x256xbf16>
    %c0_1 = arith.constant 0 : index
    %c0_2 = arith.constant 0 : index
    %c0_3 = arith.constant 0 : index
    %1 = vector.load %arg1[%c0_1, %c0_2, %c0_3] : memref<4x64x128xbf16, #tpu.memory_space<vmem>>, vector<1x64x128xbf16>
    %2 = vector.shape_cast %1 : vector<1x64x128xbf16> to vector<64x128xbf16>
    %cst = arith.constant dense<0.000000e+00> : vector<64x256xf32>
    %3 = tpu.matmul %2, %0, %cst {dimension_numbers = #tpu.dot_dimension_numbers<[1], [0], [0], [1], [0, 0, 1, 1], [], []>} : vector<64x128xbf16>, vector<128x256xbf16>, vector<64x256xf32> -> vector<64x256xf32>
    %4 = arith.truncf %3 : vector<64x256xf32> to vector<64x256xbf16>
    %c0_4 = arith.constant 0 : index
    %c0_5 = arith.constant 0 : index
    %c0_6 = arith.constant 0 : index
    %5 = vector.load %arg2[%c0_4, %c0_5, %c0_6] : memref<4x256x256xbf16, #tpu.memory_space<vmem>>, vector<1x256x256xbf16>
    %6 = vector.shape_cast %5 : vector<1x256x256xbf16> to vector<256x256xbf16>
    %cst_7 = arith.constant dense<0.000000e+00> : vector<64x256xf32>
    %7 = tpu.matmul %4, %6, %cst_7 {dimension_numbers = #tpu.dot_dimension_numbers<[1], [0], [0], [1], [0, 0, 1, 1], [], []>} : vector<64x256xbf16>, vector<256x256xbf16>, vector<64x256xf32> -> vector<64x256xf32>
    %c1 = arith.constant 1 : index
    %c0_8 = arith.constant 0 : index
    %c0_9 = arith.constant 0 : index
    %8 = vector.load %arg1[%c1, %c0_8, %c0_9] : memref<4x64x128xbf16, #tpu.memory_space<vmem>>, vector<1x64x128xbf16>
    %9 = vector.shape_cast %8 : vector<1x64x128xbf16> to vector<64x128xbf16>
    %cst_10 = arith.constant dense<0.000000e+00> : vector<64x256xf32>
    %10 = tpu.matmul %9, %0, %cst_10 {dimension_numbers = #tpu.dot_dimension_numbers<[1], [0], [0], [1], [0, 0, 1, 1], [], []>} : vector<64x128xbf16>, vector<128x256xbf16>, vector<64x256xf32> -> vector<64x256xf32>
    %11 = arith.truncf %10 : vector<64x256xf32> to vector<64x256xbf16>
    %c1_11 = arith.constant 1 : index
    %c0_12 = arith.constant 0 : index
    %c0_13 = arith.constant 0 : index
    %12 = vector.load %arg2[%c1_11, %c0_12, %c0_13] : memref<4x256x256xbf16, #tpu.memory_space<vmem>>, vector<1x256x256xbf16>
    %13 = vector.shape_cast %12 : vector<1x256x256xbf16> to vector<256x256xbf16>
    %cst_14 = arith.constant dense<0.000000e+00> : vector<64x256xf32>
    %14 = tpu.matmul %11, %13, %cst_14 {dimension_numbers = #tpu.dot_dimension_numbers<[1], [0], [0], [1], [0, 0, 1, 1], [], []>} : vector<64x256xbf16>, vector<256x256xbf16>, vector<64x256xf32> -> vector<64x256xf32>
    %15 = arith.addf %7, %14 : vector<64x256xf32>
    %c2 = arith.constant 2 : index
    %c0_15 = arith.constant 0 : index
    %c0_16 = arith.constant 0 : index
    %16 = vector.load %arg1[%c2, %c0_15, %c0_16] : memref<4x64x128xbf16, #tpu.memory_space<vmem>>, vector<1x64x128xbf16>
    %17 = vector.shape_cast %16 : vector<1x64x128xbf16> to vector<64x128xbf16>
    %cst_17 = arith.constant dense<0.000000e+00> : vector<64x256xf32>
    %18 = tpu.matmul %17, %0, %cst_17 {dimension_numbers = #tpu.dot_dimension_numbers<[1], [0], [0], [1], [0, 0, 1, 1], [], []>} : vector<64x128xbf16>, vector<128x256xbf16>, vector<64x256xf32> -> vector<64x256xf32>
    %19 = arith.truncf %18 : vector<64x256xf32> to vector<64x256xbf16>
    %c2_18 = arith.constant 2 : index
    %c0_19 = arith.constant 0 : index
    %c0_20 = arith.constant 0 : index
    %20 = vector.load %arg2[%c2_18, %c0_19, %c0_20] : memref<4x256x256xbf16, #tpu.memory_space<vmem>>, vector<1x256x256xbf16>
    %21 = vector.shape_cast %20 : vector<1x256x256xbf16> to vector<256x256xbf16>
    %cst_21 = arith.constant dense<0.000000e+00> : vector<64x256xf32>
    %22 = tpu.matmul %19, %21, %cst_21 {dimension_numbers = #tpu.dot_dimension_numbers<[1], [0], [0], [1], [0, 0, 1, 1], [], []>} : vector<64x256xbf16>, vector<256x256xbf16>, vector<64x256xf32> -> vector<64x256xf32>
    %23 = arith.addf %15, %22 : vector<64x256xf32>
    %c3 = arith.constant 3 : index
    %c0_22 = arith.constant 0 : index
    %c0_23 = arith.constant 0 : index
    %24 = vector.load %arg1[%c3, %c0_22, %c0_23] : memref<4x64x128xbf16, #tpu.memory_space<vmem>>, vector<1x64x128xbf16>
    %25 = vector.shape_cast %24 : vector<1x64x128xbf16> to vector<64x128xbf16>
    %cst_24 = arith.constant dense<0.000000e+00> : vector<64x256xf32>
    %26 = tpu.matmul %25, %0, %cst_24 {dimension_numbers = #tpu.dot_dimension_numbers<[1], [0], [0], [1], [0, 0, 1, 1], [], []>} : vector<64x128xbf16>, vector<128x256xbf16>, vector<64x256xf32> -> vector<64x256xf32>
    %27 = arith.truncf %26 : vector<64x256xf32> to vector<64x256xbf16>
    %c3_25 = arith.constant 3 : index
    %c0_26 = arith.constant 0 : index
    %c0_27 = arith.constant 0 : index
    %28 = vector.load %arg2[%c3_25, %c0_26, %c0_27] : memref<4x256x256xbf16, #tpu.memory_space<vmem>>, vector<1x256x256xbf16>
    %29 = vector.shape_cast %28 : vector<1x256x256xbf16> to vector<256x256xbf16>
    %cst_28 = arith.constant dense<0.000000e+00> : vector<64x256xf32>
    %30 = tpu.matmul %27, %29, %cst_28 {dimension_numbers = #tpu.dot_dimension_numbers<[1], [0], [0], [1], [0, 0, 1, 1], [], []>} : vector<64x256xbf16>, vector<256x256xbf16>, vector<64x256xf32> -> vector<64x256xf32>
    %31 = arith.addf %23, %30 : vector<64x256xf32>
    %cst_29 = arith.constant 0.000000e+00 : f32
    %32 = vector.broadcast %cst_29 : f32 to vector<64x256xf32>
    %33 = arith.cmpf oge, %31, %32 : vector<64x256xf32>
    %cst_30 = arith.constant 2.000000e-01 : f32
    %34 = vector.broadcast %cst_30 : f32 to vector<64x256xf32>
    %35 = arith.mulf %34, %31 : vector<64x256xf32>
    %36 = arith.select %33, %31, %35 : vector<64x256xi1>, vector<64x256xf32>
    %37 = arith.truncf %36 : vector<64x256xf32> to vector<64x256xbf16>
    %c0_31 = arith.constant 0 : index
    %c0_32 = arith.constant 0 : index
    %c0_33 = arith.constant 0 : index
    %38 = vector.load %arg3[%c0_31, %c0_32, %c0_33] : memref<4x32x64xbf16, #tpu.memory_space<vmem>>, vector<1x32x64xbf16>
    %39 = vector.shape_cast %38 : vector<1x32x64xbf16> to vector<32x64xbf16>
    %cst_34 = arith.constant dense<0.000000e+00> : vector<32x256xf32>
    %40 = tpu.matmul %39, %37, %cst_34 {dimension_numbers = #tpu.dot_dimension_numbers<[1], [0], [0], [1], [0, 0, 1, 1], [], []>} : vector<32x64xbf16>, vector<64x256xbf16>, vector<32x256xf32> -> vector<32x256xf32>
    %41 = arith.truncf %40 : vector<32x256xf32> to vector<32x256xbf16>
    %c0_35 = arith.constant 0 : index
    %c0_36 = arith.constant 0 : index
    %c0_37 = arith.constant 0 : index
    %42 = vector.load %arg4[%c0_35, %c0_36, %c0_37] : memref<4x256x256xbf16, #tpu.memory_space<vmem>>, vector<1x256x256xbf16>
    %43 = vector.shape_cast %42 : vector<1x256x256xbf16> to vector<256x256xbf16>
    %cst_38 = arith.constant dense<0.000000e+00> : vector<32x256xf32>
    %44 = tpu.matmul %41, %43, %cst_38 {dimension_numbers = #tpu.dot_dimension_numbers<[1], [0], [0], [1], [0, 0, 1, 1], [], []>} : vector<32x256xbf16>, vector<256x256xbf16>, vector<32x256xf32> -> vector<32x256xf32>
    %c1_39 = arith.constant 1 : index
    %c0_40 = arith.constant 0 : index
    %c0_41 = arith.constant 0 : index
    %45 = vector.load %arg3[%c1_39, %c0_40, %c0_41] : memref<4x32x64xbf16, #tpu.memory_space<vmem>>, vector<1x32x64xbf16>
    %46 = vector.shape_cast %45 : vector<1x32x64xbf16> to vector<32x64xbf16>
    %cst_42 = arith.constant dense<0.000000e+00> : vector<32x256xf32>
    %47 = tpu.matmul %46, %37, %cst_42 {dimension_numbers = #tpu.dot_dimension_numbers<[1], [0], [0], [1], [0, 0, 1, 1], [], []>} : vector<32x64xbf16>, vector<64x256xbf16>, vector<32x256xf32> -> vector<32x256xf32>
    %48 = arith.truncf %47 : vector<32x256xf32> to vector<32x256xbf16>
    %c1_43 = arith.constant 1 : index
    %c0_44 = arith.constant 0 : index
    %c0_45 = arith.constant 0 : index
    %49 = vector.load %arg4[%c1_43, %c0_44, %c0_45] : memref<4x256x256xbf16, #tpu.memory_space<vmem>>, vector<1x256x256xbf16>
    %50 = vector.shape_cast %49 : vector<1x256x256xbf16> to vector<256x256xbf16>
    %cst_46 = arith.constant dense<0.000000e+00> : vector<32x256xf32>
    %51 = tpu.matmul %48, %50, %cst_46 {dimension_numbers = #tpu.dot_dimension_numbers<[1], [0], [0], [1], [0, 0, 1, 1], [], []>} : vector<32x256xbf16>, vector<256x256xbf16>, vector<32x256xf32> -> vector<32x256xf32>
    %52 = arith.addf %44, %51 : vector<32x256xf32>
    %c2_47 = arith.constant 2 : index
    %c0_48 = arith.constant 0 : index
    %c0_49 = arith.constant 0 : index
    %53 = vector.load %arg3[%c2_47, %c0_48, %c0_49] : memref<4x32x64xbf16, #tpu.memory_space<vmem>>, vector<1x32x64xbf16>
    %54 = vector.shape_cast %53 : vector<1x32x64xbf16> to vector<32x64xbf16>
    %cst_50 = arith.constant dense<0.000000e+00> : vector<32x256xf32>
    %55 = tpu.matmul %54, %37, %cst_50 {dimension_numbers = #tpu.dot_dimension_numbers<[1], [0], [0], [1], [0, 0, 1, 1], [], []>} : vector<32x64xbf16>, vector<64x256xbf16>, vector<32x256xf32> -> vector<32x256xf32>
    %56 = arith.truncf %55 : vector<32x256xf32> to vector<32x256xbf16>
    %c2_51 = arith.constant 2 : index
    %c0_52 = arith.constant 0 : index
    %c0_53 = arith.constant 0 : index
    %57 = vector.load %arg4[%c2_51, %c0_52, %c0_53] : memref<4x256x256xbf16, #tpu.memory_space<vmem>>, vector<1x256x256xbf16>
    %58 = vector.shape_cast %57 : vector<1x256x256xbf16> to vector<256x256xbf16>
    %cst_54 = arith.constant dense<0.000000e+00> : vector<32x256xf32>
    %59 = tpu.matmul %56, %58, %cst_54 {dimension_numbers = #tpu.dot_dimension_numbers<[1], [0], [0], [1], [0, 0, 1, 1], [], []>} : vector<32x256xbf16>, vector<256x256xbf16>, vector<32x256xf32> -> vector<32x256xf32>
    %60 = arith.addf %52, %59 : vector<32x256xf32>
    %c3_55 = arith.constant 3 : index
    %c0_56 = arith.constant 0 : index
    %c0_57 = arith.constant 0 : index
    %61 = vector.load %arg3[%c3_55, %c0_56, %c0_57] : memref<4x32x64xbf16, #tpu.memory_space<vmem>>, vector<1x32x64xbf16>
    %62 = vector.shape_cast %61 : vector<1x32x64xbf16> to vector<32x64xbf16>
    %cst_58 = arith.constant dense<0.000000e+00> : vector<32x256xf32>
    %63 = tpu.matmul %62, %37, %cst_58 {dimension_numbers = #tpu.dot_dimension_numbers<[1], [0], [0], [1], [0, 0, 1, 1], [], []>} : vector<32x64xbf16>, vector<64x256xbf16>, vector<32x256xf32> -> vector<32x256xf32>
    %64 = arith.truncf %63 : vector<32x256xf32> to vector<32x256xbf16>
    %c3_59 = arith.constant 3 : index
    %c0_60 = arith.constant 0 : index
    %c0_61 = arith.constant 0 : index
    %65 = vector.load %arg4[%c3_59, %c0_60, %c0_61] : memref<4x256x256xbf16, #tpu.memory_space<vmem>>, vector<1x256x256xbf16>
    %66 = vector.shape_cast %65 : vector<1x256x256xbf16> to vector<256x256xbf16>
    %cst_62 = arith.constant dense<0.000000e+00> : vector<32x256xf32>
    %67 = tpu.matmul %64, %66, %cst_62 {dimension_numbers = #tpu.dot_dimension_numbers<[1], [0], [0], [1], [0, 0, 1, 1], [], []>} : vector<32x256xbf16>, vector<256x256xbf16>, vector<32x256xf32> -> vector<32x256xf32>
    %68 = arith.addf %60, %67 : vector<32x256xf32>
    %cst_63 = arith.constant dense<0.000000e+00> : vector<256xf32>
    %69 = vector.multi_reduction <add>, %68, %cst_63 [0] : vector<32x256xf32> to vector<256xf32>
    %70 = vector.shape_cast %69 : vector<256xf32> to vector<1x256xf32>
    %71 = arith.mulf %68, %68 : vector<32x256xf32>
    %cst_64 = arith.constant dense<0.000000e+00> : vector<256xf32>
    %72 = vector.multi_reduction <add>, %71, %cst_64 [0] : vector<32x256xf32> to vector<256xf32>
    %73 = vector.shape_cast %72 : vector<256xf32> to vector<1x256xf32>
    %c0_65 = arith.constant 0 : index
    %c0_66 = arith.constant 0 : index
    %74 = vector.load %arg5[%c0_65, %c0_66] : memref<256x16xf32, #tpu.memory_space<vmem>>, vector<256x16xf32>
    %cst_67 = arith.constant dense<0.000000e+00> : vector<1x16xf32>
    %75 = tpu.matmul %70, %74, %cst_67 {dimension_numbers = #tpu.dot_dimension_numbers<[1], [0], [0], [1], [0, 0, 1, 1], [], []>} : vector<1x256xf32>, vector<256x16xf32>, vector<1x16xf32> -> vector<1x16xf32>
    %c0_68 = arith.constant 0 : index
    %c0_69 = arith.constant 0 : index
    %76 = vector.load %arg5[%c0_68, %c0_69] : memref<256x16xf32, #tpu.memory_space<vmem>>, vector<256x16xf32>
    %cst_70 = arith.constant dense<0.000000e+00> : vector<1x16xf32>
    %77 = tpu.matmul %73, %76, %cst_70 {dimension_numbers = #tpu.dot_dimension_numbers<[1], [0], [0], [1], [0, 0, 1, 1], [], []>} : vector<1x256xf32>, vector<256x16xf32>, vector<1x16xf32> -> vector<1x16xf32>
    %cst_71 = arith.constant 0.001953125 : f32
    %78 = vector.broadcast %cst_71 : f32 to vector<1x16xf32>
    %79 = arith.mulf %75, %78 : vector<1x16xf32>
    %cst_72 = arith.constant 0.001953125 : f32
    %80 = vector.broadcast %cst_72 : f32 to vector<1x16xf32>
    %81 = arith.mulf %77, %80 : vector<1x16xf32>
    %82 = arith.mulf %79, %79 : vector<1x16xf32>
    %83 = arith.subf %81, %82 : vector<1x16xf32>
    %cst_73 = arith.constant 0.000000e+00 : f32
    %84 = vector.broadcast %cst_73 : f32 to vector<1x16xf32>
    %85 = arith.maximumf %83, %84 : vector<1x16xf32>
    %c0_74 = arith.constant 0 : index
    %c0_75 = arith.constant 0 : index
    %86 = vector.load %arg7[%c0_74, %c0_75] : memref<1x16xf32, #tpu.memory_space<vmem>>, vector<1x16xf32>
    %cst_76 = arith.constant 9.99999974E-6 : f32
    %87 = vector.broadcast %cst_76 : f32 to vector<1x16xf32>
    %88 = arith.addf %85, %87 : vector<1x16xf32>
    %89 = math.rsqrt %88 : vector<1x16xf32>
    %90 = arith.mulf %86, %89 : vector<1x16xf32>
    %c0_77 = arith.constant 0 : index
    %c0_78 = arith.constant 0 : index
    %91 = vector.load %arg8[%c0_77, %c0_78] : memref<1x16xf32, #tpu.memory_space<vmem>>, vector<1x16xf32>
    %92 = arith.mulf %79, %90 : vector<1x16xf32>
    %93 = arith.subf %91, %92 : vector<1x16xf32>
    %c0_79 = arith.constant 0 : index
    %c0_80 = arith.constant 0 : index
    %94 = vector.load %arg6[%c0_79, %c0_80] : memref<16x256xf32, #tpu.memory_space<vmem>>, vector<16x256xf32>
    %cst_81 = arith.constant dense<0.000000e+00> : vector<1x256xf32>
    %95 = tpu.matmul %90, %94, %cst_81 {dimension_numbers = #tpu.dot_dimension_numbers<[1], [0], [0], [1], [0, 0, 1, 1], [], []>} : vector<1x16xf32>, vector<16x256xf32>, vector<1x256xf32> -> vector<1x256xf32>
    %96 = vector.broadcast %95 : vector<1x256xf32> to vector<32x256xf32>
    %97 = arith.mulf %68, %96 : vector<32x256xf32>
    %c0_82 = arith.constant 0 : index
    %c0_83 = arith.constant 0 : index
    %98 = vector.load %arg6[%c0_82, %c0_83] : memref<16x256xf32, #tpu.memory_space<vmem>>, vector<16x256xf32>
    %cst_84 = arith.constant dense<0.000000e+00> : vector<1x256xf32>
    %99 = tpu.matmul %93, %98, %cst_84 {dimension_numbers = #tpu.dot_dimension_numbers<[1], [0], [0], [1], [0, 0, 1, 1], [], []>} : vector<1x16xf32>, vector<16x256xf32>, vector<1x256xf32> -> vector<1x256xf32>
    %100 = vector.broadcast %99 : vector<1x256xf32> to vector<32x256xf32>
    %101 = arith.addf %97, %100 : vector<32x256xf32>
    %cst_85 = arith.constant 0.000000e+00 : f32
    %102 = vector.broadcast %cst_85 : f32 to vector<32x256xf32>
    %103 = arith.cmpf oge, %101, %102 : vector<32x256xf32>
    %cst_86 = arith.constant 2.000000e-01 : f32
    %104 = vector.broadcast %cst_86 : f32 to vector<32x256xf32>
    %105 = arith.mulf %104, %101 : vector<32x256xf32>
    %106 = arith.select %103, %101, %105 : vector<32x256xi1>, vector<32x256xf32>
    %107 = arith.truncf %106 : vector<32x256xf32> to vector<32x256xbf16>
    %c0_87 = arith.constant 0 : index
    %c0_88 = arith.constant 0 : index
    %c0_89 = arith.constant 0 : index
    %108 = vector.load %arg9[%c0_87, %c0_88, %c0_89] : memref<4x16x32xbf16, #tpu.memory_space<vmem>>, vector<1x16x32xbf16>
    %109 = vector.shape_cast %108 : vector<1x16x32xbf16> to vector<16x32xbf16>
    %cst_90 = arith.constant dense<0.000000e+00> : vector<16x256xf32>
    %110 = tpu.matmul %109, %107, %cst_90 {dimension_numbers = #tpu.dot_dimension_numbers<[1], [0], [0], [1], [0, 0, 1, 1], [], []>} : vector<16x32xbf16>, vector<32x256xbf16>, vector<16x256xf32> -> vector<16x256xf32>
    %111 = arith.truncf %110 : vector<16x256xf32> to vector<16x256xbf16>
    %c0_91 = arith.constant 0 : index
    %c0_92 = arith.constant 0 : index
    %c0_93 = arith.constant 0 : index
    %112 = vector.load %arg10[%c0_91, %c0_92, %c0_93] : memref<4x256x256xbf16, #tpu.memory_space<vmem>>, vector<1x256x256xbf16>
    %113 = vector.shape_cast %112 : vector<1x256x256xbf16> to vector<256x256xbf16>
    %cst_94 = arith.constant dense<0.000000e+00> : vector<16x256xf32>
    %114 = tpu.matmul %111, %113, %cst_94 {dimension_numbers = #tpu.dot_dimension_numbers<[1], [0], [0], [1], [0, 0, 1, 1], [], []>} : vector<16x256xbf16>, vector<256x256xbf16>, vector<16x256xf32> -> vector<16x256xf32>
    %c1_95 = arith.constant 1 : index
    %c0_96 = arith.constant 0 : index
    %c0_97 = arith.constant 0 : index
    %115 = vector.load %arg9[%c1_95, %c0_96, %c0_97] : memref<4x16x32xbf16, #tpu.memory_space<vmem>>, vector<1x16x32xbf16>
    %116 = vector.shape_cast %115 : vector<1x16x32xbf16> to vector<16x32xbf16>
    %cst_98 = arith.constant dense<0.000000e+00> : vector<16x256xf32>
    %117 = tpu.matmul %116, %107, %cst_98 {dimension_numbers = #tpu.dot_dimension_numbers<[1], [0], [0], [1], [0, 0, 1, 1], [], []>} : vector<16x32xbf16>, vector<32x256xbf16>, vector<16x256xf32> -> vector<16x256xf32>
    %118 = arith.truncf %117 : vector<16x256xf32> to vector<16x256xbf16>
    %c1_99 = arith.constant 1 : index
    %c0_100 = arith.constant 0 : index
    %c0_101 = arith.constant 0 : index
    %119 = vector.load %arg10[%c1_99, %c0_100, %c0_101] : memref<4x256x256xbf16, #tpu.memory_space<vmem>>, vector<1x256x256xbf16>
    %120 = vector.shape_cast %119 : vector<1x256x256xbf16> to vector<256x256xbf16>
    %cst_102 = arith.constant dense<0.000000e+00> : vector<16x256xf32>
    %121 = tpu.matmul %118, %120, %cst_102 {dimension_numbers = #tpu.dot_dimension_numbers<[1], [0], [0], [1], [0, 0, 1, 1], [], []>} : vector<16x256xbf16>, vector<256x256xbf16>, vector<16x256xf32> -> vector<16x256xf32>
    %122 = arith.addf %114, %121 : vector<16x256xf32>
    %c2_103 = arith.constant 2 : index
    %c0_104 = arith.constant 0 : index
    %c0_105 = arith.constant 0 : index
    %123 = vector.load %arg9[%c2_103, %c0_104, %c0_105] : memref<4x16x32xbf16, #tpu.memory_space<vmem>>, vector<1x16x32xbf16>
    %124 = vector.shape_cast %123 : vector<1x16x32xbf16> to vector<16x32xbf16>
    %cst_106 = arith.constant dense<0.000000e+00> : vector<16x256xf32>
    %125 = tpu.matmul %124, %107, %cst_106 {dimension_numbers = #tpu.dot_dimension_numbers<[1], [0], [0], [1], [0, 0, 1, 1], [], []>} : vector<16x32xbf16>, vector<32x256xbf16>, vector<16x256xf32> -> vector<16x256xf32>
    %126 = arith.truncf %125 : vector<16x256xf32> to vector<16x256xbf16>
    %c2_107 = arith.constant 2 : index
    %c0_108 = arith.constant 0 : index
    %c0_109 = arith.constant 0 : index
    %127 = vector.load %arg10[%c2_107, %c0_108, %c0_109] : memref<4x256x256xbf16, #tpu.memory_space<vmem>>, vector<1x256x256xbf16>
    %128 = vector.shape_cast %127 : vector<1x256x256xbf16> to vector<256x256xbf16>
    %cst_110 = arith.constant dense<0.000000e+00> : vector<16x256xf32>
    %129 = tpu.matmul %126, %128, %cst_110 {dimension_numbers = #tpu.dot_dimension_numbers<[1], [0], [0], [1], [0, 0, 1, 1], [], []>} : vector<16x256xbf16>, vector<256x256xbf16>, vector<16x256xf32> -> vector<16x256xf32>
    %130 = arith.addf %122, %129 : vector<16x256xf32>
    %c3_111 = arith.constant 3 : index
    %c0_112 = arith.constant 0 : index
    %c0_113 = arith.constant 0 : index
    %131 = vector.load %arg9[%c3_111, %c0_112, %c0_113] : memref<4x16x32xbf16, #tpu.memory_space<vmem>>, vector<1x16x32xbf16>
    %132 = vector.shape_cast %131 : vector<1x16x32xbf16> to vector<16x32xbf16>
    %cst_114 = arith.constant dense<0.000000e+00> : vector<16x256xf32>
    %133 = tpu.matmul %132, %107, %cst_114 {dimension_numbers = #tpu.dot_dimension_numbers<[1], [0], [0], [1], [0, 0, 1, 1], [], []>} : vector<16x32xbf16>, vector<32x256xbf16>, vector<16x256xf32> -> vector<16x256xf32>
    %134 = arith.truncf %133 : vector<16x256xf32> to vector<16x256xbf16>
    %c3_115 = arith.constant 3 : index
    %c0_116 = arith.constant 0 : index
    %c0_117 = arith.constant 0 : index
    %135 = vector.load %arg10[%c3_115, %c0_116, %c0_117] : memref<4x256x256xbf16, #tpu.memory_space<vmem>>, vector<1x256x256xbf16>
    %136 = vector.shape_cast %135 : vector<1x256x256xbf16> to vector<256x256xbf16>
    %cst_118 = arith.constant dense<0.000000e+00> : vector<16x256xf32>
    %137 = tpu.matmul %134, %136, %cst_118 {dimension_numbers = #tpu.dot_dimension_numbers<[1], [0], [0], [1], [0, 0, 1, 1], [], []>} : vector<16x256xbf16>, vector<256x256xbf16>, vector<16x256xf32> -> vector<16x256xf32>
    %138 = arith.addf %130, %137 : vector<16x256xf32>
    %cst_119 = arith.constant dense<0.000000e+00> : vector<256xf32>
    %139 = vector.multi_reduction <add>, %138, %cst_119 [0] : vector<16x256xf32> to vector<256xf32>
    %140 = vector.shape_cast %139 : vector<256xf32> to vector<1x256xf32>
    %141 = arith.mulf %138, %138 : vector<16x256xf32>
    %cst_120 = arith.constant dense<0.000000e+00> : vector<256xf32>
    %142 = vector.multi_reduction <add>, %141, %cst_120 [0] : vector<16x256xf32> to vector<256xf32>
    %143 = vector.shape_cast %142 : vector<256xf32> to vector<1x256xf32>
    %c0_121 = arith.constant 0 : index
    %c0_122 = arith.constant 0 : index
    %144 = vector.load %arg11[%c0_121, %c0_122] : memref<256x32xf32, #tpu.memory_space<vmem>>, vector<256x32xf32>
    %cst_123 = arith.constant dense<0.000000e+00> : vector<1x32xf32>
    %145 = tpu.matmul %140, %144, %cst_123 {dimension_numbers = #tpu.dot_dimension_numbers<[1], [0], [0], [1], [0, 0, 1, 1], [], []>} : vector<1x256xf32>, vector<256x32xf32>, vector<1x32xf32> -> vector<1x32xf32>
    %c0_124 = arith.constant 0 : index
    %c0_125 = arith.constant 0 : index
    %146 = vector.load %arg11[%c0_124, %c0_125] : memref<256x32xf32, #tpu.memory_space<vmem>>, vector<256x32xf32>
    %cst_126 = arith.constant dense<0.000000e+00> : vector<1x32xf32>
    %147 = tpu.matmul %143, %146, %cst_126 {dimension_numbers = #tpu.dot_dimension_numbers<[1], [0], [0], [1], [0, 0, 1, 1], [], []>} : vector<1x256xf32>, vector<256x32xf32>, vector<1x32xf32> -> vector<1x32xf32>
    %cst_127 = arith.constant 7.812500e-03 : f32
    %148 = vector.broadcast %cst_127 : f32 to vector<1x32xf32>
    %149 = arith.mulf %145, %148 : vector<1x32xf32>
    %cst_128 = arith.constant 7.812500e-03 : f32
    %150 = vector.broadcast %cst_128 : f32 to vector<1x32xf32>
    %151 = arith.mulf %147, %150 : vector<1x32xf32>
    %152 = arith.mulf %149, %149 : vector<1x32xf32>
    %153 = arith.subf %151, %152 : vector<1x32xf32>
    %cst_129 = arith.constant 0.000000e+00 : f32
    %154 = vector.broadcast %cst_129 : f32 to vector<1x32xf32>
    %155 = arith.maximumf %153, %154 : vector<1x32xf32>
    %c0_130 = arith.constant 0 : index
    %c0_131 = arith.constant 0 : index
    %156 = vector.load %arg13[%c0_130, %c0_131] : memref<1x32xf32, #tpu.memory_space<vmem>>, vector<1x32xf32>
    %cst_132 = arith.constant 9.99999974E-6 : f32
    %157 = vector.broadcast %cst_132 : f32 to vector<1x32xf32>
    %158 = arith.addf %155, %157 : vector<1x32xf32>
    %159 = math.rsqrt %158 : vector<1x32xf32>
    %160 = arith.mulf %156, %159 : vector<1x32xf32>
    %c0_133 = arith.constant 0 : index
    %c0_134 = arith.constant 0 : index
    %161 = vector.load %arg14[%c0_133, %c0_134] : memref<1x32xf32, #tpu.memory_space<vmem>>, vector<1x32xf32>
    %162 = arith.mulf %149, %160 : vector<1x32xf32>
    %163 = arith.subf %161, %162 : vector<1x32xf32>
    %c0_135 = arith.constant 0 : index
    %c0_136 = arith.constant 0 : index
    %164 = vector.load %arg12[%c0_135, %c0_136] : memref<32x256xf32, #tpu.memory_space<vmem>>, vector<32x256xf32>
    %cst_137 = arith.constant dense<0.000000e+00> : vector<1x256xf32>
    %165 = tpu.matmul %160, %164, %cst_137 {dimension_numbers = #tpu.dot_dimension_numbers<[1], [0], [0], [1], [0, 0, 1, 1], [], []>} : vector<1x32xf32>, vector<32x256xf32>, vector<1x256xf32> -> vector<1x256xf32>
    %166 = vector.broadcast %165 : vector<1x256xf32> to vector<16x256xf32>
    %167 = arith.mulf %138, %166 : vector<16x256xf32>
    %c0_138 = arith.constant 0 : index
    %c0_139 = arith.constant 0 : index
    %168 = vector.load %arg12[%c0_138, %c0_139] : memref<32x256xf32, #tpu.memory_space<vmem>>, vector<32x256xf32>
    %cst_140 = arith.constant dense<0.000000e+00> : vector<1x256xf32>
    %169 = tpu.matmul %163, %168, %cst_140 {dimension_numbers = #tpu.dot_dimension_numbers<[1], [0], [0], [1], [0, 0, 1, 1], [], []>} : vector<1x32xf32>, vector<32x256xf32>, vector<1x256xf32> -> vector<1x256xf32>
    %170 = vector.broadcast %169 : vector<1x256xf32> to vector<16x256xf32>
    %171 = arith.addf %167, %170 : vector<16x256xf32>
    %cst_141 = arith.constant 0.000000e+00 : f32
    %172 = vector.broadcast %cst_141 : f32 to vector<16x256xf32>
    %173 = arith.cmpf oge, %171, %172 : vector<16x256xf32>
    %cst_142 = arith.constant 2.000000e-01 : f32
    %174 = vector.broadcast %cst_142 : f32 to vector<16x256xf32>
    %175 = arith.mulf %174, %171 : vector<16x256xf32>
    %176 = arith.select %173, %171, %175 : vector<16x256xi1>, vector<16x256xf32>
    %177 = arith.truncf %176 : vector<16x256xf32> to vector<16x256xbf16>
    %c0_143 = arith.constant 0 : index
    %c0_144 = arith.constant 0 : index
    %c0_145 = arith.constant 0 : index
    %178 = vector.load %arg15[%c0_143, %c0_144, %c0_145] : memref<4x8x16xbf16, #tpu.memory_space<vmem>>, vector<1x8x16xbf16>
    %179 = vector.shape_cast %178 : vector<1x8x16xbf16> to vector<8x16xbf16>
    %cst_146 = arith.constant dense<0.000000e+00> : vector<8x256xf32>
    %180 = tpu.matmul %179, %177, %cst_146 {dimension_numbers = #tpu.dot_dimension_numbers<[1], [0], [0], [1], [0, 0, 1, 1], [], []>} : vector<8x16xbf16>, vector<16x256xbf16>, vector<8x256xf32> -> vector<8x256xf32>
    %181 = arith.truncf %180 : vector<8x256xf32> to vector<8x256xbf16>
    %c0_147 = arith.constant 0 : index
    %c0_148 = arith.constant 0 : index
    %c0_149 = arith.constant 0 : index
    %182 = vector.load %arg16[%c0_147, %c0_148, %c0_149] : memref<4x256x256xbf16, #tpu.memory_space<vmem>>, vector<1x256x256xbf16>
    %183 = vector.shape_cast %182 : vector<1x256x256xbf16> to vector<256x256xbf16>
    %cst_150 = arith.constant dense<0.000000e+00> : vector<8x256xf32>
    %184 = tpu.matmul %181, %183, %cst_150 {dimension_numbers = #tpu.dot_dimension_numbers<[1], [0], [0], [1], [0, 0, 1, 1], [], []>} : vector<8x256xbf16>, vector<256x256xbf16>, vector<8x256xf32> -> vector<8x256xf32>
    %c1_151 = arith.constant 1 : index
    %c0_152 = arith.constant 0 : index
    %c0_153 = arith.constant 0 : index
    %185 = vector.load %arg15[%c1_151, %c0_152, %c0_153] : memref<4x8x16xbf16, #tpu.memory_space<vmem>>, vector<1x8x16xbf16>
    %186 = vector.shape_cast %185 : vector<1x8x16xbf16> to vector<8x16xbf16>
    %cst_154 = arith.constant dense<0.000000e+00> : vector<8x256xf32>
    %187 = tpu.matmul %186, %177, %cst_154 {dimension_numbers = #tpu.dot_dimension_numbers<[1], [0], [0], [1], [0, 0, 1, 1], [], []>} : vector<8x16xbf16>, vector<16x256xbf16>, vector<8x256xf32> -> vector<8x256xf32>
    %188 = arith.truncf %187 : vector<8x256xf32> to vector<8x256xbf16>
    %c1_155 = arith.constant 1 : index
    %c0_156 = arith.constant 0 : index
    %c0_157 = arith.constant 0 : index
    %189 = vector.load %arg16[%c1_155, %c0_156, %c0_157] : memref<4x256x256xbf16, #tpu.memory_space<vmem>>, vector<1x256x256xbf16>
    %190 = vector.shape_cast %189 : vector<1x256x256xbf16> to vector<256x256xbf16>
    %cst_158 = arith.constant dense<0.000000e+00> : vector<8x256xf32>
    %191 = tpu.matmul %188, %190, %cst_158 {dimension_numbers = #tpu.dot_dimension_numbers<[1], [0], [0], [1], [0, 0, 1, 1], [], []>} : vector<8x256xbf16>, vector<256x256xbf16>, vector<8x256xf32> -> vector<8x256xf32>
    %192 = arith.addf %184, %191 : vector<8x256xf32>
    %c2_159 = arith.constant 2 : index
    %c0_160 = arith.constant 0 : index
    %c0_161 = arith.constant 0 : index
    %193 = vector.load %arg15[%c2_159, %c0_160, %c0_161] : memref<4x8x16xbf16, #tpu.memory_space<vmem>>, vector<1x8x16xbf16>
    %194 = vector.shape_cast %193 : vector<1x8x16xbf16> to vector<8x16xbf16>
    %cst_162 = arith.constant dense<0.000000e+00> : vector<8x256xf32>
    %195 = tpu.matmul %194, %177, %cst_162 {dimension_numbers = #tpu.dot_dimension_numbers<[1], [0], [0], [1], [0, 0, 1, 1], [], []>} : vector<8x16xbf16>, vector<16x256xbf16>, vector<8x256xf32> -> vector<8x256xf32>
    %196 = arith.truncf %195 : vector<8x256xf32> to vector<8x256xbf16>
    %c2_163 = arith.constant 2 : index
    %c0_164 = arith.constant 0 : index
    %c0_165 = arith.constant 0 : index
    %197 = vector.load %arg16[%c2_163, %c0_164, %c0_165] : memref<4x256x256xbf16, #tpu.memory_space<vmem>>, vector<1x256x256xbf16>
    %198 = vector.shape_cast %197 : vector<1x256x256xbf16> to vector<256x256xbf16>
    %cst_166 = arith.constant dense<0.000000e+00> : vector<8x256xf32>
    %199 = tpu.matmul %196, %198, %cst_166 {dimension_numbers = #tpu.dot_dimension_numbers<[1], [0], [0], [1], [0, 0, 1, 1], [], []>} : vector<8x256xbf16>, vector<256x256xbf16>, vector<8x256xf32> -> vector<8x256xf32>
    %200 = arith.addf %192, %199 : vector<8x256xf32>
    %c3_167 = arith.constant 3 : index
    %c0_168 = arith.constant 0 : index
    %c0_169 = arith.constant 0 : index
    %201 = vector.load %arg15[%c3_167, %c0_168, %c0_169] : memref<4x8x16xbf16, #tpu.memory_space<vmem>>, vector<1x8x16xbf16>
    %202 = vector.shape_cast %201 : vector<1x8x16xbf16> to vector<8x16xbf16>
    %cst_170 = arith.constant dense<0.000000e+00> : vector<8x256xf32>
    %203 = tpu.matmul %202, %177, %cst_170 {dimension_numbers = #tpu.dot_dimension_numbers<[1], [0], [0], [1], [0, 0, 1, 1], [], []>} : vector<8x16xbf16>, vector<16x256xbf16>, vector<8x256xf32> -> vector<8x256xf32>
    %204 = arith.truncf %203 : vector<8x256xf32> to vector<8x256xbf16>
    %c3_171 = arith.constant 3 : index
    %c0_172 = arith.constant 0 : index
    %c0_173 = arith.constant 0 : index
    %205 = vector.load %arg16[%c3_171, %c0_172, %c0_173] : memref<4x256x256xbf16, #tpu.memory_space<vmem>>, vector<1x256x256xbf16>
    %206 = vector.shape_cast %205 : vector<1x256x256xbf16> to vector<256x256xbf16>
    %cst_174 = arith.constant dense<0.000000e+00> : vector<8x256xf32>
    %207 = tpu.matmul %204, %206, %cst_174 {dimension_numbers = #tpu.dot_dimension_numbers<[1], [0], [0], [1], [0, 0, 1, 1], [], []>} : vector<8x256xbf16>, vector<256x256xbf16>, vector<8x256xf32> -> vector<8x256xf32>
    %208 = arith.addf %200, %207 : vector<8x256xf32>
    %cst_175 = arith.constant dense<0.000000e+00> : vector<256xf32>
    %209 = vector.multi_reduction <add>, %208, %cst_175 [0] : vector<8x256xf32> to vector<256xf32>
    %210 = vector.shape_cast %209 : vector<256xf32> to vector<1x256xf32>
    %211 = arith.mulf %208, %208 : vector<8x256xf32>
    %cst_176 = arith.constant dense<0.000000e+00> : vector<256xf32>
    %212 = vector.multi_reduction <add>, %211, %cst_176 [0] : vector<8x256xf32> to vector<256xf32>
    %213 = vector.shape_cast %212 : vector<256xf32> to vector<1x256xf32>
    %c0_177 = arith.constant 0 : index
    %c0_178 = arith.constant 0 : index
    %214 = vector.load %arg17[%c0_177, %c0_178] : memref<256x64xf32, #tpu.memory_space<vmem>>, vector<256x64xf32>
    %cst_179 = arith.constant dense<0.000000e+00> : vector<1x64xf32>
    %215 = tpu.matmul %210, %214, %cst_179 {dimension_numbers = #tpu.dot_dimension_numbers<[1], [0], [0], [1], [0, 0, 1, 1], [], []>} : vector<1x256xf32>, vector<256x64xf32>, vector<1x64xf32> -> vector<1x64xf32>
    %c0_180 = arith.constant 0 : index
    %c0_181 = arith.constant 0 : index
    %216 = vector.load %arg17[%c0_180, %c0_181] : memref<256x64xf32, #tpu.memory_space<vmem>>, vector<256x64xf32>
    %cst_182 = arith.constant dense<0.000000e+00> : vector<1x64xf32>
    %217 = tpu.matmul %213, %216, %cst_182 {dimension_numbers = #tpu.dot_dimension_numbers<[1], [0], [0], [1], [0, 0, 1, 1], [], []>} : vector<1x256xf32>, vector<256x64xf32>, vector<1x64xf32> -> vector<1x64xf32>
    %cst_183 = arith.constant 3.125000e-02 : f32
    %218 = vector.broadcast %cst_183 : f32 to vector<1x64xf32>
    %219 = arith.mulf %215, %218 : vector<1x64xf32>
    %cst_184 = arith.constant 3.125000e-02 : f32
    %220 = vector.broadcast %cst_184 : f32 to vector<1x64xf32>
    %221 = arith.mulf %217, %220 : vector<1x64xf32>
    %222 = arith.mulf %219, %219 : vector<1x64xf32>
    %223 = arith.subf %221, %222 : vector<1x64xf32>
    %cst_185 = arith.constant 0.000000e+00 : f32
    %224 = vector.broadcast %cst_185 : f32 to vector<1x64xf32>
    %225 = arith.maximumf %223, %224 : vector<1x64xf32>
    %c0_186 = arith.constant 0 : index
    %c0_187 = arith.constant 0 : index
    %226 = vector.load %arg19[%c0_186, %c0_187] : memref<1x64xf32, #tpu.memory_space<vmem>>, vector<1x64xf32>
    %cst_188 = arith.constant 9.99999974E-6 : f32
    %227 = vector.broadcast %cst_188 : f32 to vector<1x64xf32>
    %228 = arith.addf %225, %227 : vector<1x64xf32>
    %229 = math.rsqrt %228 : vector<1x64xf32>
    %230 = arith.mulf %226, %229 : vector<1x64xf32>
    %c0_189 = arith.constant 0 : index
    %c0_190 = arith.constant 0 : index
    %231 = vector.load %arg20[%c0_189, %c0_190] : memref<1x64xf32, #tpu.memory_space<vmem>>, vector<1x64xf32>
    %232 = arith.mulf %219, %230 : vector<1x64xf32>
    %233 = arith.subf %231, %232 : vector<1x64xf32>
    %c0_191 = arith.constant 0 : index
    %c0_192 = arith.constant 0 : index
    %234 = vector.load %arg18[%c0_191, %c0_192] : memref<64x256xf32, #tpu.memory_space<vmem>>, vector<64x256xf32>
    %cst_193 = arith.constant dense<0.000000e+00> : vector<1x256xf32>
    %235 = tpu.matmul %230, %234, %cst_193 {dimension_numbers = #tpu.dot_dimension_numbers<[1], [0], [0], [1], [0, 0, 1, 1], [], []>} : vector<1x64xf32>, vector<64x256xf32>, vector<1x256xf32> -> vector<1x256xf32>
    %236 = vector.broadcast %235 : vector<1x256xf32> to vector<8x256xf32>
    %237 = arith.mulf %208, %236 : vector<8x256xf32>
    %c0_194 = arith.constant 0 : index
    %c0_195 = arith.constant 0 : index
    %238 = vector.load %arg18[%c0_194, %c0_195] : memref<64x256xf32, #tpu.memory_space<vmem>>, vector<64x256xf32>
    %cst_196 = arith.constant dense<0.000000e+00> : vector<1x256xf32>
    %239 = tpu.matmul %233, %238, %cst_196 {dimension_numbers = #tpu.dot_dimension_numbers<[1], [0], [0], [1], [0, 0, 1, 1], [], []>} : vector<1x64xf32>, vector<64x256xf32>, vector<1x256xf32> -> vector<1x256xf32>
    %240 = vector.broadcast %239 : vector<1x256xf32> to vector<8x256xf32>
    %241 = arith.addf %237, %240 : vector<8x256xf32>
    %cst_197 = arith.constant 0.000000e+00 : f32
    %242 = vector.broadcast %cst_197 : f32 to vector<8x256xf32>
    %243 = arith.cmpf oge, %241, %242 : vector<8x256xf32>
    %cst_198 = arith.constant 2.000000e-01 : f32
    %244 = vector.broadcast %cst_198 : f32 to vector<8x256xf32>
    %245 = arith.mulf %244, %241 : vector<8x256xf32>
    %246 = arith.select %243, %241, %245 : vector<8x256xi1>, vector<8x256xf32>
    %c0_199 = arith.constant 0 : index
    %c0_200 = arith.constant 0 : index
    %247 = vector.load %arg21[%c0_199, %c0_200] : memref<8x256xf32, #tpu.memory_space<vmem>>, vector<8x256xf32>
    %248 = arith.mulf %246, %247 : vector<8x256xf32>
    %c0_201 = arith.constant 0 : index
    %c0_202 = arith.constant 0 : index
    %249 = vector.load %arg22[%c0_201, %c0_202] : memref<2x8xf32, #tpu.memory_space<vmem>>, vector<2x8xf32>
    %cst_203 = arith.constant dense<0.000000e+00> : vector<2x256xf32>
    %250 = tpu.matmul %249, %248, %cst_203 {dimension_numbers = #tpu.dot_dimension_numbers<[1], [0], [0], [1], [0, 0, 1, 1], [], []>} : vector<2x8xf32>, vector<8x256xf32>, vector<2x256xf32> -> vector<2x256xf32>
    %cst_204 = arith.constant dense<0.000000e+00> : vector<2xf32>
    %251 = vector.multi_reduction <add>, %250, %cst_204 [1] : vector<2x256xf32> to vector<2xf32>
    %252 = vector.shape_cast %251 : vector<2xf32> to vector<2x1xf32>
    %cst_205 = arith.constant 0.000000e+00 : f32
    %253 = vector.broadcast %cst_205 : f32 to vector<2x1xf32>
    %254 = arith.subf %253, %252 : vector<2x1xf32>
    %255 = math.exp %254 : vector<2x1xf32>
    %cst_206 = arith.constant 1.000000e+00 : f32
    %256 = vector.broadcast %cst_206 : f32 to vector<2x1xf32>
    %257 = arith.addf %256, %255 : vector<2x1xf32>
    %cst_207 = arith.constant 1.000000e+00 : f32
    %258 = vector.broadcast %cst_207 : f32 to vector<2x1xf32>
    %259 = arith.divf %258, %257 : vector<2x1xf32>
    %c0_208 = arith.constant 0 : index
    %c0_209 = arith.constant 0 : index
    %260 = vector.load %arg23[%c0_208, %c0_209] : memref<2x1xf32, #tpu.memory_space<vmem>>, vector<2x1xf32>
    tpu.vector_store %arg23[%c0_208, %c0_209], %259 {strides = array<i32>} : memref<2x1xf32, #tpu.memory_space<vmem>>, vector<2x1xf32>,
    return
  }
}

</mosaic_0001>

<llo_original>
// kernel: tile.7
$region0: #{tile.7}
  %s0 = inlined_call_operand.vmem [shape: f32[2,4,256], index: 0, kind: input, shape index: {}]
  %s1 = inlined_call_operand.vmem [shape: f32[8,256], index: 1, kind: output, shape index: {}]
  $region1: #{tile.7} parent=0
    #allocation0 [shape = 'u8[16384]{0}', space=vmem, size = 0x4000, scoped, tag = 'scoped mem for input reshape']
    %s3 = ssub.s32 16, 1
    %s4 = scalar_lea.vmem %s0, 12
    %v5 = vld [vmem:[%s4] sm:%s3]
    %s6 = scalar_lea.vmem [#allocation0], 24
    %7 = vst [vmem:[%s6] sm:%s3] %v5
    %s8 = scalar_lea.vmem %s0, 8
    %v9 = vld [vmem:[%s8] sm:%s3]
    %s10 = scalar_lea.vmem [#allocation0], 16
    %11 = vst [vmem:[%s10] sm:%s3] %v9
    %s12 = scalar_lea.vmem %s0, 4
    %v13 = vld [vmem:[%s12] sm:%s3]
    %s14 = scalar_lea.vmem [#allocation0], 8
    %15 = vst [vmem:[%s14] sm:%s3] %v13
    %v16 = vld [vmem:[%s0] sm:%s3]
    %17 = vst [vmem:[#allocation0] sm:%s3] %v16
    %v18 = vld [vmem:[#allocation0] sm:$0xf]
    %19 = vst [vmem:[%s1] sm:$0xf] %v18
    %s20 = scalar_lea.vmem [#allocation0], 8
    %v21 = vld [vmem:[%s20] sm:$0xf]
    %s22 = scalar_lea.vmem %s1, 8
    %23 = vst [vmem:[%s22] sm:$0xf] %v21
    %s24 = scalar_lea.vmem [#allocation0], 16
    %v25 = vld [vmem:[%s24] sm:$0xf]
    %s26 = scalar_lea.vmem %s1, 4
    %27 = vst [vmem:[%s26] sm:$0xf] %v25
    %s28 = scalar_lea.vmem [#allocation0], 24
    %v29 = vld [vmem:[%s28] sm:$0xf]
    %s30 = scalar_lea.vmem %s1, 12
    %31 = vst [vmem:[%s30] sm:$0xf] %v29

// kernel: discriminator_forward.1
$region0: #{discriminator_forward.1}
  #allocation0 [shape = 'u32[]', space=smem, size = 0x4, offset = 0x4, fixed_abs, tag = 'smem constant byte address 0x4 - core index']
  #allocation1 [shape = 'u32[72,128]{1,0:T(1,128)}', space=vmem, size = 0x9000, scoped, tag = 'internal scratch']
  %s0 = inlined_call_operand.vmem [shape: bf16[128,256], index: 0, kind: input, shape index: {}]
  %s1 = inlined_call_operand.vmem [shape: bf16[4,64,128], index: 1, kind: input, shape index: {}]
  %s2 = inlined_call_operand.vmem [shape: bf16[4,256,256], index: 2, kind: input, shape index: {}]
  %s3 = inlined_call_operand.vmem [shape: bf16[4,32,64], index: 3, kind: input, shape index: {}]
  %s4 = inlined_call_operand.vmem [shape: bf16[4,256,256], index: 4, kind: input, shape index: {}]
  %s5 = inlined_call_operand.vmem [shape: f32[256,16], index: 5, kind: input, shape index: {}]
  %s6 = inlined_call_operand.vmem [shape: f32[16,256], index: 6, kind: input, shape index: {}]
  %s7 = inlined_call_operand.vmem [shape: f32[1,16], index: 7, kind: input, shape index: {}]
  %s8 = inlined_call_operand.vmem [shape: f32[1,16], index: 8, kind: input, shape index: {}]
  %s9 = inlined_call_operand.vmem [shape: bf16[4,16,32], index: 9, kind: input, shape index: {}]
  %s10 = inlined_call_operand.vmem [shape: bf16[4,256,256], index: 10, kind: input, shape index: {}]
  %s11 = inlined_call_operand.vmem [shape: f32[256,32], index: 11, kind: input, shape index: {}]
  %s12 = inlined_call_operand.vmem [shape: f32[32,256], index: 12, kind: input, shape index: {}]
  %s13 = inlined_call_operand.vmem [shape: f32[1,32], index: 13, kind: input, shape index: {}]
  %s14 = inlined_call_operand.vmem [shape: f32[1,32], index: 14, kind: input, shape index: {}]
  %s15 = inlined_call_operand.vmem [shape: bf16[4,8,16], index: 15, kind: input, shape index: {}]
  %s16 = inlined_call_operand.vmem [shape: bf16[4,256,256], index: 16, kind: input, shape index: {}]
  %s17 = inlined_call_operand.vmem [shape: f32[256,64], index: 17, kind: input, shape index: {}]
  %s18 = inlined_call_operand.vmem [shape: f32[64,256], index: 18, kind: input, shape index: {}]
  %s19 = inlined_call_operand.vmem [shape: f32[1,64], index: 19, kind: input, shape index: {}]
  %s20 = inlined_call_operand.vmem [shape: f32[1,64], index: 20, kind: input, shape index: {}]
  %s21 = inlined_call_operand.vmem [shape: f32[8,256], index: 21, kind: input, shape index: {}]
  %s22 = inlined_call_operand.vmem [shape: f32[2,8], index: 22, kind: input, shape index: {}]
  %s23 = inlined_call_operand.vmem [shape: f32[2,1], index: 23, kind: output, shape index: {}]
  %s24 = sld [smem:[#allocation0]]
  $region102: #{discriminator_forward.1} parent=0
    _
  %s26 = ssub.s32 1, %s24
  %s27 = scalar_select 0, %s26, %s24
  // Predicated region
  $region2: #{discriminator_forward.1} parent=0 // pred_check
    _
  $region3: #{discriminator_forward.1} parent=0 // pred_check_branch
    %29 = sbr.rel (0) target = $region5
  $region4: #{discriminator_forward.1} parent=0 // pred_region
    _
  $region5: #{discriminator_forward.1} parent=0 // pred_fallthru
    _
  // Predicated region
  $region6: #{discriminator_forward.1} parent=0 // pred_check
    _
  $region7: #{discriminator_forward.1} parent=0 // pred_check_branch
    %31 = sbr.rel (0) target = $region9
  $region8: #{discriminator_forward.1} parent=0 // pred_region
    _
  $region9: #{discriminator_forward.1} parent=0 // pred_fallthru
    _
  // Predicated region
  $region10: #{discriminator_forward.1} parent=0 // pred_check
    _
  $region11: #{discriminator_forward.1} parent=0 // pred_check_branch
    %33 = sbr.rel (0) target = $region13
  $region12: #{discriminator_forward.1} parent=0 // pred_region
    _
  $region13: #{discriminator_forward.1} parent=0 // pred_fallthru
    _
  // Predicated region
  $region14: #{discriminator_forward.1} parent=0 // pred_check
    _
  $region15: #{discriminator_forward.1} parent=0 // pred_check_branch
    %35 = sbr.rel (0) target = $region17
  $region16: #{discriminator_forward.1} parent=0 // pred_region
    _
  $region17: #{discriminator_forward.1} parent=0 // pred_fallthru
    _
  // Predicated region
  $region18: #{discriminator_forward.1} parent=0 // pred_check
    _
  $region19: #{discriminator_forward.1} parent=0 // pred_check_branch
    %37 = sbr.rel (0) target = $region21
  $region20: #{discriminator_forward.1} parent=0 // pred_region
    _
  $region21: #{discriminator_forward.1} parent=0 // pred_fallthru
    _
  // Predicated region
  $region22: #{discriminator_forward.1} parent=0 // pred_check
    _
  $region23: #{discriminator_forward.1} parent=0 // pred_check_branch
    %39 = sbr.rel (0) target = $region25
  $region24: #{discriminator_forward.1} parent=0 // pred_region
    _
  $region25: #{discriminator_forward.1} parent=0 // pred_fallthru
    _
  // Predicated region
  $region26: #{discriminator_forward.1} parent=0 // pred_check
    _
  $region27: #{discriminator_forward.1} parent=0 // pred_check_branch
    %41 = sbr.rel (0) target = $region29
  $region28: #{discriminator_forward.1} parent=0 // pred_region
    _
  $region29: #{discriminator_forward.1} parent=0 // pred_fallthru
    _
  // Predicated region
  $region30: #{discriminator_forward.1} parent=0 // pred_check
    _
  $region31: #{discriminator_forward.1} parent=0 // pred_check_branch
    %43 = sbr.rel (0) target = $region33
  $region32: #{discriminator_forward.1} parent=0 // pred_region
    _
  $region33: #{discriminator_forward.1} parent=0 // pred_fallthru
    _
  // Predicated region
  $region34: #{discriminator_forward.1} parent=0 // pred_check
    _
  $region35: #{discriminator_forward.1} parent=0 // pred_check_branch
    %45 = sbr.rel (0) target = $region37
  $region36: #{discriminator_forward.1} parent=0 // pred_region
    _
  $region37: #{discriminator_forward.1} parent=0 // pred_fallthru
    _
  // Predicated region
  $region38: #{discriminator_forward.1} parent=0 // pred_check
    _
  $region39: #{discriminator_forward.1} parent=0 // pred_check_branch
    %47 = sbr.rel (0) target = $region41
  $region40: #{discriminator_forward.1} parent=0 // pred_region
    _
  $region41: #{discriminator_forward.1} parent=0 // pred_fallthru
    _
  // Predicated region
  $region42: #{discriminator_forward.1} parent=0 // pred_check
    _
  $region43: #{discriminator_forward.1} parent=0 // pred_check_branch
    %49 = sbr.rel (0) target = $region45
  $region44: #{discriminator_forward.1} parent=0 // pred_region
    _
  $region45: #{discriminator_forward.1} parent=0 // pred_fallthru
    _
  // Predicated region
  $region46: #{discriminator_forward.1} parent=0 // pred_check
    _
  $region47: #{discriminator_forward.1} parent=0 // pred_check_branch
    %51 = sbr.rel (0) target = $region49
  $region48: #{discriminator_forward.1} parent=0 // pred_region
    _
  $region49: #{discriminator_forward.1} parent=0 // pred_fallthru
    _
  // Predicated region
  $region50: #{discriminator_forward.1} parent=0 // pred_check
    _
  $region51: #{discriminator_forward.1} parent=0 // pred_check_branch
    %53 = sbr.rel (0) target = $region53
  $region52: #{discriminator_forward.1} parent=0 // pred_region
    _
  $region53: #{discriminator_forward.1} parent=0 // pred_fallthru
    _
  // Predicated region
  $region54: #{discriminator_forward.1} parent=0 // pred_check
    _
  $region55: #{discriminator_forward.1} parent=0 // pred_check_branch
    %55 = sbr.rel (0) target = $region57
  $region56: #{discriminator_forward.1} parent=0 // pred_region
    _
  $region57: #{discriminator_forward.1} parent=0 // pred_fallthru
    _
  // Predicated region
  $region58: #{discriminator_forward.1} parent=0 // pred_check
    _
  $region59: #{discriminator_forward.1} parent=0 // pred_check_branch
    %57 = sbr.rel (0) target = $region61
  $region60: #{discriminator_forward.1} parent=0 // pred_region
    _
  $region61: #{discriminator_forward.1} parent=0 // pred_fallthru
    _
  // Predicated region
  $region62: #{discriminator_forward.1} parent=0 // pred_check
    _
  $region63: #{discriminator_forward.1} parent=0 // pred_check_branch
    %59 = sbr.rel (0) target = $region65
  $region64: #{discriminator_forward.1} parent=0 // pred_region
    _
  $region65: #{discriminator_forward.1} parent=0 // pred_fallthru
    _
  // Predicated region
  $region66: #{discriminator_forward.1} parent=0 // pred_check
    _
  $region67: #{discriminator_forward.1} parent=0 // pred_check_branch
    %61 = sbr.rel (0) target = $region69
  $region68: #{discriminator_forward.1} parent=0 // pred_region
    _
  $region69: #{discriminator_forward.1} parent=0 // pred_fallthru
    _
  // Predicated region
  $region70: #{discriminator_forward.1} parent=0 // pred_check
    _
  $region71: #{discriminator_forward.1} parent=0 // pred_check_branch
    %63 = sbr.rel (0) target = $region73
  $region72: #{discriminator_forward.1} parent=0 // pred_region
    _
  $region73: #{discriminator_forward.1} parent=0 // pred_fallthru
    _
  // Predicated region
  $region74: #{discriminator_forward.1} parent=0 // pred_check
    _
  $region75: #{discriminator_forward.1} parent=0 // pred_check_branch
    %65 = sbr.rel (0) target = $region77
  $region76: #{discriminator_forward.1} parent=0 // pred_region
    _
  $region77: #{discriminator_forward.1} parent=0 // pred_fallthru
    _
  // Predicated region
  $region78: #{discriminator_forward.1} parent=0 // pred_check
    _
  $region79: #{discriminator_forward.1} parent=0 // pred_check_branch
    %67 = sbr.rel (0) target = $region81
  $region80: #{discriminator_forward.1} parent=0 // pred_region
    _
  $region81: #{discriminator_forward.1} parent=0 // pred_fallthru
    _
  // Predicated region
  $region82: #{discriminator_forward.1} parent=0 // pred_check
    _
  $region83: #{discriminator_forward.1} parent=0 // pred_check_branch
    %69 = sbr.rel (0) target = $region85
  $region84: #{discriminator_forward.1} parent=0 // pred_region
    _
  $region85: #{discriminator_forward.1} parent=0 // pred_fallthru
    _
  // Predicated region
  $region86: #{discriminator_forward.1} parent=0 // pred_check
    _
  $region87: #{discriminator_forward.1} parent=0 // pred_check_branch
    %71 = sbr.rel (0) target = $region89
  $region88: #{discriminator_forward.1} parent=0 // pred_region
    _
  $region89: #{discriminator_forward.1} parent=0 // pred_fallthru
    _
  // Predicated region
  $region90: #{discriminator_forward.1} parent=0 // pred_check
    _
  $region91: #{discriminator_forward.1} parent=0 // pred_check_branch
    %73 = sbr.rel (0) target = $region93
  $region92: #{discriminator_forward.1} parent=0 // pred_region
    _
  $region93: #{discriminator_forward.1} parent=0 // pred_fallthru
    _
  %v75 = vld [vmem:[%s0] sm:$0xff]
  %v76 = vld [vmem:[%s0 + $0x8] sm:$0xff]
  %v77 = vld [vmem:[%s0 + $0x10] sm:$0xff]
  %v78 = vld [vmem:[%s0 + $0x18] sm:$0xff]
  %v79 = vld [vmem:[%s0 + $0x20] sm:$0xff]
  %v80 = vld [vmem:[%s0 + $0x28] sm:$0xff]
  %v81 = vld [vmem:[%s0 + $0x30] sm:$0xff]
  %v82 = vld [vmem:[%s0 + $0x38] sm:$0xff]
  %v83 = vld [vmem:[%s0 + $0x40] sm:$0xff]
  %v84 = vld [vmem:[%s0 + $0x48] sm:$0xff]
  %v85 = vld [vmem:[%s0 + $0x50] sm:$0xff]
  %v86 = vld [vmem:[%s0 + $0x58] sm:$0xff]
  %v87 = vld [vmem:[%s0 + $0x60] sm:$0xff]
  %v88 = vld [vmem:[%s0 + $0x68] sm:$0xff]
  %v89 = vld [vmem:[%s0 + $0x70] sm:$0xff]
  %v90 = vld [vmem:[%s0 + $0x78] sm:$0xff]
  %v91 = vld [vmem:[%s1] sm:$0xf]
  %v92 = vld [vmem:[%s1 + $0x4] sm:$0xf]
  %v93 = vld [vmem:[%s1 + $0x8] sm:$0xf]
  %v94 = vld [vmem:[%s1 + $0xc] sm:$0xf]
  %v95 = vld [vmem:[%s1 + $0x10] sm:$0xf]
  %v96 = vld [vmem:[%s1 + $0x14] sm:$0xf]
  %v97 = vld [vmem:[%s1 + $0x18] sm:$0xf]
  %v98 = vld [vmem:[%s1 + $0x1c] sm:$0xf]
  %v107 = vunpack.c.l.b16 %v91
  %v108 = vunpack.c.l.b16 %v92
  %v109 = vunpack.c.l.b16 %v93
  %v110 = vunpack.c.l.b16 %v94
  %v111 = vunpack.c.l.b16 %v95
  %v112 = vunpack.c.l.b16 %v96
  %v113 = vunpack.c.l.b16 %v97
  %v114 = vunpack.c.l.b16 %v98
  %v115 = vpack.c.b16 %v108, %v107
  %v116 = vpack.c.b16 %v110, %v109
  %v117 = vpack.c.b16 %v112, %v111
  %v118 = vpack.c.b16 %v114, %v113
  %v139 = vunpack.c.l.b16 %v75
  %v140 = vunpack.c.h.b16 %v75
  %v141 = vunpack.c.l.b16 %v76
  %v142 = vunpack.c.h.b16 %v76
  %v143 = vunpack.c.l.b16 %v77
  %v144 = vunpack.c.h.b16 %v77
  %v145 = vunpack.c.l.b16 %v78
  %v146 = vunpack.c.h.b16 %v78
  %v147 = vunpack.c.l.b16 %v79
  %v148 = vunpack.c.h.b16 %v79
  %v149 = vunpack.c.l.b16 %v80
  %v150 = vunpack.c.h.b16 %v80
  %v151 = vunpack.c.l.b16 %v81
  %v152 = vunpack.c.h.b16 %v81
  %v153 = vunpack.c.l.b16 %v82
  %v154 = vunpack.c.h.b16 %v82
  %v155 = vunpack.c.l.b16 %v83
  %v156 = vunpack.c.h.b16 %v83
  %v157 = vunpack.c.l.b16 %v84
  %v158 = vunpack.c.h.b16 %v84
  %v159 = vunpack.c.l.b16 %v85
  %v160 = vunpack.c.h.b16 %v85
  %v161 = vunpack.c.l.b16 %v86
  %v162 = vunpack.c.h.b16 %v86
  %v163 = vunpack.c.l.b16 %v87
  %v164 = vunpack.c.h.b16 %v87
  %v165 = vunpack.c.l.b16 %v88
  %v166 = vunpack.c.h.b16 %v88
  %v167 = vunpack.c.l.b16 %v89
  %v168 = vunpack.c.h.b16 %v89
  %v169 = vunpack.c.l.b16 %v90
  %v170 = vunpack.c.h.b16 %v90
  %v171 = vpack.c.b16 %v141, %v139
  %v172 = vpack.c.b16 %v142, %v140
  %v173 = vpack.c.b16 %v145, %v143
  %v174 = vpack.c.b16 %v146, %v144
  %v175 = vpack.c.b16 %v149, %v147
  %v176 = vpack.c.b16 %v150, %v148
  %v177 = vpack.c.b16 %v153, %v151
  %v178 = vpack.c.b16 %v154, %v152
  %v179 = vpack.c.b16 %v157, %v155
  %v180 = vpack.c.b16 %v158, %v156
  %v181 = vpack.c.b16 %v161, %v159
  %v182 = vpack.c.b16 %v162, %v160
  %v183 = vpack.c.b16 %v165, %v163
  %v184 = vpack.c.b16 %v166, %v164
  %v185 = vpack.c.b16 %v169, %v167
  %v186 = vpack.c.b16 %v170, %v168
  %203 = vmatpush.bf16.msra.mxu0 %v185
  %204 = vmatpush.bf16.msra.mxu0 %v183
  %205 = vmatpush.bf16.msra.mxu0 %v181
  %206 = vmatpush.bf16.msra.mxu0 %v179
  %207 = vmatpush.bf16.msra.mxu0 %v177
  %208 = vmatpush.bf16.msra.mxu0 %v175
  %209 = vmatpush.bf16.msra.mxu0 %v173
  %210 = vmatpush.bf16.msra.mxu0 %v171
  %211 = vmatmul.bf16.gmra.mxu0 %v115
  %v212 = vpop.f32.mrf.mxu0
  %v213 = vadd.f32 0.0, %v212
  %v214 = vpop.f32.mrf.mxu0
  %v215 = vadd.f32 0.0, %v214
  %216 = vmatmul.bf16.gmra.mxu0 %v116
  %v217 = vpop.f32.mrf.mxu0
  %v218 = vadd.f32 0.0, %v217
  %v219 = vpop.f32.mrf.mxu0
  %v220 = vadd.f32 0.0, %v219
  %221 = vmatmul.bf16.gmra.mxu0 %v117
  %v222 = vpop.f32.mrf.mxu0
  %v223 = vadd.f32 0.0, %v222
  %v224 = vpop.f32.mrf.mxu0
  %v225 = vadd.f32 0.0, %v224
  %226 = vmatmul.bf16.gmra.mxu0 %v118
  %v227 = vpop.f32.mrf.mxu0
  %v228 = vadd.f32 0.0, %v227
  %v229 = vpop.f32.mrf.mxu0
  %v230 = vadd.f32 0.0, %v229
  %231 = vdwg.mxu0
  %232 = vmatpush.bf16.msra.mxu0 %v186
  %233 = vmatpush.bf16.msra.mxu0 %v184
  %234 = vmatpush.bf16.msra.mxu0 %v182
  %235 = vmatpush.bf16.msra.mxu0 %v180
  %236 = vmatpush.bf16.msra.mxu0 %v178
  %237 = vmatpush.bf16.msra.mxu0 %v176
  %238 = vmatpush.bf16.msra.mxu0 %v174
  %239 = vmatpush.bf16.msra.mxu0 %v172
  %240 = vmatmul.bf16.gmra.mxu0 %v115
  %v241 = vpop.f32.mrf.mxu0
  %v242 = vadd.f32 0.0, %v241
  %v243 = vpop.f32.mrf.mxu0
  %v244 = vadd.f32 0.0, %v243
  %245 = vmatmul.bf16.gmra.mxu0 %v116
  %v246 = vpop.f32.mrf.mxu0
  %v247 = vadd.f32 0.0, %v246
  %v248 = vpop.f32.mrf.mxu0
  %v249 = vadd.f32 0.0, %v248
  %250 = vmatmul.bf16.gmra.mxu0 %v117
  %v251 = vpop.f32.mrf.mxu0
  %v252 = vadd.f32 0.0, %v251
  %v253 = vpop.f32.mrf.mxu0
  %v254 = vadd.f32 0.0, %v253
  %255 = vmatmul.bf16.gmra.mxu0 %v118
  %v256 = vpop.f32.mrf.mxu0
  %v257 = vadd.f32 0.0, %v256
  %v258 = vpop.f32.mrf.mxu0
  %v259 = vadd.f32 0.0, %v258
  %260 = vdwg.mxu0
  %v261 = vpack.c.bf16 %v215, %v213
  %v262 = vpack.c.bf16 %v244, %v242
  %v263 = vpack.c.bf16 %v220, %v218
  %v264 = vpack.c.bf16 %v249, %v247
  %v265 = vpack.c.bf16 %v225, %v223
  %v266 = vpack.c.bf16 %v254, %v252
  %v267 = vpack.c.bf16 %v230, %v228
  %v268 = vpack.c.bf16 %v259, %v257
  %v269 = vld [vmem:[%s2] sm:$0xff]
  %v270 = vld [vmem:[%s2 + $0x8] sm:$0xff]
  %v271 = vld [vmem:[%s2 + $0x10] sm:$0xff]
  %v272 = vld [vmem:[%s2 + $0x18] sm:$0xff]
  %v273 = vld [vmem:[%s2 + $0x20] sm:$0xff]
  %v274 = vld [vmem:[%s2 + $0x28] sm:$0xff]
  %v275 = vld [vmem:[%s2 + $0x30] sm:$0xff]
  %v276 = vld [vmem:[%s2 + $0x38] sm:$0xff]
  %v277 = vld [vmem:[%s2 + $0x40] sm:$0xff]
  %v278 = vld [vmem:[%s2 + $0x48] sm:$0xff]
  %v279 = vld [vmem:[%s2 + $0x50] sm:$0xff]
  %v280 = vld [vmem:[%s2 + $0x58] sm:$0xff]
  %v281 = vld [vmem:[%s2 + $0x60] sm:$0xff]
  %v282 = vld [vmem:[%s2 + $0x68] sm:$0xff]
  %v283 = vld [vmem:[%s2 + $0x70] sm:$0xff]
  %v284 = vld [vmem:[%s2 + $0x78] sm:$0xff]
  %v285 = vld [vmem:[%s2 + $0x80] sm:$0xff]
  %v286 = vld [vmem:[%s2 + $0x88] sm:$0xff]
  %v287 = vld [vmem:[%s2 + $0x90] sm:$0xff]
  %v288 = vld [vmem:[%s2 + $0x98] sm:$0xff]
  %v289 = vld [vmem:[%s2 + $0xa0] sm:$0xff]
  %v290 = vld [vmem:[%s2 + $0xa8] sm:$0xff]
  %v291 = vld [vmem:[%s2 + $0xb0] sm:$0xff]
  %v292 = vld [vmem:[%s2 + $0xb8] sm:$0xff]
  %v293 = vld [vmem:[%s2 + $0xc0] sm:$0xff]
  %v294 = vld [vmem:[%s2 + $0xc8] sm:$0xff]
  %v295 = vld [vmem:[%s2 + $0xd0] sm:$0xff]
  %v296 = vld [vmem:[%s2 + $0xd8] sm:$0xff]
  %v297 = vld [vmem:[%s2 + $0xe0] sm:$0xff]
  %v298 = vld [vmem:[%s2 + $0xe8] sm:$0xff]
  %v299 = vld [vmem:[%s2 + $0xf0] sm:$0xff]
  %v300 = vld [vmem:[%s2 + $0xf8] sm:$0xff]
  %s301 = scalar_lea.vmem %s1, 32
  %v302 = vld [vmem:[%s301] sm:$0xf]
  %v303 = vld [vmem:[%s301 + $0x4] sm:$0xf]
  %v304 = vld [vmem:[%s301 + $0x8] sm:$0xf]
  %v305 = vld [vmem:[%s301 + $0xc] sm:$0xf]
  %v306 = vld [vmem:[%s301 + $0x10] sm:$0xf]
  %v307 = vld [vmem:[%s301 + $0x14] sm:$0xf]
  %v308 = vld [vmem:[%s301 + $0x18] sm:$0xf]
  %v309 = vld [vmem:[%s301 + $0x1c] sm:$0xf]
  %v318 = vunpack.c.l.b16 %v302
  %v319 = vunpack.c.l.b16 %v303
  %v320 = vunpack.c.l.b16 %v304
  %v321 = vunpack.c.l.b16 %v305
  %v322 = vunpack.c.l.b16 %v306
  %v323 = vunpack.c.l.b16 %v307
  %v324 = vunpack.c.l.b16 %v308
  %v325 = vunpack.c.l.b16 %v309
  %v326 = vpack.c.b16 %v319, %v318
  %v327 = vpack.c.b16 %v321, %v320
  %v328 = vpack.c.b16 %v323, %v322
  %v329 = vpack.c.b16 %v325, %v324
  %334 = vmatpush.bf16.msra.mxu0 %v185
  %335 = vmatpush.bf16.msra.mxu0 %v183
  %336 = vmatpush.bf16.msra.mxu0 %v181
  %337 = vmatpush.bf16.msra.mxu0 %v179
  %338 = vmatpush.bf16.msra.mxu0 %v177
  %339 = vmatpush.bf16.msra.mxu0 %v175
  %340 = vmatpush.bf16.msra.mxu0 %v173
  %341 = vmatpush.bf16.msra.mxu0 %v171
  %342 = vmatmul.bf16.gmra.mxu0 %v326
  %v343 = vpop.f32.mrf.mxu0
  %v344 = vadd.f32 0.0, %v343
  %v345 = vpop.f32.mrf.mxu0
  %v346 = vadd.f32 0.0, %v345
  %347 = vmatmul.bf16.gmra.mxu0 %v327
  %v348 = vpop.f32.mrf.mxu0
  %v349 = vadd.f32 0.0, %v348
  %v350 = vpop.f32.mrf.mxu0
  %v351 = vadd.f32 0.0, %v350
  %352 = vmatmul.bf16.gmra.mxu0 %v328
  %v353 = vpop.f32.mrf.mxu0
  %v354 = vadd.f32 0.0, %v353
  %v355 = vpop.f32.mrf.mxu0
  %v356 = vadd.f32 0.0, %v355
  %357 = vmatmul.bf16.gmra.mxu0 %v329
  %v358 = vpop.f32.mrf.mxu0
  %v359 = vadd.f32 0.0, %v358
  %v360 = vpop.f32.mrf.mxu0
  %v361 = vadd.f32 0.0, %v360
  %362 = vdwg.mxu0
  %363 = vmatpush.bf16.msra.mxu0 %v186
  %364 = vmatpush.bf16.msra.mxu0 %v184
  %365 = vmatpush.bf16.msra.mxu0 %v182
  %366 = vmatpush.bf16.msra.mxu0 %v180
  %367 = vmatpush.bf16.msra.mxu0 %v178
  %368 = vmatpush.bf16.msra.mxu0 %v176
  %369 = vmatpush.bf16.msra.mxu0 %v174
  %370 = vmatpush.bf16.msra.mxu0 %v172
  %371 = vmatmul.bf16.gmra.mxu0 %v326
  %v372 = vpop.f32.mrf.mxu0
  %v373 = vadd.f32 0.0, %v372
  %v374 = vpop.f32.mrf.mxu0
  %v375 = vadd.f32 0.0, %v374
  %376 = vmatmul.bf16.gmra.mxu0 %v327
  %v377 = vpop.f32.mrf.mxu0
  %v378 = vadd.f32 0.0, %v377
  %v379 = vpop.f32.mrf.mxu0
  %v380 = vadd.f32 0.0, %v379
  %381 = vmatmul.bf16.gmra.mxu0 %v328
  %v382 = vpop.f32.mrf.mxu0
  %v383 = vadd.f32 0.0, %v382
  %v384 = vpop.f32.mrf.mxu0
  %v385 = vadd.f32 0.0, %v384
  %386 = vmatmul.bf16.gmra.mxu0 %v329
  %v387 = vpop.f32.mrf.mxu0
  %v388 = vadd.f32 0.0, %v387
  %v389 = vpop.f32.mrf.mxu0
  %v390 = vadd.f32 0.0, %v389
  %391 = vdwg.mxu0
  %v392 = vpack.c.bf16 %v346, %v344
  %v393 = vpack.c.bf16 %v375, %v373
  %v394 = vpack.c.bf16 %v351, %v349
  %v395 = vpack.c.bf16 %v380, %v378
  %v396 = vpack.c.bf16 %v356, %v354
  %v397 = vpack.c.bf16 %v385, %v383
  %v398 = vpack.c.bf16 %v361, %v359
  %v399 = vpack.c.bf16 %v390, %v388
  %s400 = scalar_lea.vmem %s2, 256
  %v401 = vld [vmem:[%s400] sm:$0xff]
  %v402 = vld [vmem:[%s400 + $0x8] sm:$0xff]
  %v403 = vld [vmem:[%s400 + $0x10] sm:$0xff]
  %v404 = vld [vmem:[%s400 + $0x18] sm:$0xff]
  %v405 = vld [vmem:[%s400 + $0x20] sm:$0xff]
  %v406 = vld [vmem:[%s400 + $0x28] sm:$0xff]
  %v407 = vld [vmem:[%s400 + $0x30] sm:$0xff]
  %v408 = vld [vmem:[%s400 + $0x38] sm:$0xff]
  %v409 = vld [vmem:[%s400 + $0x40] sm:$0xff]
  %v410 = vld [vmem:[%s400 + $0x48] sm:$0xff]
  %v411 = vld [vmem:[%s400 + $0x50] sm:$0xff]
  %v412 = vld [vmem:[%s400 + $0x58] sm:$0xff]
  %v413 = vld [vmem:[%s400 + $0x60] sm:$0xff]
  %v414 = vld [vmem:[%s400 + $0x68] sm:$0xff]
  %v415 = vld [vmem:[%s400 + $0x70] sm:$0xff]
  %v416 = vld [vmem:[%s400 + $0x78] sm:$0xff]
  %v417 = vld [vmem:[%s400 + $0x80] sm:$0xff]
  %v418 = vld [vmem:[%s400 + $0x88] sm:$0xff]
  %v419 = vld [vmem:[%s400 + $0x90] sm:$0xff]
  %v420 = vld [vmem:[%s400 + $0x98] sm:$0xff]
  %v421 = vld [vmem:[%s400 + $0xa0] sm:$0xff]
  %v422 = vld [vmem:[%s400 + $0xa8] sm:$0xff]
  %v423 = vld [vmem:[%s400 + $0xb0] sm:$0xff]
  %v424 = vld [vmem:[%s400 + $0xb8] sm:$0xff]
  %v425 = vld [vmem:[%s400 + $0xc0] sm:$0xff]
  %v426 = vld [vmem:[%s400 + $0xc8] sm:$0xff]
  %v427 = vld [vmem:[%s400 + $0xd0] sm:$0xff]
  %v428 = vld [vmem:[%s400 + $0xd8] sm:$0xff]
  %v429 = vld [vmem:[%s400 + $0xe0] sm:$0xff]
  %v430 = vld [vmem:[%s400 + $0xe8] sm:$0xff]
  %v431 = vld [vmem:[%s400 + $0xf0] sm:$0xff]
  %v432 = vld [vmem:[%s400 + $0xf8] sm:$0xff]
  %v465 = vunpack.c.l.b16 %v401
  %v466 = vunpack.c.h.b16 %v401
  %v467 = vunpack.c.l.b16 %v402
  %v468 = vunpack.c.h.b16 %v402
  %v469 = vunpack.c.l.b16 %v403
  %v470 = vunpack.c.h.b16 %v403
  %v471 = vunpack.c.l.b16 %v404
  %v472 = vunpack.c.h.b16 %v404
  %v473 = vunpack.c.l.b16 %v405
  %v474 = vunpack.c.h.b16 %v405
  %v475 = vunpack.c.l.b16 %v406
  %v476 = vunpack.c.h.b16 %v406
  %v477 = vunpack.c.l.b16 %v407
  %v478 = vunpack.c.h.b16 %v407
  %v479 = vunpack.c.l.b16 %v408
  %v480 = vunpack.c.h.b16 %v408
  %v481 = vunpack.c.l.b16 %v409
  %v482 = vunpack.c.h.b16 %v409
  %v483 = vunpack.c.l.b16 %v410
  %v484 = vunpack.c.h.b16 %v410
  %v485 = vunpack.c.l.b16 %v411
  %v486 = vunpack.c.h.b16 %v411
  %v487 = vunpack.c.l.b16 %v412
  %v488 = vunpack.c.h.b16 %v412
  %v489 = vunpack.c.l.b16 %v413
  %v490 = vunpack.c.h.b16 %v413
  %v491 = vunpack.c.l.b16 %v414
  %v492 = vunpack.c.h.b16 %v414
  %v493 = vunpack.c.l.b16 %v415
  %v494 = vunpack.c.h.b16 %v415
  %v495 = vunpack.c.l.b16 %v416
  %v496 = vunpack.c.h.b16 %v416
  %v497 = vunpack.c.l.b16 %v417
  %v498 = vunpack.c.h.b16 %v417
  %v499 = vunpack.c.l.b16 %v418
  %v500 = vunpack.c.h.b16 %v418
  %v501 = vunpack.c.l.b16 %v419
  %v502 = vunpack.c.h.b16 %v419
  %v503 = vunpack.c.l.b16 %v420
  %v504 = vunpack.c.h.b16 %v420
  %v505 = vunpack.c.l.b16 %v421
  %v506 = vunpack.c.h.b16 %v421
  %v507 = vunpack.c.l.b16 %v422
  %v508 = vunpack.c.h.b16 %v422
  %v509 = vunpack.c.l.b16 %v423
  %v510 = vunpack.c.h.b16 %v423
  %v511 = vunpack.c.l.b16 %v424
  %v512 = vunpack.c.h.b16 %v424
  %v513 = vunpack.c.l.b16 %v425
  %v514 = vunpack.c.h.b16 %v425
  %v515 = vunpack.c.l.b16 %v426
  %v516 = vunpack.c.h.b16 %v426
  %v517 = vunpack.c.l.b16 %v427
  %v518 = vunpack.c.h.b16 %v427
  %v519 = vunpack.c.l.b16 %v428
  %v520 = vunpack.c.h.b16 %v428
  %v521 = vunpack.c.l.b16 %v429
  %v522 = vunpack.c.h.b16 %v429
  %v523 = vunpack.c.l.b16 %v430
  %v524 = vunpack.c.h.b16 %v430
  %v525 = vunpack.c.l.b16 %v431
  %v526 = vunpack.c.h.b16 %v431
  %v527 = vunpack.c.l.b16 %v432
  %v528 = vunpack.c.h.b16 %v432
  %v529 = vpack.c.b16 %v467, %v465
  %v530 = vpack.c.b16 %v468, %v466
  %v531 = vpack.c.b16 %v471, %v469
  %v532 = vpack.c.b16 %v472, %v470
  %v533 = vpack.c.b16 %v475, %v473
  %v534 = vpack.c.b16 %v476, %v474
  %v535 = vpack.c.b16 %v479, %v477
  %v536 = vpack.c.b16 %v480, %v478
  %v537 = vpack.c.b16 %v483, %v481
  %v538 = vpack.c.b16 %v484, %v482
  %v539 = vpack.c.b16 %v487, %v485
  %v540 = vpack.c.b16 %v488, %v486
  %v541 = vpack.c.b16 %v491, %v489
  %v542 = vpack.c.b16 %v492, %v490
  %v543 = vpack.c.b16 %v495, %v493
  %v544 = vpack.c.b16 %v496, %v494
  %v545 = vpack.c.b16 %v499, %v497
  %v546 = vpack.c.b16 %v500, %v498
  %v547 = vpack.c.b16 %v503, %v501
  %v548 = vpack.c.b16 %v504, %v502
  %v549 = vpack.c.b16 %v507, %v505
  %v550 = vpack.c.b16 %v508, %v506
  %v551 = vpack.c.b16 %v511, %v509
  %v552 = vpack.c.b16 %v512, %v510
  %v553 = vpack.c.b16 %v515, %v513
  %v554 = vpack.c.b16 %v516, %v514
  %v555 = vpack.c.b16 %v519, %v517
  %v556 = vpack.c.b16 %v520, %v518
  %v557 = vpack.c.b16 %v523, %v521
  %v558 = vpack.c.b16 %v524, %v522
  %v559 = vpack.c.b16 %v527, %v525
  %v560 = vpack.c.b16 %v528, %v526
  %593 = vmatpush.bf16.msra.mxu0 %v543
  %594 = vmatpush.bf16.msra.mxu0 %v541
  %595 = vmatpush.bf16.msra.mxu0 %v539
  %596 = vmatpush.bf16.msra.mxu0 %v537
  %597 = vmatpush.bf16.msra.mxu0 %v535
  %598 = vmatpush.bf16.msra.mxu0 %v533
  %599 = vmatpush.bf16.msra.mxu0 %v531
  %600 = vmatpush.bf16.msra.mxu0 %v529
  %601 = vmatmul.bf16.gmra.mxu0 %v392
  %v602 = vpop.f32.mrf.mxu0
  %v603 = vadd.f32 0.0, %v602
  %v604 = vpop.f32.mrf.mxu0
  %v605 = vadd.f32 0.0, %v604
  %606 = vmatmul.bf16.gmra.mxu0 %v394
  %v607 = vpop.f32.mrf.mxu0
  %v608 = vadd.f32 0.0, %v607
  %v609 = vpop.f32.mrf.mxu0
  %v610 = vadd.f32 0.0, %v609
  %611 = vmatmul.bf16.gmra.mxu0 %v396
  %v612 = vpop.f32.mrf.mxu0
  %v613 = vadd.f32 0.0, %v612
  %v614 = vpop.f32.mrf.mxu0
  %v615 = vadd.f32 0.0, %v614
  %616 = vmatmul.bf16.gmra.mxu0 %v398
  %v617 = vpop.f32.mrf.mxu0
  %v618 = vadd.f32 0.0, %v617
  %v619 = vpop.f32.mrf.mxu0
  %v620 = vadd.f32 0.0, %v619
  %621 = vdwg.mxu0
  %622 = vmatpush.bf16.msra.mxu0 %v559
  %623 = vmatpush.bf16.msra.mxu0 %v557
  %624 = vmatpush.bf16.msra.mxu0 %v555
  %625 = vmatpush.bf16.msra.mxu0 %v553
  %626 = vmatpush.bf16.msra.mxu0 %v551
  %627 = vmatpush.bf16.msra.mxu0 %v549
  %628 = vmatpush.bf16.msra.mxu0 %v547
  %629 = vmatpush.bf16.msra.mxu0 %v545
  %630 = vmatmul.bf16.gmra.mxu0 %v393
  %v631 = vpop.f32.mrf.mxu0
  %v632 = vadd.f32 %v603, %v631
  %v633 = vpop.f32.mrf.mxu0
  %v634 = vadd.f32 %v605, %v633
  %635 = vmatmul.bf16.gmra.mxu0 %v395
  %v636 = vpop.f32.mrf.mxu0
  %v637 = vadd.f32 %v608, %v636
  %v638 = vpop.f32.mrf.mxu0
  %v639 = vadd.f32 %v610, %v638
  %640 = vmatmul.bf16.gmra.mxu0 %v397
  %v641 = vpop.f32.mrf.mxu0
  %v642 = vadd.f32 %v613, %v641
  %v643 = vpop.f32.mrf.mxu0
  %v644 = vadd.f32 %v615, %v643
  %645 = vmatmul.bf16.gmra.mxu0 %v399
  %v646 = vpop.f32.mrf.mxu0
  %v647 = vadd.f32 %v618, %v646
  %v648 = vpop.f32.mrf.mxu0
  %v649 = vadd.f32 %v620, %v648
  %650 = vdwg.mxu0
  %651 = vmatpush.bf16.msra.mxu0 %v544
  %652 = vmatpush.bf16.msra.mxu0 %v542
  %653 = vmatpush.bf16.msra.mxu0 %v540
  %654 = vmatpush.bf16.msra.mxu0 %v538
  %655 = vmatpush.bf16.msra.mxu0 %v536
  %656 = vmatpush.bf16.msra.mxu0 %v534
  %657 = vmatpush.bf16.msra.mxu0 %v532
  %658 = vmatpush.bf16.msra.mxu0 %v530
  %659 = vmatmul.bf16.gmra.mxu0 %v392
  %v660 = vpop.f32.mrf.mxu0
  %v661 = vadd.f32 0.0, %v660
  %v662 = vpop.f32.mrf.mxu0
  %v663 = vadd.f32 0.0, %v662
  %664 = vmatmul.bf16.gmra.mxu0 %v394
  %v665 = vpop.f32.mrf.mxu0
  %v666 = vadd.f32 0.0, %v665
  %v667 = vpop.f32.mrf.mxu0
  %v668 = vadd.f32 0.0, %v667
  %669 = vmatmul.bf16.gmra.mxu0 %v396
  %v670 = vpop.f32.mrf.mxu0
  %v671 = vadd.f32 0.0, %v670
  %v672 = vpop.f32.mrf.mxu0
  %v673 = vadd.f32 0.0, %v672
  %674 = vmatmul.bf16.gmra.mxu0 %v398
  %v675 = vpop.f32.mrf.mxu0
  %v676 = vadd.f32 0.0, %v675
  %v677 = vpop.f32.mrf.mxu0
  %v678 = vadd.f32 0.0, %v677
  %679 = vdwg.mxu0
  %680 = vmatpush.bf16.msra.mxu0 %v560
  %681 = vmatpush.bf16.msra.mxu0 %v558
  %682 = vmatpush.bf16.msra.mxu0 %v556
  %683 = vmatpush.bf16.msra.mxu0 %v554
  %684 = vmatpush.bf16.msra.mxu0 %v552
  %685 = vmatpush.bf16.msra.mxu0 %v550
  %686 = vmatpush.bf16.msra.mxu0 %v548
  %687 = vmatpush.bf16.msra.mxu0 %v546
  %688 = vmatmul.bf16.gmra.mxu0 %v393
  %v689 = vpop.f32.mrf.mxu0
  %v690 = vadd.f32 %v661, %v689
  %v691 = vpop.f32.mrf.mxu0
  %v692 = vadd.f32 %v663, %v691
  %693 = vmatmul.bf16.gmra.mxu0 %v395
  %v694 = vpop.f32.mrf.mxu0
  %v695 = vadd.f32 %v666, %v694
  %v696 = vpop.f32.mrf.mxu0
  %v697 = vadd.f32 %v668, %v696
  %698 = vmatmul.bf16.gmra.mxu0 %v397
  %v699 = vpop.f32.mrf.mxu0
  %v700 = vadd.f32 %v671, %v699
  %v701 = vpop.f32.mrf.mxu0
  %v702 = vadd.f32 %v673, %v701
  %703 = vmatmul.bf16.gmra.mxu0 %v399
  %v704 = vpop.f32.mrf.mxu0
  %v705 = vadd.f32 %v676, %v704
  %v706 = vpop.f32.mrf.mxu0
  %v707 = vadd.f32 %v678, %v706
  %708 = vdwg.mxu0
  %v741 = vunpack.c.l.b16 %v269
  %v742 = vunpack.c.h.b16 %v269
  %v743 = vunpack.c.l.b16 %v270
  %v744 = vunpack.c.h.b16 %v270
  %v745 = vunpack.c.l.b16 %v271
  %v746 = vunpack.c.h.b16 %v271
  %v747 = vunpack.c.l.b16 %v272
  %v748 = vunpack.c.h.b16 %v272
  %v749 = vunpack.c.l.b16 %v273
  %v750 = vunpack.c.h.b16 %v273
  %v751 = vunpack.c.l.b16 %v274
  %v752 = vunpack.c.h.b16 %v274
  %v753 = vunpack.c.l.b16 %v275
  %v754 = vunpack.c.h.b16 %v275
  %v755 = vunpack.c.l.b16 %v276
  %v756 = vunpack.c.h.b16 %v276
  %v757 = vunpack.c.l.b16 %v277
  %v758 = vunpack.c.h.b16 %v277
  %v759 = vunpack.c.l.b16 %v278
  %v760 = vunpack.c.h.b16 %v278
  %v761 = vunpack.c.l.b16 %v279
  %v762 = vunpack.c.h.b16 %v279
  %v763 = vunpack.c.l.b16 %v280
  %v764 = vunpack.c.h.b16 %v280
  %v765 = vunpack.c.l.b16 %v281
  %v766 = vunpack.c.h.b16 %v281
  %v767 = vunpack.c.l.b16 %v282
  %v768 = vunpack.c.h.b16 %v282
  %v769 = vunpack.c.l.b16 %v283
  %v770 = vunpack.c.h.b16 %v283
  %v771 = vunpack.c.l.b16 %v284
  %v772 = vunpack.c.h.b16 %v284
  %v773 = vunpack.c.l.b16 %v285
  %v774 = vunpack.c.h.b16 %v285
  %v775 = vunpack.c.l.b16 %v286
  %v776 = vunpack.c.h.b16 %v286
  %v777 = vunpack.c.l.b16 %v287
  %v778 = vunpack.c.h.b16 %v287
  %v779 = vunpack.c.l.b16 %v288
  %v780 = vunpack.c.h.b16 %v288
  %v781 = vunpack.c.l.b16 %v289
  %v782 = vunpack.c.h.b16 %v289
  %v783 = vunpack.c.l.b16 %v290
  %v784 = vunpack.c.h.b16 %v290
  %v785 = vunpack.c.l.b16 %v291
  %v786 = vunpack.c.h.b16 %v291
  %v787 = vunpack.c.l.b16 %v292
  %v788 = vunpack.c.h.b16 %v292
  %v789 = vunpack.c.l.b16 %v293
  %v790 = vunpack.c.h.b16 %v293
  %v791 = vunpack.c.l.b16 %v294
  %v792 = vunpack.c.h.b16 %v294
  %v793 = vunpack.c.l.b16 %v295
  %v794 = vunpack.c.h.b16 %v295
  %v795 = vunpack.c.l.b16 %v296
  %v796 = vunpack.c.h.b16 %v296
  %v797 = vunpack.c.l.b16 %v297
  %v798 = vunpack.c.h.b16 %v297
  %v799 = vunpack.c.l.b16 %v298
  %v800 = vunpack.c.h.b16 %v298
  %v801 = vunpack.c.l.b16 %v299
  %v802 = vunpack.c.h.b16 %v299
  %v803 = vunpack.c.l.b16 %v300
  %v804 = vunpack.c.h.b16 %v300
  %v805 = vpack.c.b16 %v743, %v741
  %v806 = vpack.c.b16 %v744, %v742
  %v807 = vpack.c.b16 %v747, %v745
  %v808 = vpack.c.b16 %v748, %v746
  %v809 = vpack.c.b16 %v751, %v749
  %v810 = vpack.c.b16 %v752, %v750
  %v811 = vpack.c.b16 %v755, %v753
  %v812 = vpack.c.b16 %v756, %v754
  %v813 = vpack.c.b16 %v759, %v757
  %v814 = vpack.c.b16 %v760, %v758
  %v815 = vpack.c.b16 %v763, %v761
  %v816 = vpack.c.b16 %v764, %v762
  %v817 = vpack.c.b16 %v767, %v765
  %v818 = vpack.c.b16 %v768, %v766
  %v819 = vpack.c.b16 %v771, %v769
  %v820 = vpack.c.b16 %v772, %v770
  %v821 = vpack.c.b16 %v775, %v773
  %v822 = vpack.c.b16 %v776, %v774
  %v823 = vpack.c.b16 %v779, %v777
  %v824 = vpack.c.b16 %v780, %v778
  %v825 = vpack.c.b16 %v783, %v781
  %v826 = vpack.c.b16 %v784, %v782
  %v827 = vpack.c.b16 %v787, %v785
  %v828 = vpack.c.b16 %v788, %v786
  %v829 = vpack.c.b16 %v791, %v789
  %v830 = vpack.c.b16 %v792, %v790
  %v831 = vpack.c.b16 %v795, %v793
  %v832 = vpack.c.b16 %v796, %v794
  %v833 = vpack.c.b16 %v799, %v797
  %v834 = vpack.c.b16 %v800, %v798
  %v835 = vpack.c.b16 %v803, %v801
  %v836 = vpack.c.b16 %v804, %v802
  %869 = vmatpush.bf16.msra.mxu0 %v819
  %870 = vmatpush.bf16.msra.mxu0 %v817
  %871 = vmatpush.bf16.msra.mxu0 %v815
  %872 = vmatpush.bf16.msra.mxu0 %v813
  %873 = vmatpush.bf16.msra.mxu0 %v811
  %874 = vmatpush.bf16.msra.mxu0 %v809
  %875 = vmatpush.bf16.msra.mxu0 %v807
  %876 = vmatpush.bf16.msra.mxu0 %v805
  %877 = vmatmul.bf16.gmra.mxu0 %v261
  %v878 = vpop.f32.mrf.mxu0
  %v879 = vadd.f32 %v632, %v878
  %v880 = vpop.f32.mrf.mxu0
  %v881 = vadd.f32 %v634, %v880
  %882 = vmatmul.bf16.gmra.mxu0 %v263
  %v883 = vpop.f32.mrf.mxu0
  %v884 = vadd.f32 %v637, %v883
  %v885 = vpop.f32.mrf.mxu0
  %v886 = vadd.f32 %v639, %v885
  %887 = vmatmul.bf16.gmra.mxu0 %v265
  %v888 = vpop.f32.mrf.mxu0
  %v889 = vadd.f32 %v642, %v888
  %v890 = vpop.f32.mrf.mxu0
  %v891 = vadd.f32 %v644, %v890
  %892 = vmatmul.bf16.gmra.mxu0 %v267
  %v893 = vpop.f32.mrf.mxu0
  %v894 = vadd.f32 %v647, %v893
  %v895 = vpop.f32.mrf.mxu0
  %v896 = vadd.f32 %v649, %v895
  %897 = vdwg.mxu0
  %898 = vmatpush.bf16.msra.mxu0 %v835
  %899 = vmatpush.bf16.msra.mxu0 %v833
  %900 = vmatpush.bf16.msra.mxu0 %v831
  %901 = vmatpush.bf16.msra.mxu0 %v829
  %902 = vmatpush.bf16.msra.mxu0 %v827
  %903 = vmatpush.bf16.msra.mxu0 %v825
  %904 = vmatpush.bf16.msra.mxu0 %v823
  %905 = vmatpush.bf16.msra.mxu0 %v821
  %906 = vmatmul.bf16.gmra.mxu0 %v262
  %v907 = vpop.f32.mrf.mxu0
  %v908 = vadd.f32 %v879, %v907
  %v909 = vpop.f32.mrf.mxu0
  %v910 = vadd.f32 %v881, %v909
  %911 = vmatmul.bf16.gmra.mxu0 %v264
  %v912 = vpop.f32.mrf.mxu0
  %v913 = vadd.f32 %v884, %v912
  %v914 = vpop.f32.mrf.mxu0
  %v915 = vadd.f32 %v886, %v914
  %916 = vmatmul.bf16.gmra.mxu0 %v266
  %v917 = vpop.f32.mrf.mxu0
  %v918 = vadd.f32 %v889, %v917
  %v919 = vpop.f32.mrf.mxu0
  %v920 = vadd.f32 %v891, %v919
  %921 = vmatmul.bf16.gmra.mxu0 %v268
  %v922 = vpop.f32.mrf.mxu0
  %v923 = vadd.f32 %v894, %v922
  %v924 = vpop.f32.mrf.mxu0
  %v925 = vadd.f32 %v896, %v924
  %926 = vdwg.mxu0
  %927 = vmatpush.bf16.msra.mxu0 %v820
  %928 = vmatpush.bf16.msra.mxu0 %v818
  %929 = vmatpush.bf16.msra.mxu0 %v816
  %930 = vmatpush.bf16.msra.mxu0 %v814
  %931 = vmatpush.bf16.msra.mxu0 %v812
  %932 = vmatpush.bf16.msra.mxu0 %v810
  %933 = vmatpush.bf16.msra.mxu0 %v808
  %934 = vmatpush.bf16.msra.mxu0 %v806
  %935 = vmatmul.bf16.gmra.mxu0 %v261
  %v936 = vpop.f32.mrf.mxu0
  %v937 = vadd.f32 %v690, %v936
  %v938 = vpop.f32.mrf.mxu0
  %v939 = vadd.f32 %v692, %v938
  %940 = vmatmul.bf16.gmra.mxu0 %v263
  %v941 = vpop.f32.mrf.mxu0
  %v942 = vadd.f32 %v695, %v941
  %v943 = vpop.f32.mrf.mxu0
  %v944 = vadd.f32 %v697, %v943
  %945 = vmatmul.bf16.gmra.mxu0 %v265
  %v946 = vpop.f32.mrf.mxu0
  %v947 = vadd.f32 %v700, %v946
  %v948 = vpop.f32.mrf.mxu0
  %v949 = vadd.f32 %v702, %v948
  %950 = vmatmul.bf16.gmra.mxu0 %v267
  %v951 = vpop.f32.mrf.mxu0
  %v952 = vadd.f32 %v705, %v951
  %v953 = vpop.f32.mrf.mxu0
  %v954 = vadd.f32 %v707, %v953
  %955 = vdwg.mxu0
  %956 = vmatpush.bf16.msra.mxu0 %v836
  %957 = vmatpush.bf16.msra.mxu0 %v834
  %958 = vmatpush.bf16.msra.mxu0 %v832
  %959 = vmatpush.bf16.msra.mxu0 %v830
  %960 = vmatpush.bf16.msra.mxu0 %v828
  %961 = vmatpush.bf16.msra.mxu0 %v826
  %962 = vmatpush.bf16.msra.mxu0 %v824
  %963 = vmatpush.bf16.msra.mxu0 %v822
  %964 = vmatmul.bf16.gmra.mxu0 %v262
  %v965 = vpop.f32.mrf.mxu0
  %v966 = vadd.f32 %v937, %v965
  %v967 = vpop.f32.mrf.mxu0
  %v968 = vadd.f32 %v939, %v967
  %969 = vmatmul.bf16.gmra.mxu0 %v264
  %v970 = vpop.f32.mrf.mxu0
  %v971 = vadd.f32 %v942, %v970
  %v972 = vpop.f32.mrf.mxu0
  %v973 = vadd.f32 %v944, %v972
  %974 = vmatmul.bf16.gmra.mxu0 %v266
  %v975 = vpop.f32.mrf.mxu0
  %v976 = vadd.f32 %v947, %v975
  %v977 = vpop.f32.mrf.mxu0
  %v978 = vadd.f32 %v949, %v977
  %979 = vmatmul.bf16.gmra.mxu0 %v268
  %v980 = vpop.f32.mrf.mxu0
  %v981 = vadd.f32 %v952, %v980
  %v982 = vpop.f32.mrf.mxu0
  %v983 = vadd.f32 %v954, %v982
  %984 = vdwg.mxu0
  %s985 = scalar_lea.vmem %s1, 64
  %v986 = vld [vmem:[%s985] sm:$0xf]
  %v987 = vld [vmem:[%s985 + $0x4] sm:$0xf]
  %v988 = vld [vmem:[%s985 + $0x8] sm:$0xf]
  %v989 = vld [vmem:[%s985 + $0xc] sm:$0xf]
  %v990 = vld [vmem:[%s985 + $0x10] sm:$0xf]
  %v991 = vld [vmem:[%s985 + $0x14] sm:$0xf]
  %v992 = vld [vmem:[%s985 + $0x18] sm:$0xf]
  %v993 = vld [vmem:[%s985 + $0x1c] sm:$0xf]
  %v1002 = vunpack.c.l.b16 %v986
  %v1003 = vunpack.c.l.b16 %v987
  %v1004 = vunpack.c.l.b16 %v988
  %v1005 = vunpack.c.l.b16 %v989
  %v1006 = vunpack.c.l.b16 %v990
  %v1007 = vunpack.c.l.b16 %v991
  %v1008 = vunpack.c.l.b16 %v992
  %v1009 = vunpack.c.l.b16 %v993
  %v1010 = vpack.c.b16 %v1003, %v1002
  %v1011 = vpack.c.b16 %v1005, %v1004
  %v1012 = vpack.c.b16 %v1007, %v1006
  %v1013 = vpack.c.b16 %v1009, %v1008
  %1018 = vmatpush.bf16.msra.mxu0 %v185
  %1019 = vmatpush.bf16.msra.mxu0 %v183
  %1020 = vmatpush.bf16.msra.mxu0 %v181
  %1021 = vmatpush.bf16.msra.mxu0 %v179
  %1022 = vmatpush.bf16.msra.mxu0 %v177
  %1023 = vmatpush.bf16.msra.mxu0 %v175
  %1024 = vmatpush.bf16.msra.mxu0 %v173
  %1025 = vmatpush.bf16.msra.mxu0 %v171
  %1026 = vmatmul.bf16.gmra.mxu0 %v1010
  %v1027 = vpop.f32.mrf.mxu0
  %v1028 = vadd.f32 0.0, %v1027
  %v1029 = vpop.f32.mrf.mxu0
  %v1030 = vadd.f32 0.0, %v1029
  %1031 = vmatmul.bf16.gmra.mxu0 %v1011
  %v1032 = vpop.f32.mrf.mxu0
  %v1033 = vadd.f32 0.0, %v1032
  %v1034 = vpop.f32.mrf.mxu0
  %v1035 = vadd.f32 0.0, %v1034
  %1036 = vmatmul.bf16.gmra.mxu0 %v1012
  %v1037 = vpop.f32.mrf.mxu0
  %v1038 = vadd.f32 0.0, %v1037
  %v1039 = vpop.f32.mrf.mxu0
  %v1040 = vadd.f32 0.0, %v1039
  %1041 = vmatmul.bf16.gmra.mxu0 %v1013
  %v1042 = vpop.f32.mrf.mxu0
  %v1043 = vadd.f32 0.0, %v1042
  %v1044 = vpop.f32.mrf.mxu0
  %v1045 = vadd.f32 0.0, %v1044
  %1046 = vdwg.mxu0
  %1047 = vmatpush.bf16.msra.mxu0 %v186
  %1048 = vmatpush.bf16.msra.mxu0 %v184
  %1049 = vmatpush.bf16.msra.mxu0 %v182
  %1050 = vmatpush.bf16.msra.mxu0 %v180
  %1051 = vmatpush.bf16.msra.mxu0 %v178
  %1052 = vmatpush.bf16.msra.mxu0 %v176
  %1053 = vmatpush.bf16.msra.mxu0 %v174
  %1054 = vmatpush.bf16.msra.mxu0 %v172
  %1055 = vmatmul.bf16.gmra.mxu0 %v1010
  %v1056 = vpop.f32.mrf.mxu0
  %v1057 = vadd.f32 0.0, %v1056
  %v1058 = vpop.f32.mrf.mxu0
  %v1059 = vadd.f32 0.0, %v1058
  %1060 = vmatmul.bf16.gmra.mxu0 %v1011
  %v1061 = vpop.f32.mrf.mxu0
  %v1062 = vadd.f32 0.0, %v1061
  %v1063 = vpop.f32.mrf.mxu0
  %v1064 = vadd.f32 0.0, %v1063
  %1065 = vmatmul.bf16.gmra.mxu0 %v1012
  %v1066 = vpop.f32.mrf.mxu0
  %v1067 = vadd.f32 0.0, %v1066
  %v1068 = vpop.f32.mrf.mxu0
  %v1069 = vadd.f32 0.0, %v1068
  %1070 = vmatmul.bf16.gmra.mxu0 %v1013
  %v1071 = vpop.f32.mrf.mxu0
  %v1072 = vadd.f32 0.0, %v1071
  %v1073 = vpop.f32.mrf.mxu0
  %v1074 = vadd.f32 0.0, %v1073
  %1075 = vdwg.mxu0
  %v1076 = vpack.c.bf16 %v1030, %v1028
  %v1077 = vpack.c.bf16 %v1059, %v1057
  %v1078 = vpack.c.bf16 %v1035, %v1033
  %v1079 = vpack.c.bf16 %v1064, %v1062
  %v1080 = vpack.c.bf16 %v1040, %v1038
  %v1081 = vpack.c.bf16 %v1069, %v1067
  %v1082 = vpack.c.bf16 %v1045, %v1043
  %v1083 = vpack.c.bf16 %v1074, %v1072
  %s1084 = scalar_lea.vmem %s2, 512
  %v1085 = vld [vmem:[%s1084] sm:$0xff]
  %v1086 = vld [vmem:[%s1084 + $0x8] sm:$0xff]
  %v1087 = vld [vmem:[%s1084 + $0x10] sm:$0xff]
  %v1088 = vld [vmem:[%s1084 + $0x18] sm:$0xff]
  %v1089 = vld [vmem:[%s1084 + $0x20] sm:$0xff]
  %v1090 = vld [vmem:[%s1084 + $0x28] sm:$0xff]
  %v1091 = vld [vmem:[%s1084 + $0x30] sm:$0xff]
  %v1092 = vld [vmem:[%s1084 + $0x38] sm:$0xff]
  %v1093 = vld [vmem:[%s1084 + $0x40] sm:$0xff]
  %v1094 = vld [vmem:[%s1084 + $0x48] sm:$0xff]
  %v1095 = vld [vmem:[%s1084 + $0x50] sm:$0xff]
  %v1096 = vld [vmem:[%s1084 + $0x58] sm:$0xff]
  %v1097 = vld [vmem:[%s1084 + $0x60] sm:$0xff]
  %v1098 = vld [vmem:[%s1084 + $0x68] sm:$0xff]
  %v1099 = vld [vmem:[%s1084 + $0x70] sm:$0xff]
  %v1100 = vld [vmem:[%s1084 + $0x78] sm:$0xff]
  %v1101 = vld [vmem:[%s1084 + $0x80] sm:$0xff]
  %v1102 = vld [vmem:[%s1084 + $0x88] sm:$0xff]
  %v1103 = vld [vmem:[%s1084 + $0x90] sm:$0xff]
  %v1104 = vld [vmem:[%s1084 + $0x98] sm:$0xff]
  %v1105 = vld [vmem:[%s1084 + $0xa0] sm:$0xff]
  %v1106 = vld [vmem:[%s1084 + $0xa8] sm:$0xff]
  %v1107 = vld [vmem:[%s1084 + $0xb0] sm:$0xff]
  %v1108 = vld [vmem:[%s1084 + $0xb8] sm:$0xff]
  %v1109 = vld [vmem:[%s1084 + $0xc0] sm:$0xff]
  %v1110 = vld [vmem:[%s1084 + $0xc8] sm:$0xff]
  %v1111 = vld [vmem:[%s1084 + $0xd0] sm:$0xff]
  %v1112 = vld [vmem:[%s1084 + $0xd8] sm:$0xff]
  %v1113 = vld [vmem:[%s1084 + $0xe0] sm:$0xff]
  %v1114 = vld [vmem:[%s1084 + $0xe8] sm:$0xff]
  %v1115 = vld [vmem:[%s1084 + $0xf0] sm:$0xff]
  %v1116 = vld [vmem:[%s1084 + $0xf8] sm:$0xff]
  %v1149 = vunpack.c.l.b16 %v1085
  %v1150 = vunpack.c.h.b16 %v1085
  %v1151 = vunpack.c.l.b16 %v1086
  %v1152 = vunpack.c.h.b16 %v1086
  %v1153 = vunpack.c.l.b16 %v1087
  %v1154 = vunpack.c.h.b16 %v1087
  %v1155 = vunpack.c.l.b16 %v1088
  %v1156 = vunpack.c.h.b16 %v1088
  %v1157 = vunpack.c.l.b16 %v1089
  %v1158 = vunpack.c.h.b16 %v1089
  %v1159 = vunpack.c.l.b16 %v1090
  %v1160 = vunpack.c.h.b16 %v1090
  %v1161 = vunpack.c.l.b16 %v1091
  %v1162 = vunpack.c.h.b16 %v1091
  %v1163 = vunpack.c.l.b16 %v1092
  %v1164 = vunpack.c.h.b16 %v1092
  %v1165 = vunpack.c.l.b16 %v1093
  %v1166 = vunpack.c.h.b16 %v1093
  %v1167 = vunpack.c.l.b16 %v1094
  %v1168 = vunpack.c.h.b16 %v1094
  %v1169 = vunpack.c.l.b16 %v1095
  %v1170 = vunpack.c.h.b16 %v1095
  %v1171 = vunpack.c.l.b16 %v1096
  %v1172 = vunpack.c.h.b16 %v1096
  %v1173 = vunpack.c.l.b16 %v1097
  %v1174 = vunpack.c.h.b16 %v1097
  %v1175 = vunpack.c.l.b16 %v1098
  %v1176 = vunpack.c.h.b16 %v1098
  %v1177 = vunpack.c.l.b16 %v1099
  %v1178 = vunpack.c.h.b16 %v1099
  %v1179 = vunpack.c.l.b16 %v1100
  %v1180 = vunpack.c.h.b16 %v1100
  %v1181 = vunpack.c.l.b16 %v1101
  %v1182 = vunpack.c.h.b16 %v1101
  %v1183 = vunpack.c.l.b16 %v1102
  %v1184 = vunpack.c.h.b16 %v1102
  %v1185 = vunpack.c.l.b16 %v1103
  %v1186 = vunpack.c.h.b16 %v1103
  %v1187 = vunpack.c.l.b16 %v1104
  %v1188 = vunpack.c.h.b16 %v1104
  %v1189 = vunpack.c.l.b16 %v1105
  %v1190 = vunpack.c.h.b16 %v1105
  %v1191 = vunpack.c.l.b16 %v1106
  %v1192 = vunpack.c.h.b16 %v1106
  %v1193 = vunpack.c.l.b16 %v1107
  %v1194 = vunpack.c.h.b16 %v1107
  %v1195 = vunpack.c.l.b16 %v1108
  %v1196 = vunpack.c.h.b16 %v1108
  %v1197 = vunpack.c.l.b16 %v1109
  %v1198 = vunpack.c.h.b16 %v1109
  %v1199 = vunpack.c.l.b16 %v1110
  %v1200 = vunpack.c.h.b16 %v1110
  %v1201 = vunpack.c.l.b16 %v1111
  %v1202 = vunpack.c.h.b16 %v1111
  %v1203 = vunpack.c.l.b16 %v1112
  %v1204 = vunpack.c.h.b16 %v1112
  %v1205 = vunpack.c.l.b16 %v1113
  %v1206 = vunpack.c.h.b16 %v1113
  %v1207 = vunpack.c.l.b16 %v1114
  %v1208 = vunpack.c.h.b16 %v1114
  %v1209 = vunpack.c.l.b16 %v1115
  %v1210 = vunpack.c.h.b16 %v1115
  %v1211 = vunpack.c.l.b16 %v1116
  %v1212 = vunpack.c.h.b16 %v1116
  %v1213 = vpack.c.b16 %v1151, %v1149
  %v1214 = vpack.c.b16 %v1152, %v1150
  %v1215 = vpack.c.b16 %v1155, %v1153
  %v1216 = vpack.c.b16 %v1156, %v1154
  %v1217 = vpack.c.b16 %v1159, %v1157
  %v1218 = vpack.c.b16 %v1160, %v1158
  %v1219 = vpack.c.b16 %v1163, %v1161
  %v1220 = vpack.c.b16 %v1164, %v1162
  %v1221 = vpack.c.b16 %v1167, %v1165
  %v1222 = vpack.c.b16 %v1168, %v1166
  %v1223 = vpack.c.b16 %v1171, %v1169
  %v1224 = vpack.c.b16 %v1172, %v1170
  %v1225 = vpack.c.b16 %v1175, %v1173
  %v1226 = vpack.c.b16 %v1176, %v1174
  %v1227 = vpack.c.b16 %v1179, %v1177
  %v1228 = vpack.c.b16 %v1180, %v1178
  %v1229 = vpack.c.b16 %v1183, %v1181
  %v1230 = vpack.c.b16 %v1184, %v1182
  %v1231 = vpack.c.b16 %v1187, %v1185
  %v1232 = vpack.c.b16 %v1188, %v1186
  %v1233 = vpack.c.b16 %v1191, %v1189
  %v1234 = vpack.c.b16 %v1192, %v1190
  %v1235 = vpack.c.b16 %v1195, %v1193
  %v1236 = vpack.c.b16 %v1196, %v1194
  %v1237 = vpack.c.b16 %v1199, %v1197
  %v1238 = vpack.c.b16 %v1200, %v1198
  %v1239 = vpack.c.b16 %v1203, %v1201
  %v1240 = vpack.c.b16 %v1204, %v1202
  %v1241 = vpack.c.b16 %v1207, %v1205
  %v1242 = vpack.c.b16 %v1208, %v1206
  %v1243 = vpack.c.b16 %v1211, %v1209
  %v1244 = vpack.c.b16 %v1212, %v1210
  %1277 = vmatpush.bf16.msra.mxu0 %v1227
  %1278 = vmatpush.bf16.msra.mxu0 %v1225
  %1279 = vmatpush.bf16.msra.mxu0 %v1223
  %1280 = vmatpush.bf16.msra.mxu0 %v1221
  %1281 = vmatpush.bf16.msra.mxu0 %v1219
  %1282 = vmatpush.bf16.msra.mxu0 %v1217
  %1283 = vmatpush.bf16.msra.mxu0 %v1215
  %1284 = vmatpush.bf16.msra.mxu0 %v1213
  %1285 = vmatmul.bf16.gmra.mxu0 %v1076
  %v1286 = vpop.f32.mrf.mxu0
  %v1287 = vadd.f32 0.0, %v1286
  %v1288 = vpop.f32.mrf.mxu0
  %v1289 = vadd.f32 0.0, %v1288
  %1290 = vmatmul.bf16.gmra.mxu0 %v1078
  %v1291 = vpop.f32.mrf.mxu0
  %v1292 = vadd.f32 0.0, %v1291
  %v1293 = vpop.f32.mrf.mxu0
  %v1294 = vadd.f32 0.0, %v1293
  %1295 = vmatmul.bf16.gmra.mxu0 %v1080
  %v1296 = vpop.f32.mrf.mxu0
  %v1297 = vadd.f32 0.0, %v1296
  %v1298 = vpop.f32.mrf.mxu0
  %v1299 = vadd.f32 0.0, %v1298
  %1300 = vmatmul.bf16.gmra.mxu0 %v1082
  %v1301 = vpop.f32.mrf.mxu0
  %v1302 = vadd.f32 0.0, %v1301
  %v1303 = vpop.f32.mrf.mxu0
  %v1304 = vadd.f32 0.0, %v1303
  %1305 = vdwg.mxu0
  %1306 = vmatpush.bf16.msra.mxu0 %v1243
  %1307 = vmatpush.bf16.msra.mxu0 %v1241
  %1308 = vmatpush.bf16.msra.mxu0 %v1239
  %1309 = vmatpush.bf16.msra.mxu0 %v1237
  %1310 = vmatpush.bf16.msra.mxu0 %v1235
  %1311 = vmatpush.bf16.msra.mxu0 %v1233
  %1312 = vmatpush.bf16.msra.mxu0 %v1231
  %1313 = vmatpush.bf16.msra.mxu0 %v1229
  %1314 = vmatmul.bf16.gmra.mxu0 %v1077
  %v1315 = vpop.f32.mrf.mxu0
  %v1316 = vadd.f32 %v1287, %v1315
  %v1317 = vpop.f32.mrf.mxu0
  %v1318 = vadd.f32 %v1289, %v1317
  %1319 = vmatmul.bf16.gmra.mxu0 %v1079
  %v1320 = vpop.f32.mrf.mxu0
  %v1321 = vadd.f32 %v1292, %v1320
  %v1322 = vpop.f32.mrf.mxu0
  %v1323 = vadd.f32 %v1294, %v1322
  %1324 = vmatmul.bf16.gmra.mxu0 %v1081
  %v1325 = vpop.f32.mrf.mxu0
  %v1326 = vadd.f32 %v1297, %v1325
  %v1327 = vpop.f32.mrf.mxu0
  %v1328 = vadd.f32 %v1299, %v1327
  %1329 = vmatmul.bf16.gmra.mxu0 %v1083
  %v1330 = vpop.f32.mrf.mxu0
  %v1331 = vadd.f32 %v1302, %v1330
  %v1332 = vpop.f32.mrf.mxu0
  %v1333 = vadd.f32 %v1304, %v1332
  %1334 = vdwg.mxu0
  %1335 = vmatpush.bf16.msra.mxu0 %v1228
  %1336 = vmatpush.bf16.msra.mxu0 %v1226
  %1337 = vmatpush.bf16.msra.mxu0 %v1224
  %1338 = vmatpush.bf16.msra.mxu0 %v1222
  %1339 = vmatpush.bf16.msra.mxu0 %v1220
  %1340 = vmatpush.bf16.msra.mxu0 %v1218
  %1341 = vmatpush.bf16.msra.mxu0 %v1216
  %1342 = vmatpush.bf16.msra.mxu0 %v1214
  %1343 = vmatmul.bf16.gmra.mxu0 %v1076
  %v1344 = vpop.f32.mrf.mxu0
  %v1345 = vadd.f32 0.0, %v1344
  %v1346 = vpop.f32.mrf.mxu0
  %v1347 = vadd.f32 0.0, %v1346
  %1348 = vmatmul.bf16.gmra.mxu0 %v1078
  %v1349 = vpop.f32.mrf.mxu0
  %v1350 = vadd.f32 0.0, %v1349
  %v1351 = vpop.f32.mrf.mxu0
  %v1352 = vadd.f32 0.0, %v1351
  %1353 = vmatmul.bf16.gmra.mxu0 %v1080
  %v1354 = vpop.f32.mrf.mxu0
  %v1355 = vadd.f32 0.0, %v1354
  %v1356 = vpop.f32.mrf.mxu0
  %v1357 = vadd.f32 0.0, %v1356
  %1358 = vmatmul.bf16.gmra.mxu0 %v1082
  %v1359 = vpop.f32.mrf.mxu0
  %v1360 = vadd.f32 0.0, %v1359
  %v1361 = vpop.f32.mrf.mxu0
  %v1362 = vadd.f32 0.0, %v1361
  %1363 = vdwg.mxu0
  %1364 = vmatpush.bf16.msra.mxu0 %v1244
  %1365 = vmatpush.bf16.msra.mxu0 %v1242
  %1366 = vmatpush.bf16.msra.mxu0 %v1240
  %1367 = vmatpush.bf16.msra.mxu0 %v1238
  %1368 = vmatpush.bf16.msra.mxu0 %v1236
  %1369 = vmatpush.bf16.msra.mxu0 %v1234
  %1370 = vmatpush.bf16.msra.mxu0 %v1232
  %1371 = vmatpush.bf16.msra.mxu0 %v1230
  %1372 = vmatmul.bf16.gmra.mxu0 %v1077
  %v1373 = vpop.f32.mrf.mxu0
  %v1374 = vadd.f32 %v1345, %v1373
  %v1375 = vpop.f32.mrf.mxu0
  %v1376 = vadd.f32 %v1347, %v1375
  %1377 = vmatmul.bf16.gmra.mxu0 %v1079
  %v1378 = vpop.f32.mrf.mxu0
  %v1379 = vadd.f32 %v1350, %v1378
  %v1380 = vpop.f32.mrf.mxu0
  %v1381 = vadd.f32 %v1352, %v1380
  %1382 = vmatmul.bf16.gmra.mxu0 %v1081
  %v1383 = vpop.f32.mrf.mxu0
  %v1384 = vadd.f32 %v1355, %v1383
  %v1385 = vpop.f32.mrf.mxu0
  %v1386 = vadd.f32 %v1357, %v1385
  %1387 = vmatmul.bf16.gmra.mxu0 %v1083
  %v1388 = vpop.f32.mrf.mxu0
  %v1389 = vadd.f32 %v1360, %v1388
  %v1390 = vpop.f32.mrf.mxu0
  %v1391 = vadd.f32 %v1362, %v1390
  %1392 = vdwg.mxu0
  %v1393 = vadd.f32 %v908, %v1316
  %v1394 = vadd.f32 %v966, %v1374
  %v1395 = vadd.f32 %v910, %v1318
  %v1396 = vadd.f32 %v968, %v1376
  %v1397 = vadd.f32 %v913, %v1321
  %v1398 = vadd.f32 %v971, %v1379
  %v1399 = vadd.f32 %v915, %v1323
  %v1400 = vadd.f32 %v973, %v1381
  %v1401 = vadd.f32 %v918, %v1326
  %v1402 = vadd.f32 %v976, %v1384
  %v1403 = vadd.f32 %v920, %v1328
  %v1404 = vadd.f32 %v978, %v1386
  %v1405 = vadd.f32 %v923, %v1331
  %v1406 = vadd.f32 %v981, %v1389
  %v1407 = vadd.f32 %v925, %v1333
  %v1408 = vadd.f32 %v983, %v1391
  %s1409 = scalar_lea.vmem %s1, 96
  %v1410 = vld [vmem:[%s1409] sm:$0xf]
  %v1411 = vld [vmem:[%s1409 + $0x4] sm:$0xf]
  %v1412 = vld [vmem:[%s1409 + $0x8] sm:$0xf]
  %v1413 = vld [vmem:[%s1409 + $0xc] sm:$0xf]
  %v1414 = vld [vmem:[%s1409 + $0x10] sm:$0xf]
  %v1415 = vld [vmem:[%s1409 + $0x14] sm:$0xf]
  %v1416 = vld [vmem:[%s1409 + $0x18] sm:$0xf]
  %v1417 = vld [vmem:[%s1409 + $0x1c] sm:$0xf]
  %v1426 = vunpack.c.l.b16 %v1410
  %v1427 = vunpack.c.l.b16 %v1411
  %v1428 = vunpack.c.l.b16 %v1412
  %v1429 = vunpack.c.l.b16 %v1413
  %v1430 = vunpack.c.l.b16 %v1414
  %v1431 = vunpack.c.l.b16 %v1415
  %v1432 = vunpack.c.l.b16 %v1416
  %v1433 = vunpack.c.l.b16 %v1417
  %v1434 = vpack.c.b16 %v1427, %v1426
  %v1435 = vpack.c.b16 %v1429, %v1428
  %v1436 = vpack.c.b16 %v1431, %v1430
  %v1437 = vpack.c.b16 %v1433, %v1432
  %1442 = vmatpush.bf16.msra.mxu0 %v185
  %1443 = vmatpush.bf16.msra.mxu0 %v183
  %1444 = vmatpush.bf16.msra.mxu0 %v181
  %1445 = vmatpush.bf16.msra.mxu0 %v179
  %1446 = vmatpush.bf16.msra.mxu0 %v177
  %1447 = vmatpush.bf16.msra.mxu0 %v175
  %1448 = vmatpush.bf16.msra.mxu0 %v173
  %1449 = vmatpush.bf16.msra.mxu0 %v171
  %1450 = vmatmul.bf16.gmra.mxu0 %v1434
  %v1451 = vpop.f32.mrf.mxu0
  %v1452 = vadd.f32 0.0, %v1451
  %v1453 = vpop.f32.mrf.mxu0
  %v1454 = vadd.f32 0.0, %v1453
  %1455 = vmatmul.bf16.gmra.mxu0 %v1435
  %v1456 = vpop.f32.mrf.mxu0
  %v1457 = vadd.f32 0.0, %v1456
  %v1458 = vpop.f32.mrf.mxu0
  %v1459 = vadd.f32 0.0, %v1458
  %1460 = vmatmul.bf16.gmra.mxu0 %v1436
  %v1461 = vpop.f32.mrf.mxu0
  %v1462 = vadd.f32 0.0, %v1461
  %v1463 = vpop.f32.mrf.mxu0
  %v1464 = vadd.f32 0.0, %v1463
  %1465 = vmatmul.bf16.gmra.mxu0 %v1437
  %v1466 = vpop.f32.mrf.mxu0
  %v1467 = vadd.f32 0.0, %v1466
  %v1468 = vpop.f32.mrf.mxu0
  %v1469 = vadd.f32 0.0, %v1468
  %1470 = vdwg.mxu0
  %1471 = vmatpush.bf16.msra.mxu0 %v186
  %1472 = vmatpush.bf16.msra.mxu0 %v184
  %1473 = vmatpush.bf16.msra.mxu0 %v182
  %1474 = vmatpush.bf16.msra.mxu0 %v180
  %1475 = vmatpush.bf16.msra.mxu0 %v178
  %1476 = vmatpush.bf16.msra.mxu0 %v176
  %1477 = vmatpush.bf16.msra.mxu0 %v174
  %1478 = vmatpush.bf16.msra.mxu0 %v172
  %1479 = vmatmul.bf16.gmra.mxu0 %v1434
  %v1480 = vpop.f32.mrf.mxu0
  %v1481 = vadd.f32 0.0, %v1480
  %v1482 = vpop.f32.mrf.mxu0
  %v1483 = vadd.f32 0.0, %v1482
  %1484 = vmatmul.bf16.gmra.mxu0 %v1435
  %v1485 = vpop.f32.mrf.mxu0
  %v1486 = vadd.f32 0.0, %v1485
  %v1487 = vpop.f32.mrf.mxu0
  %v1488 = vadd.f32 0.0, %v1487
  %1489 = vmatmul.bf16.gmra.mxu0 %v1436
  %v1490 = vpop.f32.mrf.mxu0
  %v1491 = vadd.f32 0.0, %v1490
  %v1492 = vpop.f32.mrf.mxu0
  %v1493 = vadd.f32 0.0, %v1492
  %1494 = vmatmul.bf16.gmra.mxu0 %v1437
  %v1495 = vpop.f32.mrf.mxu0
  %v1496 = vadd.f32 0.0, %v1495
  %v1497 = vpop.f32.mrf.mxu0
  %v1498 = vadd.f32 0.0, %v1497
  %1499 = vdwg.mxu0
  %v1500 = vpack.c.bf16 %v1454, %v1452
  %v1501 = vpack.c.bf16 %v1483, %v1481
  %v1502 = vpack.c.bf16 %v1459, %v1457
  %v1503 = vpack.c.bf16 %v1488, %v1486
  %v1504 = vpack.c.bf16 %v1464, %v1462
  %v1505 = vpack.c.bf16 %v1493, %v1491
  %v1506 = vpack.c.bf16 %v1469, %v1467
  %v1507 = vpack.c.bf16 %v1498, %v1496
  %s1508 = scalar_lea.vmem %s2, 768
  %v1509 = vld [vmem:[%s1508] sm:$0xff]
  %v1510 = vld [vmem:[%s1508 + $0x8] sm:$0xff]
  %v1511 = vld [vmem:[%s1508 + $0x10] sm:$0xff]
  %v1512 = vld [vmem:[%s1508 + $0x18] sm:$0xff]
  %v1513 = vld [vmem:[%s1508 + $0x20] sm:$0xff]
  %v1514 = vld [vmem:[%s1508 + $0x28] sm:$0xff]
  %v1515 = vld [vmem:[%s1508 + $0x30] sm:$0xff]
  %v1516 = vld [vmem:[%s1508 + $0x38] sm:$0xff]
  %v1517 = vld [vmem:[%s1508 + $0x40] sm:$0xff]
  %v1518 = vld [vmem:[%s1508 + $0x48] sm:$0xff]
  %v1519 = vld [vmem:[%s1508 + $0x50] sm:$0xff]
  %v1520 = vld [vmem:[%s1508 + $0x58] sm:$0xff]
  %v1521 = vld [vmem:[%s1508 + $0x60] sm:$0xff]
  %v1522 = vld [vmem:[%s1508 + $0x68] sm:$0xff]
  %v1523 = vld [vmem:[%s1508 + $0x70] sm:$0xff]
  %v1524 = vld [vmem:[%s1508 + $0x78] sm:$0xff]
  %v1525 = vld [vmem:[%s1508 + $0x80] sm:$0xff]
  %v1526 = vld [vmem:[%s1508 + $0x88] sm:$0xff]
  %v1527 = vld [vmem:[%s1508 + $0x90] sm:$0xff]
  %v1528 = vld [vmem:[%s1508 + $0x98] sm:$0xff]
  %v1529 = vld [vmem:[%s1508 + $0xa0] sm:$0xff]
  %v1530 = vld [vmem:[%s1508 + $0xa8] sm:$0xff]
  %v1531 = vld [vmem:[%s1508 + $0xb0] sm:$0xff]
  %v1532 = vld [vmem:[%s1508 + $0xb8] sm:$0xff]
  %v1533 = vld [vmem:[%s1508 + $0xc0] sm:$0xff]
  %v1534 = vld [vmem:[%s1508 + $0xc8] sm:$0xff]
  %v1535 = vld [vmem:[%s1508 + $0xd0] sm:$0xff]
  %v1536 = vld [vmem:[%s1508 + $0xd8] sm:$0xff]
  %v1537 = vld [vmem:[%s1508 + $0xe0] sm:$0xff]
  %v1538 = vld [vmem:[%s1508 + $0xe8] sm:$0xff]
  %v1539 = vld [vmem:[%s1508 + $0xf0] sm:$0xff]
  %v1540 = vld [vmem:[%s1508 + $0xf8] sm:$0xff]
  %v1573 = vunpack.c.l.b16 %v1509
  %v1574 = vunpack.c.h.b16 %v1509
  %v1575 = vunpack.c.l.b16 %v1510
  %v1576 = vunpack.c.h.b16 %v1510
  %v1577 = vunpack.c.l.b16 %v1511
  %v1578 = vunpack.c.h.b16 %v1511
  %v1579 = vunpack.c.l.b16 %v1512
  %v1580 = vunpack.c.h.b16 %v1512
  %v1581 = vunpack.c.l.b16 %v1513
  %v1582 = vunpack.c.h.b16 %v1513
  %v1583 = vunpack.c.l.b16 %v1514
  %v1584 = vunpack.c.h.b16 %v1514
  %v1585 = vunpack.c.l.b16 %v1515
  %v1586 = vunpack.c.h.b16 %v1515
  %v1587 = vunpack.c.l.b16 %v1516
  %v1588 = vunpack.c.h.b16 %v1516
  %v1589 = vunpack.c.l.b16 %v1517
  %v1590 = vunpack.c.h.b16 %v1517
  %v1591 = vunpack.c.l.b16 %v1518
  %v1592 = vunpack.c.h.b16 %v1518
  %v1593 = vunpack.c.l.b16 %v1519
  %v1594 = vunpack.c.h.b16 %v1519
  %v1595 = vunpack.c.l.b16 %v1520
  %v1596 = vunpack.c.h.b16 %v1520
  %v1597 = vunpack.c.l.b16 %v1521
  %v1598 = vunpack.c.h.b16 %v1521
  %v1599 = vunpack.c.l.b16 %v1522
  %v1600 = vunpack.c.h.b16 %v1522
  %v1601 = vunpack.c.l.b16 %v1523
  %v1602 = vunpack.c.h.b16 %v1523
  %v1603 = vunpack.c.l.b16 %v1524
  %v1604 = vunpack.c.h.b16 %v1524
  %v1605 = vunpack.c.l.b16 %v1525
  %v1606 = vunpack.c.h.b16 %v1525
  %v1607 = vunpack.c.l.b16 %v1526
  %v1608 = vunpack.c.h.b16 %v1526
  %v1609 = vunpack.c.l.b16 %v1527
  %v1610 = vunpack.c.h.b16 %v1527
  %v1611 = vunpack.c.l.b16 %v1528
  %v1612 = vunpack.c.h.b16 %v1528
  %v1613 = vunpack.c.l.b16 %v1529
  %v1614 = vunpack.c.h.b16 %v1529
  %v1615 = vunpack.c.l.b16 %v1530
  %v1616 = vunpack.c.h.b16 %v1530
  %v1617 = vunpack.c.l.b16 %v1531
  %v1618 = vunpack.c.h.b16 %v1531
  %v1619 = vunpack.c.l.b16 %v1532
  %v1620 = vunpack.c.h.b16 %v1532
  %v1621 = vunpack.c.l.b16 %v1533
  %v1622 = vunpack.c.h.b16 %v1533
  %v1623 = vunpack.c.l.b16 %v1534
  %v1624 = vunpack.c.h.b16 %v1534
  %v1625 = vunpack.c.l.b16 %v1535
  %v1626 = vunpack.c.h.b16 %v1535
  %v1627 = vunpack.c.l.b16 %v1536
  %v1628 = vunpack.c.h.b16 %v1536
  %v1629 = vunpack.c.l.b16 %v1537
  %v1630 = vunpack.c.h.b16 %v1537
  %v1631 = vunpack.c.l.b16 %v1538
  %v1632 = vunpack.c.h.b16 %v1538
  %v1633 = vunpack.c.l.b16 %v1539
  %v1634 = vunpack.c.h.b16 %v1539
  %v1635 = vunpack.c.l.b16 %v1540
  %v1636 = vunpack.c.h.b16 %v1540
  %v1637 = vpack.c.b16 %v1575, %v1573
  %v1638 = vpack.c.b16 %v1576, %v1574
  %v1639 = vpack.c.b16 %v1579, %v1577
  %v1640 = vpack.c.b16 %v1580, %v1578
  %v1641 = vpack.c.b16 %v1583, %v1581
  %v1642 = vpack.c.b16 %v1584, %v1582
  %v1643 = vpack.c.b16 %v1587, %v1585
  %v1644 = vpack.c.b16 %v1588, %v1586
  %v1645 = vpack.c.b16 %v1591, %v1589
  %v1646 = vpack.c.b16 %v1592, %v1590
  %v1647 = vpack.c.b16 %v1595, %v1593
  %v1648 = vpack.c.b16 %v1596, %v1594
  %v1649 = vpack.c.b16 %v1599, %v1597
  %v1650 = vpack.c.b16 %v1600, %v1598
  %v1651 = vpack.c.b16 %v1603, %v1601
  %v1652 = vpack.c.b16 %v1604, %v1602
  %v1653 = vpack.c.b16 %v1607, %v1605
  %v1654 = vpack.c.b16 %v1608, %v1606
  %v1655 = vpack.c.b16 %v1611, %v1609
  %v1656 = vpack.c.b16 %v1612, %v1610
  %v1657 = vpack.c.b16 %v1615, %v1613
  %v1658 = vpack.c.b16 %v1616, %v1614
  %v1659 = vpack.c.b16 %v1619, %v1617
  %v1660 = vpack.c.b16 %v1620, %v1618
  %v1661 = vpack.c.b16 %v1623, %v1621
  %v1662 = vpack.c.b16 %v1624, %v1622
  %v1663 = vpack.c.b16 %v1627, %v1625
  %v1664 = vpack.c.b16 %v1628, %v1626
  %v1665 = vpack.c.b16 %v1631, %v1629
  %v1666 = vpack.c.b16 %v1632, %v1630
  %v1667 = vpack.c.b16 %v1635, %v1633
  %v1668 = vpack.c.b16 %v1636, %v1634
  %1701 = vmatpush.bf16.msra.mxu0 %v1651
  %1702 = vmatpush.bf16.msra.mxu0 %v1649
  %1703 = vmatpush.bf16.msra.mxu0 %v1647
  %1704 = vmatpush.bf16.msra.mxu0 %v1645
  %1705 = vmatpush.bf16.msra.mxu0 %v1643
  %1706 = vmatpush.bf16.msra.mxu0 %v1641
  %1707 = vmatpush.bf16.msra.mxu0 %v1639
  %1708 = vmatpush.bf16.msra.mxu0 %v1637
  %1709 = vmatmul.bf16.gmra.mxu0 %v1500
  %v1710 = vpop.f32.mrf.mxu0
  %v1711 = vadd.f32 0.0, %v1710
  %v1712 = vpop.f32.mrf.mxu0
  %v1713 = vadd.f32 0.0, %v1712
  %1714 = vmatmul.bf16.gmra.mxu0 %v1502
  %v1715 = vpop.f32.mrf.mxu0
  %v1716 = vadd.f32 0.0, %v1715
  %v1717 = vpop.f32.mrf.mxu0
  %v1718 = vadd.f32 0.0, %v1717
  %1719 = vmatmul.bf16.gmra.mxu0 %v1504
  %v1720 = vpop.f32.mrf.mxu0
  %v1721 = vadd.f32 0.0, %v1720
  %v1722 = vpop.f32.mrf.mxu0
  %v1723 = vadd.f32 0.0, %v1722
  %1724 = vmatmul.bf16.gmra.mxu0 %v1506
  %v1725 = vpop.f32.mrf.mxu0
  %v1726 = vadd.f32 0.0, %v1725
  %v1727 = vpop.f32.mrf.mxu0
  %v1728 = vadd.f32 0.0, %v1727
  %1729 = vdwg.mxu0
  %1730 = vmatpush.bf16.msra.mxu0 %v1667
  %1731 = vmatpush.bf16.msra.mxu0 %v1665
  %1732 = vmatpush.bf16.msra.mxu0 %v1663
  %1733 = vmatpush.bf16.msra.mxu0 %v1661
  %1734 = vmatpush.bf16.msra.mxu0 %v1659
  %1735 = vmatpush.bf16.msra.mxu0 %v1657
  %1736 = vmatpush.bf16.msra.mxu0 %v1655
  %1737 = vmatpush.bf16.msra.mxu0 %v1653
  %1738 = vmatmul.bf16.gmra.mxu0 %v1501
  %v1739 = vpop.f32.mrf.mxu0
  %v1740 = vadd.f32 %v1711, %v1739
  %v1741 = vpop.f32.mrf.mxu0
  %v1742 = vadd.f32 %v1713, %v1741
  %1743 = vmatmul.bf16.gmra.mxu0 %v1503
  %v1744 = vpop.f32.mrf.mxu0
  %v1745 = vadd.f32 %v1716, %v1744
  %v1746 = vpop.f32.mrf.mxu0
  %v1747 = vadd.f32 %v1718, %v1746
  %1748 = vmatmul.bf16.gmra.mxu0 %v1505
  %v1749 = vpop.f32.mrf.mxu0
  %v1750 = vadd.f32 %v1721, %v1749
  %v1751 = vpop.f32.mrf.mxu0
  %v1752 = vadd.f32 %v1723, %v1751
  %1753 = vmatmul.bf16.gmra.mxu0 %v1507
  %v1754 = vpop.f32.mrf.mxu0
  %v1755 = vadd.f32 %v1726, %v1754
  %v1756 = vpop.f32.mrf.mxu0
  %v1757 = vadd.f32 %v1728, %v1756
  %1758 = vdwg.mxu0
  %1759 = vmatpush.bf16.msra.mxu0 %v1652
  %1760 = vmatpush.bf16.msra.mxu0 %v1650
  %1761 = vmatpush.bf16.msra.mxu0 %v1648
  %1762 = vmatpush.bf16.msra.mxu0 %v1646
  %1763 = vmatpush.bf16.msra.mxu0 %v1644
  %1764 = vmatpush.bf16.msra.mxu0 %v1642
  %1765 = vmatpush.bf16.msra.mxu0 %v1640
  %1766 = vmatpush.bf16.msra.mxu0 %v1638
  %1767 = vmatmul.bf16.gmra.mxu0 %v1500
  %v1768 = vpop.f32.mrf.mxu0
  %v1769 = vadd.f32 0.0, %v1768
  %v1770 = vpop.f32.mrf.mxu0
  %v1771 = vadd.f32 0.0, %v1770
  %1772 = vmatmul.bf16.gmra.mxu0 %v1502
  %v1773 = vpop.f32.mrf.mxu0
  %v1774 = vadd.f32 0.0, %v1773
  %v1775 = vpop.f32.mrf.mxu0
  %v1776 = vadd.f32 0.0, %v1775
  %1777 = vmatmul.bf16.gmra.mxu0 %v1504
  %v1778 = vpop.f32.mrf.mxu0
  %v1779 = vadd.f32 0.0, %v1778
  %v1780 = vpop.f32.mrf.mxu0
  %v1781 = vadd.f32 0.0, %v1780
  %1782 = vmatmul.bf16.gmra.mxu0 %v1506
  %v1783 = vpop.f32.mrf.mxu0
  %v1784 = vadd.f32 0.0, %v1783
  %v1785 = vpop.f32.mrf.mxu0
  %v1786 = vadd.f32 0.0, %v1785
  %1787 = vdwg.mxu0
  %1788 = vmatpush.bf16.msra.mxu0 %v1668
  %1789 = vmatpush.bf16.msra.mxu0 %v1666
  %1790 = vmatpush.bf16.msra.mxu0 %v1664
  %1791 = vmatpush.bf16.msra.mxu0 %v1662
  %1792 = vmatpush.bf16.msra.mxu0 %v1660
  %1793 = vmatpush.bf16.msra.mxu0 %v1658
  %1794 = vmatpush.bf16.msra.mxu0 %v1656
  %1795 = vmatpush.bf16.msra.mxu0 %v1654
  %1796 = vmatmul.bf16.gmra.mxu0 %v1501
  %v1797 = vpop.f32.mrf.mxu0
  %v1798 = vadd.f32 %v1769, %v1797
  %v1799 = vpop.f32.mrf.mxu0
  %v1800 = vadd.f32 %v1771, %v1799
  %1801 = vmatmul.bf16.gmra.mxu0 %v1503
  %v1802 = vpop.f32.mrf.mxu0
  %v1803 = vadd.f32 %v1774, %v1802
  %v1804 = vpop.f32.mrf.mxu0
  %v1805 = vadd.f32 %v1776, %v1804
  %1806 = vmatmul.bf16.gmra.mxu0 %v1505
  %v1807 = vpop.f32.mrf.mxu0
  %v1808 = vadd.f32 %v1779, %v1807
  %v1809 = vpop.f32.mrf.mxu0
  %v1810 = vadd.f32 %v1781, %v1809
  %1811 = vmatmul.bf16.gmra.mxu0 %v1507
  %v1812 = vpop.f32.mrf.mxu0
  %v1813 = vadd.f32 %v1784, %v1812
  %v1814 = vpop.f32.mrf.mxu0
  %v1815 = vadd.f32 %v1786, %v1814
  %1816 = vdwg.mxu0
  %v1817 = vadd.f32 %v1393, %v1740
  %v1818 = vadd.f32 %v1394, %v1798
  %v1819 = vadd.f32 %v1395, %v1742
  %v1820 = vadd.f32 %v1396, %v1800
  %v1821 = vadd.f32 %v1397, %v1745
  %v1822 = vadd.f32 %v1398, %v1803
  %v1823 = vadd.f32 %v1399, %v1747
  %v1824 = vadd.f32 %v1400, %v1805
  %v1825 = vadd.f32 %v1401, %v1750
  %v1826 = vadd.f32 %v1402, %v1808
  %v1827 = vadd.f32 %v1403, %v1752
  %v1828 = vadd.f32 %v1404, %v1810
  %v1829 = vadd.f32 %v1405, %v1755
  %v1830 = vadd.f32 %v1406, %v1813
  %v1831 = vadd.f32 %v1407, %v1757
  %v1832 = vadd.f32 %v1408, %v1815
  %vm1833 = vcmp.ge.f32.partialorder %v1817, 0.0
  %vm1834 = vcmp.ge.f32.partialorder %v1818, 0.0
  %vm1835 = vcmp.ge.f32.partialorder %v1819, 0.0
  %vm1836 = vcmp.ge.f32.partialorder %v1820, 0.0
  %vm1837 = vcmp.ge.f32.partialorder %v1821, 0.0
  %vm1838 = vcmp.ge.f32.partialorder %v1822, 0.0
  %vm1839 = vcmp.ge.f32.partialorder %v1823, 0.0
  %vm1840 = vcmp.ge.f32.partialorder %v1824, 0.0
  %vm1841 = vcmp.ge.f32.partialorder %v1825, 0.0
  %vm1842 = vcmp.ge.f32.partialorder %v1826, 0.0
  %vm1843 = vcmp.ge.f32.partialorder %v1827, 0.0
  %vm1844 = vcmp.ge.f32.partialorder %v1828, 0.0
  %vm1845 = vcmp.ge.f32.partialorder %v1829, 0.0
  %vm1846 = vcmp.ge.f32.partialorder %v1830, 0.0
  %vm1847 = vcmp.ge.f32.partialorder %v1831, 0.0
  %vm1848 = vcmp.ge.f32.partialorder %v1832, 0.0
  %v1849 = vmul.f32 %v1817, 0.2
  %v1850 = vmul.f32 %v1818, 0.2
  %v1851 = vmul.f32 %v1819, 0.2
  %v1852 = vmul.f32 %v1820, 0.2
  %v1853 = vmul.f32 %v1821, 0.2
  %v1854 = vmul.f32 %v1822, 0.2
  %v1855 = vmul.f32 %v1823, 0.2
  %v1856 = vmul.f32 %v1824, 0.2
  %v1857 = vmul.f32 %v1825, 0.2
  %v1858 = vmul.f32 %v1826, 0.2
  %v1859 = vmul.f32 %v1827, 0.2
  %v1860 = vmul.f32 %v1828, 0.2
  %v1861 = vmul.f32 %v1829, 0.2
  %v1862 = vmul.f32 %v1830, 0.2
  %v1863 = vmul.f32 %v1831, 0.2
  %v1864 = vmul.f32 %v1832, 0.2
  %v1865 = vsel %vm1833, %v1817, %v1849
  %v1866 = vsel %vm1834, %v1818, %v1850
  %v1867 = vsel %vm1835, %v1819, %v1851
  %v1868 = vsel %vm1836, %v1820, %v1852
  %v1869 = vsel %vm1837, %v1821, %v1853
  %v1870 = vsel %vm1838, %v1822, %v1854
  %v1871 = vsel %vm1839, %v1823, %v1855
  %v1872 = vsel %vm1840, %v1824, %v1856
  %v1873 = vsel %vm1841, %v1825, %v1857
  %v1874 = vsel %vm1842, %v1826, %v1858
  %v1875 = vsel %vm1843, %v1827, %v1859
  %v1876 = vsel %vm1844, %v1828, %v1860
  %v1877 = vsel %vm1845, %v1829, %v1861
  %v1878 = vsel %vm1846, %v1830, %v1862
  %v1879 = vsel %vm1847, %v1831, %v1863
  %v1880 = vsel %vm1848, %v1832, %v1864
  %v1881 = vpack.c.bf16 %v1867, %v1865
  %v1882 = vpack.c.bf16 %v1868, %v1866
  %v1883 = vpack.c.bf16 %v1871, %v1869
  %v1884 = vpack.c.bf16 %v1872, %v1870
  %v1885 = vpack.c.bf16 %v1875, %v1873
  %v1886 = vpack.c.bf16 %v1876, %v1874
  %v1887 = vpack.c.bf16 %v1879, %v1877
  %v1888 = vpack.c.bf16 %v1880, %v1878
  %v1889 = vld [vmem:[%s3] sm:$0xf]
  %v1890 = vld [vmem:[%s3 + $0x4] sm:$0xf]
  %v1891 = vld [vmem:[%s3 + $0x8] sm:$0xf]
  %v1892 = vld [vmem:[%s3 + $0xc] sm:$0xf]
  %v1897 = vunpack.c.l.b16 %v1889
  %v1898 = vunpack.c.l.b16 %v1890
  %v1899 = vunpack.c.l.b16 %v1891
  %v1900 = vunpack.c.l.b16 %v1892
  %v1901 = vpack.c.b16 %v1898, %v1897
  %v1902 = vpack.c.b16 %v1900, %v1899
  %vm1903 = vcmask 523264
  %v1905 = vsel %vm1903, %v1901, 0
  %v1908 = vsel %vm1903, %v1902, 0
  %1910 = vmatpush.bf16.msra.mxu0 0
  %1911 = vmatpush.bf16.msra.mxu0 0
  %1912 = vmatpush.bf16.msra.mxu0 0
  %1913 = vmatpush.bf16.msra.mxu0 0
  %1914 = vmatpush.bf16.msra.mxu0 %v1887
  %1915 = vmatpush.bf16.msra.mxu0 %v1885
  %1916 = vmatpush.bf16.msra.mxu0 %v1883
  %1917 = vmatpush.bf16.msra.mxu0 %v1881
  %1918 = vmatmul.bf16.gmra.mxu0 %v1905
  %v1919 = vpop.f32.mrf.mxu0
  %v1920 = vadd.f32 0.0, %v1919
  %v1921 = vpop.f32.mrf.mxu0
  %v1922 = vadd.f32 0.0, %v1921
  %1923 = vmatmul.bf16.gmra.mxu0 %v1908
  %v1924 = vpop.f32.mrf.mxu0
  %v1925 = vadd.f32 0.0, %v1924
  %v1926 = vpop.f32.mrf.mxu0
  %v1927 = vadd.f32 0.0, %v1926
  %1928 = vdwg.mxu0
  %1929 = vmatpush.bf16.msra.mxu0 0
  %1930 = vmatpush.bf16.msra.mxu0 0
  %1931 = vmatpush.bf16.msra.mxu0 0
  %1932 = vmatpush.bf16.msra.mxu0 0
  %1933 = vmatpush.bf16.msra.mxu0 %v1888
  %1934 = vmatpush.bf16.msra.mxu0 %v1886
  %1935 = vmatpush.bf16.msra.mxu0 %v1884
  %1936 = vmatpush.bf16.msra.mxu0 %v1882
  %1937 = vmatmul.bf16.gmra.mxu0 %v1905
  %v1938 = vpop.f32.mrf.mxu0
  %v1939 = vadd.f32 0.0, %v1938
  %v1940 = vpop.f32.mrf.mxu0
  %v1941 = vadd.f32 0.0, %v1940
  %1942 = vmatmul.bf16.gmra.mxu0 %v1908
  %v1943 = vpop.f32.mrf.mxu0
  %v1944 = vadd.f32 0.0, %v1943
  %v1945 = vpop.f32.mrf.mxu0
  %v1946 = vadd.f32 0.0, %v1945
  %1947 = vdwg.mxu0
  %v1948 = vpack.c.bf16 %v1922, %v1920
  %v1949 = vpack.c.bf16 %v1941, %v1939
  %v1950 = vpack.c.bf16 %v1927, %v1925
  %v1951 = vpack.c.bf16 %v1946, %v1944
  %v1952 = vld [vmem:[%s4] sm:$0xff]
  %v1953 = vld [vmem:[%s4 + $0x8] sm:$0xff]
  %v1954 = vld [vmem:[%s4 + $0x10] sm:$0xff]
  %v1955 = vld [vmem:[%s4 + $0x18] sm:$0xff]
  %v1956 = vld [vmem:[%s4 + $0x20] sm:$0xff]
  %v1957 = vld [vmem:[%s4 + $0x28] sm:$0xff]
  %v1958 = vld [vmem:[%s4 + $0x30] sm:$0xff]
  %v1959 = vld [vmem:[%s4 + $0x38] sm:$0xff]
  %v1960 = vld [vmem:[%s4 + $0x40] sm:$0xff]
  %v1961 = vld [vmem:[%s4 + $0x48] sm:$0xff]
  %v1962 = vld [vmem:[%s4 + $0x50] sm:$0xff]
  %v1963 = vld [vmem:[%s4 + $0x58] sm:$0xff]
  %v1964 = vld [vmem:[%s4 + $0x60] sm:$0xff]
  %v1965 = vld [vmem:[%s4 + $0x68] sm:$0xff]
  %v1966 = vld [vmem:[%s4 + $0x70] sm:$0xff]
  %v1967 = vld [vmem:[%s4 + $0x78] sm:$0xff]
  %v1968 = vld [vmem:[%s4 + $0x80] sm:$0xff]
  %v1969 = vld [vmem:[%s4 + $0x88] sm:$0xff]
  %v1970 = vld [vmem:[%s4 + $0x90] sm:$0xff]
  %v1971 = vld [vmem:[%s4 + $0x98] sm:$0xff]
  %v1972 = vld [vmem:[%s4 + $0xa0] sm:$0xff]
  %v1973 = vld [vmem:[%s4 + $0xa8] sm:$0xff]
  %v1974 = vld [vmem:[%s4 + $0xb0] sm:$0xff]
  %v1975 = vld [vmem:[%s4 + $0xb8] sm:$0xff]
  %v1976 = vld [vmem:[%s4 + $0xc0] sm:$0xff]
  %v1977 = vld [vmem:[%s4 + $0xc8] sm:$0xff]
  %v1978 = vld [vmem:[%s4 + $0xd0] sm:$0xff]
  %v1979 = vld [vmem:[%s4 + $0xd8] sm:$0xff]
  %v1980 = vld [vmem:[%s4 + $0xe0] sm:$0xff]
  %v1981 = vld [vmem:[%s4 + $0xe8] sm:$0xff]
  %v1982 = vld [vmem:[%s4 + $0xf0] sm:$0xff]
  %v1983 = vld [vmem:[%s4 + $0xf8] sm:$0xff]
  %s1984 = scalar_lea.vmem %s3, 16
  %v1985 = vld [vmem:[%s1984] sm:$0xf]
  %v1986 = vld [vmem:[%s1984 + $0x4] sm:$0xf]
  %v1987 = vld [vmem:[%s1984 + $0x8] sm:$0xf]
  %v1988 = vld [vmem:[%s1984 + $0xc] sm:$0xf]
  %v1993 = vunpack.c.l.b16 %v1985
  %v1994 = vunpack.c.l.b16 %v1986
  %v1995 = vunpack.c.l.b16 %v1987
  %v1996 = vunpack.c.l.b16 %v1988
  %v1997 = vpack.c.b16 %v1994, %v1993
  %v1998 = vpack.c.b16 %v1996, %v1995
  %v2000 = vsel %vm1903, %v1997, 0
  %v2003 = vsel %vm1903, %v1998, 0
  %2005 = vmatpush.bf16.msra.mxu0 0
  %2006 = vmatpush.bf16.msra.mxu0 0
  %2007 = vmatpush.bf16.msra.mxu0 0
  %2008 = vmatpush.bf16.msra.mxu0 0
  %2009 = vmatpush.bf16.msra.mxu0 %v1887
  %2010 = vmatpush.bf16.msra.mxu0 %v1885
  %2011 = vmatpush.bf16.msra.mxu0 %v1883
  %2012 = vmatpush.bf16.msra.mxu0 %v1881
  %2013 = vmatmul.bf16.gmra.mxu0 %v2000
  %v2014 = vpop.f32.mrf.mxu0
  %v2015 = vadd.f32 0.0, %v2014
  %v2016 = vpop.f32.mrf.mxu0
  %v2017 = vadd.f32 0.0, %v2016
  %2018 = vmatmul.bf16.gmra.mxu0 %v2003
  %v2019 = vpop.f32.mrf.mxu0
  %v2020 = vadd.f32 0.0, %v2019
  %v2021 = vpop.f32.mrf.mxu0
  %v2022 = vadd.f32 0.0, %v2021
  %2023 = vdwg.mxu0
  %2024 = vmatpush.bf16.msra.mxu0 0
  %2025 = vmatpush.bf16.msra.mxu0 0
  %2026 = vmatpush.bf16.msra.mxu0 0
  %2027 = vmatpush.bf16.msra.mxu0 0
  %2028 = vmatpush.bf16.msra.mxu0 %v1888
  %2029 = vmatpush.bf16.msra.mxu0 %v1886
  %2030 = vmatpush.bf16.msra.mxu0 %v1884
  %2031 = vmatpush.bf16.msra.mxu0 %v1882
  %2032 = vmatmul.bf16.gmra.mxu0 %v2000
  %v2033 = vpop.f32.mrf.mxu0
  %v2034 = vadd.f32 0.0, %v2033
  %v2035 = vpop.f32.mrf.mxu0
  %v2036 = vadd.f32 0.0, %v2035
  %2037 = vmatmul.bf16.gmra.mxu0 %v2003
  %v2038 = vpop.f32.mrf.mxu0
  %v2039 = vadd.f32 0.0, %v2038
  %v2040 = vpop.f32.mrf.mxu0
  %v2041 = vadd.f32 0.0, %v2040
  %2042 = vdwg.mxu0
  %v2043 = vpack.c.bf16 %v2017, %v2015
  %v2044 = vpack.c.bf16 %v2036, %v2034
  %v2045 = vpack.c.bf16 %v2022, %v2020
  %v2046 = vpack.c.bf16 %v2041, %v2039
  %s2047 = scalar_lea.vmem %s4, 256
  %v2048 = vld [vmem:[%s2047] sm:$0xff]
  %v2049 = vld [vmem:[%s2047 + $0x8] sm:$0xff]
  %v2050 = vld [vmem:[%s2047 + $0x10] sm:$0xff]
  %v2051 = vld [vmem:[%s2047 + $0x18] sm:$0xff]
  %v2052 = vld [vmem:[%s2047 + $0x20] sm:$0xff]
  %v2053 = vld [vmem:[%s2047 + $0x28] sm:$0xff]
  %v2054 = vld [vmem:[%s2047 + $0x30] sm:$0xff]
  %v2055 = vld [vmem:[%s2047 + $0x38] sm:$0xff]
  %v2056 = vld [vmem:[%s2047 + $0x40] sm:$0xff]
  %v2057 = vld [vmem:[%s2047 + $0x48] sm:$0xff]
  %v2058 = vld [vmem:[%s2047 + $0x50] sm:$0xff]
  %v2059 = vld [vmem:[%s2047 + $0x58] sm:$0xff]
  %v2060 = vld [vmem:[%s2047 + $0x60] sm:$0xff]
  %v2061 = vld [vmem:[%s2047 + $0x68] sm:$0xff]
  %v2062 = vld [vmem:[%s2047 + $0x70] sm:$0xff]
  %v2063 = vld [vmem:[%s2047 + $0x78] sm:$0xff]
  %v2064 = vld [vmem:[%s2047 + $0x80] sm:$0xff]
  %v2065 = vld [vmem:[%s2047 + $0x88] sm:$0xff]
  %v2066 = vld [vmem:[%s2047 + $0x90] sm:$0xff]
  %v2067 = vld [vmem:[%s2047 + $0x98] sm:$0xff]
  %v2068 = vld [vmem:[%s2047 + $0xa0] sm:$0xff]
  %v2069 = vld [vmem:[%s2047 + $0xa8] sm:$0xff]
  %v2070 = vld [vmem:[%s2047 + $0xb0] sm:$0xff]
  %v2071 = vld [vmem:[%s2047 + $0xb8] sm:$0xff]
  %v2072 = vld [vmem:[%s2047 + $0xc0] sm:$0xff]
  %v2073 = vld [vmem:[%s2047 + $0xc8] sm:$0xff]
  %v2074 = vld [vmem:[%s2047 + $0xd0] sm:$0xff]
  %v2075 = vld [vmem:[%s2047 + $0xd8] sm:$0xff]
  %v2076 = vld [vmem:[%s2047 + $0xe0] sm:$0xff]
  %v2077 = vld [vmem:[%s2047 + $0xe8] sm:$0xff]
  %v2078 = vld [vmem:[%s2047 + $0xf0] sm:$0xff]
  %v2079 = vld [vmem:[%s2047 + $0xf8] sm:$0xff]
  %v2112 = vunpack.c.l.b16 %v2048
  %v2113 = vunpack.c.h.b16 %v2048
  %v2114 = vunpack.c.l.b16 %v2049
  %v2115 = vunpack.c.h.b16 %v2049
  %v2116 = vunpack.c.l.b16 %v2050
  %v2117 = vunpack.c.h.b16 %v2050
  %v2118 = vunpack.c.l.b16 %v2051
  %v2119 = vunpack.c.h.b16 %v2051
  %v2120 = vunpack.c.l.b16 %v2052
  %v2121 = vunpack.c.h.b16 %v2052
  %v2122 = vunpack.c.l.b16 %v2053
  %v2123 = vunpack.c.h.b16 %v2053
  %v2124 = vunpack.c.l.b16 %v2054
  %v2125 = vunpack.c.h.b16 %v2054
  %v2126 = vunpack.c.l.b16 %v2055
  %v2127 = vunpack.c.h.b16 %v2055
  %v2128 = vunpack.c.l.b16 %v2056
  %v2129 = vunpack.c.h.b16 %v2056
  %v2130 = vunpack.c.l.b16 %v2057
  %v2131 = vunpack.c.h.b16 %v2057
  %v2132 = vunpack.c.l.b16 %v2058
  %v2133 = vunpack.c.h.b16 %v2058
  %v2134 = vunpack.c.l.b16 %v2059
  %v2135 = vunpack.c.h.b16 %v2059
  %v2136 = vunpack.c.l.b16 %v2060
  %v2137 = vunpack.c.h.b16 %v2060
  %v2138 = vunpack.c.l.b16 %v2061
  %v2139 = vunpack.c.h.b16 %v2061
  %v2140 = vunpack.c.l.b16 %v2062
  %v2141 = vunpack.c.h.b16 %v2062
  %v2142 = vunpack.c.l.b16 %v2063
  %v2143 = vunpack.c.h.b16 %v2063
  %v2144 = vunpack.c.l.b16 %v2064
  %v2145 = vunpack.c.h.b16 %v2064
  %v2146 = vunpack.c.l.b16 %v2065
  %v2147 = vunpack.c.h.b16 %v2065
  %v2148 = vunpack.c.l.b16 %v2066
  %v2149 = vunpack.c.h.b16 %v2066
  %v2150 = vunpack.c.l.b16 %v2067
  %v2151 = vunpack.c.h.b16 %v2067
  %v2152 = vunpack.c.l.b16 %v2068
  %v2153 = vunpack.c.h.b16 %v2068
  %v2154 = vunpack.c.l.b16 %v2069
  %v2155 = vunpack.c.h.b16 %v2069
  %v2156 = vunpack.c.l.b16 %v2070
  %v2157 = vunpack.c.h.b16 %v2070
  %v2158 = vunpack.c.l.b16 %v2071
  %v2159 = vunpack.c.h.b16 %v2071
  %v2160 = vunpack.c.l.b16 %v2072
  %v2161 = vunpack.c.h.b16 %v2072
  %v2162 = vunpack.c.l.b16 %v2073
  %v2163 = vunpack.c.h.b16 %v2073
  %v2164 = vunpack.c.l.b16 %v2074
  %v2165 = vunpack.c.h.b16 %v2074
  %v2166 = vunpack.c.l.b16 %v2075
  %v2167 = vunpack.c.h.b16 %v2075
  %v2168 = vunpack.c.l.b16 %v2076
  %v2169 = vunpack.c.h.b16 %v2076
  %v2170 = vunpack.c.l.b16 %v2077
  %v2171 = vunpack.c.h.b16 %v2077
  %v2172 = vunpack.c.l.b16 %v2078
  %v2173 = vunpack.c.h.b16 %v2078
  %v2174 = vunpack.c.l.b16 %v2079
  %v2175 = vunpack.c.h.b16 %v2079
  %v2176 = vpack.c.b16 %v2114, %v2112
  %v2177 = vpack.c.b16 %v2115, %v2113
  %v2178 = vpack.c.b16 %v2118, %v2116
  %v2179 = vpack.c.b16 %v2119, %v2117
  %v2180 = vpack.c.b16 %v2122, %v2120
  %v2181 = vpack.c.b16 %v2123, %v2121
  %v2182 = vpack.c.b16 %v2126, %v2124
  %v2183 = vpack.c.b16 %v2127, %v2125
  %v2184 = vpack.c.b16 %v2130, %v2128
  %v2185 = vpack.c.b16 %v2131, %v2129
  %v2186 = vpack.c.b16 %v2134, %v2132
  %v2187 = vpack.c.b16 %v2135, %v2133
  %v2188 = vpack.c.b16 %v2138, %v2136
  %v2189 = vpack.c.b16 %v2139, %v2137
  %v2190 = vpack.c.b16 %v2142, %v2140
  %v2191 = vpack.c.b16 %v2143, %v2141
  %v2192 = vpack.c.b16 %v2146, %v2144
  %v2193 = vpack.c.b16 %v2147, %v2145
  %v2194 = vpack.c.b16 %v2150, %v2148
  %v2195 = vpack.c.b16 %v2151, %v2149
  %v2196 = vpack.c.b16 %v2154, %v2152
  %v2197 = vpack.c.b16 %v2155, %v2153
  %v2198 = vpack.c.b16 %v2158, %v2156
  %v2199 = vpack.c.b16 %v2159, %v2157
  %v2200 = vpack.c.b16 %v2162, %v2160
  %v2201 = vpack.c.b16 %v2163, %v2161
  %v2202 = vpack.c.b16 %v2166, %v2164
  %v2203 = vpack.c.b16 %v2167, %v2165
  %v2204 = vpack.c.b16 %v2170, %v2168
  %v2205 = vpack.c.b16 %v2171, %v2169
  %v2206 = vpack.c.b16 %v2174, %v2172
  %v2207 = vpack.c.b16 %v2175, %v2173
  %2240 = vmatpush.bf16.msra.mxu0 %v2190
  %2241 = vmatpush.bf16.msra.mxu0 %v2188
  %2242 = vmatpush.bf16.msra.mxu0 %v2186
  %2243 = vmatpush.bf16.msra.mxu0 %v2184
  %2244 = vmatpush.bf16.msra.mxu0 %v2182
  %2245 = vmatpush.bf16.msra.mxu0 %v2180
  %2246 = vmatpush.bf16.msra.mxu0 %v2178
  %2247 = vmatpush.bf16.msra.mxu0 %v2176
  %2248 = vmatmul.bf16.gmra.mxu0 %v2043
  %v2249 = vpop.f32.mrf.mxu0
  %v2250 = vadd.f32 0.0, %v2249
  %v2251 = vpop.f32.mrf.mxu0
  %v2252 = vadd.f32 0.0, %v2251
  %2253 = vmatmul.bf16.gmra.mxu0 %v2045
  %v2254 = vpop.f32.mrf.mxu0
  %v2255 = vadd.f32 0.0, %v2254
  %v2256 = vpop.f32.mrf.mxu0
  %v2257 = vadd.f32 0.0, %v2256
  %2258 = vdwg.mxu0
  %2259 = vmatpush.bf16.msra.mxu0 %v2206
  %2260 = vmatpush.bf16.msra.mxu0 %v2204
  %2261 = vmatpush.bf16.msra.mxu0 %v2202
  %2262 = vmatpush.bf16.msra.mxu0 %v2200
  %2263 = vmatpush.bf16.msra.mxu0 %v2198
  %2264 = vmatpush.bf16.msra.mxu0 %v2196
  %2265 = vmatpush.bf16.msra.mxu0 %v2194
  %2266 = vmatpush.bf16.msra.mxu0 %v2192
  %2267 = vmatmul.bf16.gmra.mxu0 %v2044
  %v2268 = vpop.f32.mrf.mxu0
  %v2269 = vadd.f32 %v2250, %v2268
  %v2270 = vpop.f32.mrf.mxu0
  %v2271 = vadd.f32 %v2252, %v2270
  %2272 = vmatmul.bf16.gmra.mxu0 %v2046
  %v2273 = vpop.f32.mrf.mxu0
  %v2274 = vadd.f32 %v2255, %v2273
  %v2275 = vpop.f32.mrf.mxu0
  %v2276 = vadd.f32 %v2257, %v2275
  %2277 = vdwg.mxu0
  %2278 = vmatpush.bf16.msra.mxu0 %v2191
  %2279 = vmatpush.bf16.msra.mxu0 %v2189
  %2280 = vmatpush.bf16.msra.mxu0 %v2187
  %2281 = vmatpush.bf16.msra.mxu0 %v2185
  %2282 = vmatpush.bf16.msra.mxu0 %v2183
  %2283 = vmatpush.bf16.msra.mxu0 %v2181
  %2284 = vmatpush.bf16.msra.mxu0 %v2179
  %2285 = vmatpush.bf16.msra.mxu0 %v2177
  %2286 = vmatmul.bf16.gmra.mxu0 %v2043
  %v2287 = vpop.f32.mrf.mxu0
  %v2288 = vadd.f32 0.0, %v2287
  %v2289 = vpop.f32.mrf.mxu0
  %v2290 = vadd.f32 0.0, %v2289
  %2291 = vmatmul.bf16.gmra.mxu0 %v2045
  %v2292 = vpop.f32.mrf.mxu0
  %v2293 = vadd.f32 0.0, %v2292
  %v2294 = vpop.f32.mrf.mxu0
  %v2295 = vadd.f32 0.0, %v2294
  %2296 = vdwg.mxu0
  %2297 = vmatpush.bf16.msra.mxu0 %v2207
  %2298 = vmatpush.bf16.msra.mxu0 %v2205
  %2299 = vmatpush.bf16.msra.mxu0 %v2203
  %2300 = vmatpush.bf16.msra.mxu0 %v2201
  %2301 = vmatpush.bf16.msra.mxu0 %v2199
  %2302 = vmatpush.bf16.msra.mxu0 %v2197
  %2303 = vmatpush.bf16.msra.mxu0 %v2195
  %2304 = vmatpush.bf16.msra.mxu0 %v2193
  %2305 = vmatmul.bf16.gmra.mxu0 %v2044
  %v2306 = vpop.f32.mrf.mxu0
  %v2307 = vadd.f32 %v2288, %v2306
  %v2308 = vpop.f32.mrf.mxu0
  %v2309 = vadd.f32 %v2290, %v2308
  %2310 = vmatmul.bf16.gmra.mxu0 %v2046
  %v2311 = vpop.f32.mrf.mxu0
  %v2312 = vadd.f32 %v2293, %v2311
  %v2313 = vpop.f32.mrf.mxu0
  %v2314 = vadd.f32 %v2295, %v2313
  %2315 = vdwg.mxu0
  %v2348 = vunpack.c.l.b16 %v1952
  %v2349 = vunpack.c.h.b16 %v1952
  %v2350 = vunpack.c.l.b16 %v1953
  %v2351 = vunpack.c.h.b16 %v1953
  %v2352 = vunpack.c.l.b16 %v1954
  %v2353 = vunpack.c.h.b16 %v1954
  %v2354 = vunpack.c.l.b16 %v1955
  %v2355 = vunpack.c.h.b16 %v1955
  %v2356 = vunpack.c.l.b16 %v1956
  %v2357 = vunpack.c.h.b16 %v1956
  %v2358 = vunpack.c.l.b16 %v1957
  %v2359 = vunpack.c.h.b16 %v1957
  %v2360 = vunpack.c.l.b16 %v1958
  %v2361 = vunpack.c.h.b16 %v1958
  %v2362 = vunpack.c.l.b16 %v1959
  %v2363 = vunpack.c.h.b16 %v1959
  %v2364 = vunpack.c.l.b16 %v1960
  %v2365 = vunpack.c.h.b16 %v1960
  %v2366 = vunpack.c.l.b16 %v1961
  %v2367 = vunpack.c.h.b16 %v1961
  %v2368 = vunpack.c.l.b16 %v1962
  %v2369 = vunpack.c.h.b16 %v1962
  %v2370 = vunpack.c.l.b16 %v1963
  %v2371 = vunpack.c.h.b16 %v1963
  %v2372 = vunpack.c.l.b16 %v1964
  %v2373 = vunpack.c.h.b16 %v1964
  %v2374 = vunpack.c.l.b16 %v1965
  %v2375 = vunpack.c.h.b16 %v1965
  %v2376 = vunpack.c.l.b16 %v1966
  %v2377 = vunpack.c.h.b16 %v1966
  %v2378 = vunpack.c.l.b16 %v1967
  %v2379 = vunpack.c.h.b16 %v1967
  %v2380 = vunpack.c.l.b16 %v1968
  %v2381 = vunpack.c.h.b16 %v1968
  %v2382 = vunpack.c.l.b16 %v1969
  %v2383 = vunpack.c.h.b16 %v1969
  %v2384 = vunpack.c.l.b16 %v1970
  %v2385 = vunpack.c.h.b16 %v1970
  %v2386 = vunpack.c.l.b16 %v1971
  %v2387 = vunpack.c.h.b16 %v1971
  %v2388 = vunpack.c.l.b16 %v1972
  %v2389 = vunpack.c.h.b16 %v1972
  %v2390 = vunpack.c.l.b16 %v1973
  %v2391 = vunpack.c.h.b16 %v1973
  %v2392 = vunpack.c.l.b16 %v1974
  %v2393 = vunpack.c.h.b16 %v1974
  %v2394 = vunpack.c.l.b16 %v1975
  %v2395 = vunpack.c.h.b16 %v1975
  %v2396 = vunpack.c.l.b16 %v1976
  %v2397 = vunpack.c.h.b16 %v1976
  %v2398 = vunpack.c.l.b16 %v1977
  %v2399 = vunpack.c.h.b16 %v1977
  %v2400 = vunpack.c.l.b16 %v1978
  %v2401 = vunpack.c.h.b16 %v1978
  %v2402 = vunpack.c.l.b16 %v1979
  %v2403 = vunpack.c.h.b16 %v1979
  %v2404 = vunpack.c.l.b16 %v1980
  %v2405 = vunpack.c.h.b16 %v1980
  %v2406 = vunpack.c.l.b16 %v1981
  %v2407 = vunpack.c.h.b16 %v1981
  %v2408 = vunpack.c.l.b16 %v1982
  %v2409 = vunpack.c.h.b16 %v1982
  %v2410 = vunpack.c.l.b16 %v1983
  %v2411 = vunpack.c.h.b16 %v1983
  %v2412 = vpack.c.b16 %v2350, %v2348
  %v2413 = vpack.c.b16 %v2351, %v2349
  %v2414 = vpack.c.b16 %v2354, %v2352
  %v2415 = vpack.c.b16 %v2355, %v2353
  %v2416 = vpack.c.b16 %v2358, %v2356
  %v2417 = vpack.c.b16 %v2359, %v2357
  %v2418 = vpack.c.b16 %v2362, %v2360
  %v2419 = vpack.c.b16 %v2363, %v2361
  %v2420 = vpack.c.b16 %v2366, %v2364
  %v2421 = vpack.c.b16 %v2367, %v2365
  %v2422 = vpack.c.b16 %v2370, %v2368
  %v2423 = vpack.c.b16 %v2371, %v2369
  %v2424 = vpack.c.b16 %v2374, %v2372
  %v2425 = vpack.c.b16 %v2375, %v2373
  %v2426 = vpack.c.b16 %v2378, %v2376
  %v2427 = vpack.c.b16 %v2379, %v2377
  %v2428 = vpack.c.b16 %v2382, %v2380
  %v2429 = vpack.c.b16 %v2383, %v2381
  %v2430 = vpack.c.b16 %v2386, %v2384
  %v2431 = vpack.c.b16 %v2387, %v2385
  %v2432 = vpack.c.b16 %v2390, %v2388
  %v2433 = vpack.c.b16 %v2391, %v2389
  %v2434 = vpack.c.b16 %v2394, %v2392
  %v2435 = vpack.c.b16 %v2395, %v2393
  %v2436 = vpack.c.b16 %v2398, %v2396
  %v2437 = vpack.c.b16 %v2399, %v2397
  %v2438 = vpack.c.b16 %v2402, %v2400
  %v2439 = vpack.c.b16 %v2403, %v2401
  %v2440 = vpack.c.b16 %v2406, %v2404
  %v2441 = vpack.c.b16 %v2407, %v2405
  %v2442 = vpack.c.b16 %v2410, %v2408
  %v2443 = vpack.c.b16 %v2411, %v2409
  %2476 = vmatpush.bf16.msra.mxu0 %v2426
  %2477 = vmatpush.bf16.msra.mxu0 %v2424
  %2478 = vmatpush.bf16.msra.mxu0 %v2422
  %2479 = vmatpush.bf16.msra.mxu0 %v2420
  %2480 = vmatpush.bf16.msra.mxu0 %v2418
  %2481 = vmatpush.bf16.msra.mxu0 %v2416
  %2482 = vmatpush.bf16.msra.mxu0 %v2414
  %2483 = vmatpush.bf16.msra.mxu0 %v2412
  %2484 = vmatmul.bf16.gmra.mxu0 %v1948
  %v2485 = vpop.f32.mrf.mxu0
  %v2486 = vadd.f32 %v2269, %v2485
  %v2487 = vpop.f32.mrf.mxu0
  %v2488 = vadd.f32 %v2271, %v2487
  %2489 = vmatmul.bf16.gmra.mxu0 %v1950
  %v2490 = vpop.f32.mrf.mxu0
  %v2491 = vadd.f32 %v2274, %v2490
  %v2492 = vpop.f32.mrf.mxu0
  %v2493 = vadd.f32 %v2276, %v2492
  %2494 = vdwg.mxu0
  %2495 = vmatpush.bf16.msra.mxu0 %v2442
  %2496 = vmatpush.bf16.msra.mxu0 %v2440
  %2497 = vmatpush.bf16.msra.mxu0 %v2438
  %2498 = vmatpush.bf16.msra.mxu0 %v2436
  %2499 = vmatpush.bf16.msra.mxu0 %v2434
  %2500 = vmatpush.bf16.msra.mxu0 %v2432
  %2501 = vmatpush.bf16.msra.mxu0 %v2430
  %2502 = vmatpush.bf16.msra.mxu0 %v2428
  %2503 = vmatmul.bf16.gmra.mxu0 %v1949
  %v2504 = vpop.f32.mrf.mxu0
  %v2505 = vadd.f32 %v2486, %v2504
  %v2506 = vpop.f32.mrf.mxu0
  %v2507 = vadd.f32 %v2488, %v2506
  %2508 = vmatmul.bf16.gmra.mxu0 %v1951
  %v2509 = vpop.f32.mrf.mxu0
  %v2510 = vadd.f32 %v2491, %v2509
  %v2511 = vpop.f32.mrf.mxu0
  %v2512 = vadd.f32 %v2493, %v2511
  %2513 = vdwg.mxu0
  %2514 = vmatpush.bf16.msra.mxu0 %v2427
  %2515 = vmatpush.bf16.msra.mxu0 %v2425
  %2516 = vmatpush.bf16.msra.mxu0 %v2423
  %2517 = vmatpush.bf16.msra.mxu0 %v2421
  %2518 = vmatpush.bf16.msra.mxu0 %v2419
  %2519 = vmatpush.bf16.msra.mxu0 %v2417
  %2520 = vmatpush.bf16.msra.mxu0 %v2415
  %2521 = vmatpush.bf16.msra.mxu0 %v2413
  %2522 = vmatmul.bf16.gmra.mxu0 %v1948
  %v2523 = vpop.f32.mrf.mxu0
  %v2524 = vadd.f32 %v2307, %v2523
  %v2525 = vpop.f32.mrf.mxu0
  %v2526 = vadd.f32 %v2309, %v2525
  %2527 = vmatmul.bf16.gmra.mxu0 %v1950
  %v2528 = vpop.f32.mrf.mxu0
  %v2529 = vadd.f32 %v2312, %v2528
  %v2530 = vpop.f32.mrf.mxu0
  %v2531 = vadd.f32 %v2314, %v2530
  %2532 = vdwg.mxu0
  %2533 = vmatpush.bf16.msra.mxu0 %v2443
  %2534 = vmatpush.bf16.msra.mxu0 %v2441
  %2535 = vmatpush.bf16.msra.mxu0 %v2439
  %2536 = vmatpush.bf16.msra.mxu0 %v2437
  %2537 = vmatpush.bf16.msra.mxu0 %v2435
  %2538 = vmatpush.bf16.msra.mxu0 %v2433
  %2539 = vmatpush.bf16.msra.mxu0 %v2431
  %2540 = vmatpush.bf16.msra.mxu0 %v2429
  %2541 = vmatmul.bf16.gmra.mxu0 %v1949
  %v2542 = vpop.f32.mrf.mxu0
  %v2543 = vadd.f32 %v2524, %v2542
  %v2544 = vpop.f32.mrf.mxu0
  %v2545 = vadd.f32 %v2526, %v2544
  %2546 = vmatmul.bf16.gmra.mxu0 %v1951
  %v2547 = vpop.f32.mrf.mxu0
  %v2548 = vadd.f32 %v2529, %v2547
  %v2549 = vpop.f32.mrf.mxu0
  %v2550 = vadd.f32 %v2531, %v2549
  %2551 = vdwg.mxu0
  %s2552 = scalar_lea.vmem %s3, 32
  %v2553 = vld [vmem:[%s2552] sm:$0xf]
  %v2554 = vld [vmem:[%s2552 + $0x4] sm:$0xf]
  %v2555 = vld [vmem:[%s2552 + $0x8] sm:$0xf]
  %v2556 = vld [vmem:[%s2552 + $0xc] sm:$0xf]
  %v2561 = vunpack.c.l.b16 %v2553
  %v2562 = vunpack.c.l.b16 %v2554
  %v2563 = vunpack.c.l.b16 %v2555
  %v2564 = vunpack.c.l.b16 %v2556
  %v2565 = vpack.c.b16 %v2562, %v2561
  %v2566 = vpack.c.b16 %v2564, %v2563
  %v2568 = vsel %vm1903, %v2565, 0
  %v2571 = vsel %vm1903, %v2566, 0
  %2573 = vmatpush.bf16.msra.mxu0 0
  %2574 = vmatpush.bf16.msra.mxu0 0
  %2575 = vmatpush.bf16.msra.mxu0 0
  %2576 = vmatpush.bf16.msra.mxu0 0
  %2577 = vmatpush.bf16.msra.mxu0 %v1887
  %2578 = vmatpush.bf16.msra.mxu0 %v1885
  %2579 = vmatpush.bf16.msra.mxu0 %v1883
  %2580 = vmatpush.bf16.msra.mxu0 %v1881
  %2581 = vmatmul.bf16.gmra.mxu0 %v2568
  %v2582 = vpop.f32.mrf.mxu0
  %v2583 = vadd.f32 0.0, %v2582
  %v2584 = vpop.f32.mrf.mxu0
  %v2585 = vadd.f32 0.0, %v2584
  %2586 = vmatmul.bf16.gmra.mxu0 %v2571
  %v2587 = vpop.f32.mrf.mxu0
  %v2588 = vadd.f32 0.0, %v2587
  %v2589 = vpop.f32.mrf.mxu0
  %v2590 = vadd.f32 0.0, %v2589
  %2591 = vdwg.mxu0
  %2592 = vmatpush.bf16.msra.mxu0 0
  %2593 = vmatpush.bf16.msra.mxu0 0
  %2594 = vmatpush.bf16.msra.mxu0 0
  %2595 = vmatpush.bf16.msra.mxu0 0
  %2596 = vmatpush.bf16.msra.mxu0 %v1888
  %2597 = vmatpush.bf16.msra.mxu0 %v1886
  %2598 = vmatpush.bf16.msra.mxu0 %v1884
  %2599 = vmatpush.bf16.msra.mxu0 %v1882
  %2600 = vmatmul.bf16.gmra.mxu0 %v2568
  %v2601 = vpop.f32.mrf.mxu0
  %v2602 = vadd.f32 0.0, %v2601
  %v2603 = vpop.f32.mrf.mxu0
  %v2604 = vadd.f32 0.0, %v2603
  %2605 = vmatmul.bf16.gmra.mxu0 %v2571
  %v2606 = vpop.f32.mrf.mxu0
  %v2607 = vadd.f32 0.0, %v2606
  %v2608 = vpop.f32.mrf.mxu0
  %v2609 = vadd.f32 0.0, %v2608
  %2610 = vdwg.mxu0
  %v2611 = vpack.c.bf16 %v2585, %v2583
  %v2612 = vpack.c.bf16 %v2604, %v2602
  %v2613 = vpack.c.bf16 %v2590, %v2588
  %v2614 = vpack.c.bf16 %v2609, %v2607
  %s2615 = scalar_lea.vmem %s4, 512
  %v2616 = vld [vmem:[%s2615] sm:$0xff]
  %v2617 = vld [vmem:[%s2615 + $0x8] sm:$0xff]
  %v2618 = vld [vmem:[%s2615 + $0x10] sm:$0xff]
  %v2619 = vld [vmem:[%s2615 + $0x18] sm:$0xff]
  %v2620 = vld [vmem:[%s2615 + $0x20] sm:$0xff]
  %v2621 = vld [vmem:[%s2615 + $0x28] sm:$0xff]
  %v2622 = vld [vmem:[%s2615 + $0x30] sm:$0xff]
  %v2623 = vld [vmem:[%s2615 + $0x38] sm:$0xff]
  %v2624 = vld [vmem:[%s2615 + $0x40] sm:$0xff]
  %v2625 = vld [vmem:[%s2615 + $0x48] sm:$0xff]
  %v2626 = vld [vmem:[%s2615 + $0x50] sm:$0xff]
  %v2627 = vld [vmem:[%s2615 + $0x58] sm:$0xff]
  %v2628 = vld [vmem:[%s2615 + $0x60] sm:$0xff]
  %v2629 = vld [vmem:[%s2615 + $0x68] sm:$0xff]
  %v2630 = vld [vmem:[%s2615 + $0x70] sm:$0xff]
  %v2631 = vld [vmem:[%s2615 + $0x78] sm:$0xff]
  %v2632 = vld [vmem:[%s2615 + $0x80] sm:$0xff]
  %v2633 = vld [vmem:[%s2615 + $0x88] sm:$0xff]
  %v2634 = vld [vmem:[%s2615 + $0x90] sm:$0xff]
  %v2635 = vld [vmem:[%s2615 + $0x98] sm:$0xff]
  %v2636 = vld [vmem:[%s2615 + $0xa0] sm:$0xff]
  %v2637 = vld [vmem:[%s2615 + $0xa8] sm:$0xff]
  %v2638 = vld [vmem:[%s2615 + $0xb0] sm:$0xff]
  %v2639 = vld [vmem:[%s2615 + $0xb8] sm:$0xff]
  %v2640 = vld [vmem:[%s2615 + $0xc0] sm:$0xff]
  %v2641 = vld [vmem:[%s2615 + $0xc8] sm:$0xff]
  %v2642 = vld [vmem:[%s2615 + $0xd0] sm:$0xff]
  %v2643 = vld [vmem:[%s2615 + $0xd8] sm:$0xff]
  %v2644 = vld [vmem:[%s2615 + $0xe0] sm:$0xff]
  %v2645 = vld [vmem:[%s2615 + $0xe8] sm:$0xff]
  %v2646 = vld [vmem:[%s2615 + $0xf0] sm:$0xff]
  %v2647 = vld [vmem:[%s2615 + $0xf8] sm:$0xff]
  %v2680 = vunpack.c.l.b16 %v2616
  %v2681 = vunpack.c.h.b16 %v2616
  %v2682 = vunpack.c.l.b16 %v2617
  %v2683 = vunpack.c.h.b16 %v2617
  %v2684 = vunpack.c.l.b16 %v2618
  %v2685 = vunpack.c.h.b16 %v2618
  %v2686 = vunpack.c.l.b16 %v2619
  %v2687 = vunpack.c.h.b16 %v2619
  %v2688 = vunpack.c.l.b16 %v2620
  %v2689 = vunpack.c.h.b16 %v2620
  %v2690 = vunpack.c.l.b16 %v2621
  %v2691 = vunpack.c.h.b16 %v2621
  %v2692 = vunpack.c.l.b16 %v2622
  %v2693 = vunpack.c.h.b16 %v2622
  %v2694 = vunpack.c.l.b16 %v2623
  %v2695 = vunpack.c.h.b16 %v2623
  %v2696 = vunpack.c.l.b16 %v2624
  %v2697 = vunpack.c.h.b16 %v2624
  %v2698 = vunpack.c.l.b16 %v2625
  %v2699 = vunpack.c.h.b16 %v2625
  %v2700 = vunpack.c.l.b16 %v2626
  %v2701 = vunpack.c.h.b16 %v2626
  %v2702 = vunpack.c.l.b16 %v2627
  %v2703 = vunpack.c.h.b16 %v2627
  %v2704 = vunpack.c.l.b16 %v2628
  %v2705 = vunpack.c.h.b16 %v2628
  %v2706 = vunpack.c.l.b16 %v2629
  %v2707 = vunpack.c.h.b16 %v2629
  %v2708 = vunpack.c.l.b16 %v2630
  %v2709 = vunpack.c.h.b16 %v2630
  %v2710 = vunpack.c.l.b16 %v2631
  %v2711 = vunpack.c.h.b16 %v2631
  %v2712 = vunpack.c.l.b16 %v2632
  %v2713 = vunpack.c.h.b16 %v2632
  %v2714 = vunpack.c.l.b16 %v2633
  %v2715 = vunpack.c.h.b16 %v2633
  %v2716 = vunpack.c.l.b16 %v2634
  %v2717 = vunpack.c.h.b16 %v2634
  %v2718 = vunpack.c.l.b16 %v2635
  %v2719 = vunpack.c.h.b16 %v2635
  %v2720 = vunpack.c.l.b16 %v2636
  %v2721 = vunpack.c.h.b16 %v2636
  %v2722 = vunpack.c.l.b16 %v2637
  %v2723 = vunpack.c.h.b16 %v2637
  %v2724 = vunpack.c.l.b16 %v2638
  %v2725 = vunpack.c.h.b16 %v2638
  %v2726 = vunpack.c.l.b16 %v2639
  %v2727 = vunpack.c.h.b16 %v2639
  %v2728 = vunpack.c.l.b16 %v2640
  %v2729 = vunpack.c.h.b16 %v2640
  %v2730 = vunpack.c.l.b16 %v2641
  %v2731 = vunpack.c.h.b16 %v2641
  %v2732 = vunpack.c.l.b16 %v2642
  %v2733 = vunpack.c.h.b16 %v2642
  %v2734 = vunpack.c.l.b16 %v2643
  %v2735 = vunpack.c.h.b16 %v2643
  %v2736 = vunpack.c.l.b16 %v2644
  %v2737 = vunpack.c.h.b16 %v2644
  %v2738 = vunpack.c.l.b16 %v2645
  %v2739 = vunpack.c.h.b16 %v2645
  %v2740 = vunpack.c.l.b16 %v2646
  %v2741 = vunpack.c.h.b16 %v2646
  %v2742 = vunpack.c.l.b16 %v2647
  %v2743 = vunpack.c.h.b16 %v2647
  %v2744 = vpack.c.b16 %v2682, %v2680
  %v2745 = vpack.c.b16 %v2683, %v2681
  %v2746 = vpack.c.b16 %v2686, %v2684
  %v2747 = vpack.c.b16 %v2687, %v2685
  %v2748 = vpack.c.b16 %v2690, %v2688
  %v2749 = vpack.c.b16 %v2691, %v2689
  %v2750 = vpack.c.b16 %v2694, %v2692
  %v2751 = vpack.c.b16 %v2695, %v2693
  %v2752 = vpack.c.b16 %v2698, %v2696
  %v2753 = vpack.c.b16 %v2699, %v2697
  %v2754 = vpack.c.b16 %v2702, %v2700
  %v2755 = vpack.c.b16 %v2703, %v2701
  %v2756 = vpack.c.b16 %v2706, %v2704
  %v2757 = vpack.c.b16 %v2707, %v2705
  %v2758 = vpack.c.b16 %v2710, %v2708
  %v2759 = vpack.c.b16 %v2711, %v2709
  %v2760 = vpack.c.b16 %v2714, %v2712
  %v2761 = vpack.c.b16 %v2715, %v2713
  %v2762 = vpack.c.b16 %v2718, %v2716
  %v2763 = vpack.c.b16 %v2719, %v2717
  %v2764 = vpack.c.b16 %v2722, %v2720
  %v2765 = vpack.c.b16 %v2723, %v2721
  %v2766 = vpack.c.b16 %v2726, %v2724
  %v2767 = vpack.c.b16 %v2727, %v2725
  %v2768 = vpack.c.b16 %v2730, %v2728
  %v2769 = vpack.c.b16 %v2731, %v2729
  %v2770 = vpack.c.b16 %v2734, %v2732
  %v2771 = vpack.c.b16 %v2735, %v2733
  %v2772 = vpack.c.b16 %v2738, %v2736
  %v2773 = vpack.c.b16 %v2739, %v2737
  %v2774 = vpack.c.b16 %v2742, %v2740
  %v2775 = vpack.c.b16 %v2743, %v2741
  %2808 = vmatpush.bf16.msra.mxu0 %v2758
  %2809 = vmatpush.bf16.msra.mxu0 %v2756
  %2810 = vmatpush.bf16.msra.mxu0 %v2754
  %2811 = vmatpush.bf16.msra.mxu0 %v2752
  %2812 = vmatpush.bf16.msra.mxu0 %v2750
  %2813 = vmatpush.bf16.msra.mxu0 %v2748
  %2814 = vmatpush.bf16.msra.mxu0 %v2746
  %2815 = vmatpush.bf16.msra.mxu0 %v2744
  %2816 = vmatmul.bf16.gmra.mxu0 %v2611
  %v2817 = vpop.f32.mrf.mxu0
  %v2818 = vadd.f32 0.0, %v2817
  %v2819 = vpop.f32.mrf.mxu0
  %v2820 = vadd.f32 0.0, %v2819
  %2821 = vmatmul.bf16.gmra.mxu0 %v2613
  %v2822 = vpop.f32.mrf.mxu0
  %v2823 = vadd.f32 0.0, %v2822
  %v2824 = vpop.f32.mrf.mxu0
  %v2825 = vadd.f32 0.0, %v2824
  %2826 = vdwg.mxu0
  %2827 = vmatpush.bf16.msra.mxu0 %v2774
  %2828 = vmatpush.bf16.msra.mxu0 %v2772
  %2829 = vmatpush.bf16.msra.mxu0 %v2770
  %2830 = vmatpush.bf16.msra.mxu0 %v2768
  %2831 = vmatpush.bf16.msra.mxu0 %v2766
  %2832 = vmatpush.bf16.msra.mxu0 %v2764
  %2833 = vmatpush.bf16.msra.mxu0 %v2762
  %2834 = vmatpush.bf16.msra.mxu0 %v2760
  %2835 = vmatmul.bf16.gmra.mxu0 %v2612
  %v2836 = vpop.f32.mrf.mxu0
  %v2837 = vadd.f32 %v2818, %v2836
  %v2838 = vpop.f32.mrf.mxu0
  %v2839 = vadd.f32 %v2820, %v2838
  %2840 = vmatmul.bf16.gmra.mxu0 %v2614
  %v2841 = vpop.f32.mrf.mxu0
  %v2842 = vadd.f32 %v2823, %v2841
  %v2843 = vpop.f32.mrf.mxu0
  %v2844 = vadd.f32 %v2825, %v2843
  %2845 = vdwg.mxu0
  %2846 = vmatpush.bf16.msra.mxu0 %v2759
  %2847 = vmatpush.bf16.msra.mxu0 %v2757
  %2848 = vmatpush.bf16.msra.mxu0 %v2755
  %2849 = vmatpush.bf16.msra.mxu0 %v2753
  %2850 = vmatpush.bf16.msra.mxu0 %v2751
  %2851 = vmatpush.bf16.msra.mxu0 %v2749
  %2852 = vmatpush.bf16.msra.mxu0 %v2747
  %2853 = vmatpush.bf16.msra.mxu0 %v2745
  %2854 = vmatmul.bf16.gmra.mxu0 %v2611
  %v2855 = vpop.f32.mrf.mxu0
  %v2856 = vadd.f32 0.0, %v2855
  %v2857 = vpop.f32.mrf.mxu0
  %v2858 = vadd.f32 0.0, %v2857
  %2859 = vmatmul.bf16.gmra.mxu0 %v2613
  %v2860 = vpop.f32.mrf.mxu0
  %v2861 = vadd.f32 0.0, %v2860
  %v2862 = vpop.f32.mrf.mxu0
  %v2863 = vadd.f32 0.0, %v2862
  %2864 = vdwg.mxu0
  %2865 = vmatpush.bf16.msra.mxu0 %v2775
  %2866 = vmatpush.bf16.msra.mxu0 %v2773
  %2867 = vmatpush.bf16.msra.mxu0 %v2771
  %2868 = vmatpush.bf16.msra.mxu0 %v2769
  %2869 = vmatpush.bf16.msra.mxu0 %v2767
  %2870 = vmatpush.bf16.msra.mxu0 %v2765
  %2871 = vmatpush.bf16.msra.mxu0 %v2763
  %2872 = vmatpush.bf16.msra.mxu0 %v2761
  %2873 = vmatmul.bf16.gmra.mxu0 %v2612
  %v2874 = vpop.f32.mrf.mxu0
  %v2875 = vadd.f32 %v2856, %v2874
  %v2876 = vpop.f32.mrf.mxu0
  %v2877 = vadd.f32 %v2858, %v2876
  %2878 = vmatmul.bf16.gmra.mxu0 %v2614
  %v2879 = vpop.f32.mrf.mxu0
  %v2880 = vadd.f32 %v2861, %v2879
  %v2881 = vpop.f32.mrf.mxu0
  %v2882 = vadd.f32 %v2863, %v2881
  %2883 = vdwg.mxu0
  %v2884 = vadd.f32 %v2505, %v2837
  %v2885 = vadd.f32 %v2543, %v2875
  %v2886 = vadd.f32 %v2507, %v2839
  %v2887 = vadd.f32 %v2545, %v2877
  %v2888 = vadd.f32 %v2510, %v2842
  %v2889 = vadd.f32 %v2548, %v2880
  %v2890 = vadd.f32 %v2512, %v2844
  %v2891 = vadd.f32 %v2550, %v2882
  %s2892 = scalar_lea.vmem %s3, 48
  %v2893 = vld [vmem:[%s2892] sm:$0xf]
  %v2894 = vld [vmem:[%s2892 + $0x4] sm:$0xf]
  %v2895 = vld [vmem:[%s2892 + $0x8] sm:$0xf]
  %v2896 = vld [vmem:[%s2892 + $0xc] sm:$0xf]
  %v2901 = vunpack.c.l.b16 %v2893
  %v2902 = vunpack.c.l.b16 %v2894
  %v2903 = vunpack.c.l.b16 %v2895
  %v2904 = vunpack.c.l.b16 %v2896
  %v2905 = vpack.c.b16 %v2902, %v2901
  %v2906 = vpack.c.b16 %v2904, %v2903
  %v2908 = vsel %vm1903, %v2905, 0
  %v2911 = vsel %vm1903, %v2906, 0
  %2913 = vmatpush.bf16.msra.mxu0 0
  %2914 = vmatpush.bf16.msra.mxu0 0
  %2915 = vmatpush.bf16.msra.mxu0 0
  %2916 = vmatpush.bf16.msra.mxu0 0
  %2917 = vmatpush.bf16.msra.mxu0 %v1887
  %2918 = vmatpush.bf16.msra.mxu0 %v1885
  %2919 = vmatpush.bf16.msra.mxu0 %v1883
  %2920 = vmatpush.bf16.msra.mxu0 %v1881
  %2921 = vmatmul.bf16.gmra.mxu0 %v2908
  %v2922 = vpop.f32.mrf.mxu0
  %v2923 = vadd.f32 0.0, %v2922
  %v2924 = vpop.f32.mrf.mxu0
  %v2925 = vadd.f32 0.0, %v2924
  %2926 = vmatmul.bf16.gmra.mxu0 %v2911
  %v2927 = vpop.f32.mrf.mxu0
  %v2928 = vadd.f32 0.0, %v2927
  %v2929 = vpop.f32.mrf.mxu0
  %v2930 = vadd.f32 0.0, %v2929
  %2931 = vdwg.mxu0
  %2932 = vmatpush.bf16.msra.mxu0 0
  %2933 = vmatpush.bf16.msra.mxu0 0
  %2934 = vmatpush.bf16.msra.mxu0 0
  %2935 = vmatpush.bf16.msra.mxu0 0
  %2936 = vmatpush.bf16.msra.mxu0 %v1888
  %2937 = vmatpush.bf16.msra.mxu0 %v1886
  %2938 = vmatpush.bf16.msra.mxu0 %v1884
  %2939 = vmatpush.bf16.msra.mxu0 %v1882
  %2940 = vmatmul.bf16.gmra.mxu0 %v2908
  %v2941 = vpop.f32.mrf.mxu0
  %v2942 = vadd.f32 0.0, %v2941
  %v2943 = vpop.f32.mrf.mxu0
  %v2944 = vadd.f32 0.0, %v2943
  %2945 = vmatmul.bf16.gmra.mxu0 %v2911
  %v2946 = vpop.f32.mrf.mxu0
  %v2947 = vadd.f32 0.0, %v2946
  %v2948 = vpop.f32.mrf.mxu0
  %v2949 = vadd.f32 0.0, %v2948
  %2950 = vdwg.mxu0
  %v2951 = vpack.c.bf16 %v2925, %v2923
  %v2952 = vpack.c.bf16 %v2944, %v2942
  %v2953 = vpack.c.bf16 %v2930, %v2928
  %v2954 = vpack.c.bf16 %v2949, %v2947
  %s2955 = scalar_lea.vmem %s4, 768
  %v2956 = vld [vmem:[%s2955] sm:$0xff]
  %v2957 = vld [vmem:[%s2955 + $0x8] sm:$0xff]
  %v2958 = vld [vmem:[%s2955 + $0x10] sm:$0xff]
  %v2959 = vld [vmem:[%s2955 + $0x18] sm:$0xff]
  %v2960 = vld [vmem:[%s2955 + $0x20] sm:$0xff]
  %v2961 = vld [vmem:[%s2955 + $0x28] sm:$0xff]
  %v2962 = vld [vmem:[%s2955 + $0x30] sm:$0xff]
  %v2963 = vld [vmem:[%s2955 + $0x38] sm:$0xff]
  %v2964 = vld [vmem:[%s2955 + $0x40] sm:$0xff]
  %v2965 = vld [vmem:[%s2955 + $0x48] sm:$0xff]
  %v2966 = vld [vmem:[%s2955 + $0x50] sm:$0xff]
  %v2967 = vld [vmem:[%s2955 + $0x58] sm:$0xff]
  %v2968 = vld [vmem:[%s2955 + $0x60] sm:$0xff]
  %v2969 = vld [vmem:[%s2955 + $0x68] sm:$0xff]
  %v2970 = vld [vmem:[%s2955 + $0x70] sm:$0xff]
  %v2971 = vld [vmem:[%s2955 + $0x78] sm:$0xff]
  %v2972 = vld [vmem:[%s2955 + $0x80] sm:$0xff]
  %v2973 = vld [vmem:[%s2955 + $0x88] sm:$0xff]
  %v2974 = vld [vmem:[%s2955 + $0x90] sm:$0xff]
  %v2975 = vld [vmem:[%s2955 + $0x98] sm:$0xff]
  %v2976 = vld [vmem:[%s2955 + $0xa0] sm:$0xff]
  %v2977 = vld [vmem:[%s2955 + $0xa8] sm:$0xff]
  %v2978 = vld [vmem:[%s2955 + $0xb0] sm:$0xff]
  %v2979 = vld [vmem:[%s2955 + $0xb8] sm:$0xff]
  %v2980 = vld [vmem:[%s2955 + $0xc0] sm:$0xff]
  %v2981 = vld [vmem:[%s2955 + $0xc8] sm:$0xff]
  %v2982 = vld [vmem:[%s2955 + $0xd0] sm:$0xff]
  %v2983 = vld [vmem:[%s2955 + $0xd8] sm:$0xff]
  %v2984 = vld [vmem:[%s2955 + $0xe0] sm:$0xff]
  %v2985 = vld [vmem:[%s2955 + $0xe8] sm:$0xff]
  %v2986 = vld [vmem:[%s2955 + $0xf0] sm:$0xff]
  %v2987 = vld [vmem:[%s2955 + $0xf8] sm:$0xff]
  %v3020 = vunpack.c.l.b16 %v2956
  %v3021 = vunpack.c.h.b16 %v2956
  %v3022 = vunpack.c.l.b16 %v2957
  %v3023 = vunpack.c.h.b16 %v2957
  %v3024 = vunpack.c.l.b16 %v2958
  %v3025 = vunpack.c.h.b16 %v2958
  %v3026 = vunpack.c.l.b16 %v2959
  %v3027 = vunpack.c.h.b16 %v2959
  %v3028 = vunpack.c.l.b16 %v2960
  %v3029 = vunpack.c.h.b16 %v2960
  %v3030 = vunpack.c.l.b16 %v2961
  %v3031 = vunpack.c.h.b16 %v2961
  %v3032 = vunpack.c.l.b16 %v2962
  %v3033 = vunpack.c.h.b16 %v2962
  %v3034 = vunpack.c.l.b16 %v2963
  %v3035 = vunpack.c.h.b16 %v2963
  %v3036 = vunpack.c.l.b16 %v2964
  %v3037 = vunpack.c.h.b16 %v2964
  %v3038 = vunpack.c.l.b16 %v2965
  %v3039 = vunpack.c.h.b16 %v2965
  %v3040 = vunpack.c.l.b16 %v2966
  %v3041 = vunpack.c.h.b16 %v2966
  %v3042 = vunpack.c.l.b16 %v2967
  %v3043 = vunpack.c.h.b16 %v2967
  %v3044 = vunpack.c.l.b16 %v2968
  %v3045 = vunpack.c.h.b16 %v2968
  %v3046 = vunpack.c.l.b16 %v2969
  %v3047 = vunpack.c.h.b16 %v2969
  %v3048 = vunpack.c.l.b16 %v2970
  %v3049 = vunpack.c.h.b16 %v2970
  %v3050 = vunpack.c.l.b16 %v2971
  %v3051 = vunpack.c.h.b16 %v2971
  %v3052 = vunpack.c.l.b16 %v2972
  %v3053 = vunpack.c.h.b16 %v2972
  %v3054 = vunpack.c.l.b16 %v2973
  %v3055 = vunpack.c.h.b16 %v2973
  %v3056 = vunpack.c.l.b16 %v2974
  %v3057 = vunpack.c.h.b16 %v2974
  %v3058 = vunpack.c.l.b16 %v2975
  %v3059 = vunpack.c.h.b16 %v2975
  %v3060 = vunpack.c.l.b16 %v2976
  %v3061 = vunpack.c.h.b16 %v2976
  %v3062 = vunpack.c.l.b16 %v2977
  %v3063 = vunpack.c.h.b16 %v2977
  %v3064 = vunpack.c.l.b16 %v2978
  %v3065 = vunpack.c.h.b16 %v2978
  %v3066 = vunpack.c.l.b16 %v2979
  %v3067 = vunpack.c.h.b16 %v2979
  %v3068 = vunpack.c.l.b16 %v2980
  %v3069 = vunpack.c.h.b16 %v2980
  %v3070 = vunpack.c.l.b16 %v2981
  %v3071 = vunpack.c.h.b16 %v2981
  %v3072 = vunpack.c.l.b16 %v2982
  %v3073 = vunpack.c.h.b16 %v2982
  %v3074 = vunpack.c.l.b16 %v2983
  %v3075 = vunpack.c.h.b16 %v2983
  %v3076 = vunpack.c.l.b16 %v2984
  %v3077 = vunpack.c.h.b16 %v2984
  %v3078 = vunpack.c.l.b16 %v2985
  %v3079 = vunpack.c.h.b16 %v2985
  %v3080 = vunpack.c.l.b16 %v2986
  %v3081 = vunpack.c.h.b16 %v2986
  %v3082 = vunpack.c.l.b16 %v2987
  %v3083 = vunpack.c.h.b16 %v2987
  %v3084 = vpack.c.b16 %v3022, %v3020
  %v3085 = vpack.c.b16 %v3023, %v3021
  %v3086 = vpack.c.b16 %v3026, %v3024
  %v3087 = vpack.c.b16 %v3027, %v3025
  %v3088 = vpack.c.b16 %v3030, %v3028
  %v3089 = vpack.c.b16 %v3031, %v3029
  %v3090 = vpack.c.b16 %v3034, %v3032
  %v3091 = vpack.c.b16 %v3035, %v3033
  %v3092 = vpack.c.b16 %v3038, %v3036
  %v3093 = vpack.c.b16 %v3039, %v3037
  %v3094 = vpack.c.b16 %v3042, %v3040
  %v3095 = vpack.c.b16 %v3043, %v3041
  %v3096 = vpack.c.b16 %v3046, %v3044
  %v3097 = vpack.c.b16 %v3047, %v3045
  %v3098 = vpack.c.b16 %v3050, %v3048
  %v3099 = vpack.c.b16 %v3051, %v3049
  %v3100 = vpack.c.b16 %v3054, %v3052
  %v3101 = vpack.c.b16 %v3055, %v3053
  %v3102 = vpack.c.b16 %v3058, %v3056
  %v3103 = vpack.c.b16 %v3059, %v3057
  %v3104 = vpack.c.b16 %v3062, %v3060
  %v3105 = vpack.c.b16 %v3063, %v3061
  %v3106 = vpack.c.b16 %v3066, %v3064
  %v3107 = vpack.c.b16 %v3067, %v3065
  %v3108 = vpack.c.b16 %v3070, %v3068
  %v3109 = vpack.c.b16 %v3071, %v3069
  %v3110 = vpack.c.b16 %v3074, %v3072
  %v3111 = vpack.c.b16 %v3075, %v3073
  %v3112 = vpack.c.b16 %v3078, %v3076
  %v3113 = vpack.c.b16 %v3079, %v3077
  %v3114 = vpack.c.b16 %v3082, %v3080
  %v3115 = vpack.c.b16 %v3083, %v3081
  %3148 = vmatpush.bf16.msra.mxu0 %v3098
  %3149 = vmatpush.bf16.msra.mxu0 %v3096
  %3150 = vmatpush.bf16.msra.mxu0 %v3094
  %3151 = vmatpush.bf16.msra.mxu0 %v3092
  %3152 = vmatpush.bf16.msra.mxu0 %v3090
  %3153 = vmatpush.bf16.msra.mxu0 %v3088
  %3154 = vmatpush.bf16.msra.mxu0 %v3086
  %3155 = vmatpush.bf16.msra.mxu0 %v3084
  %3156 = vmatmul.bf16.gmra.mxu0 %v2951
  %v3157 = vpop.f32.mrf.mxu0
  %v3158 = vadd.f32 0.0, %v3157
  %v3159 = vpop.f32.mrf.mxu0
  %v3160 = vadd.f32 0.0, %v3159
  %3161 = vmatmul.bf16.gmra.mxu0 %v2953
  %v3162 = vpop.f32.mrf.mxu0
  %v3163 = vadd.f32 0.0, %v3162
  %v3164 = vpop.f32.mrf.mxu0
  %v3165 = vadd.f32 0.0, %v3164
  %3166 = vdwg.mxu0
  %3167 = vmatpush.bf16.msra.mxu0 %v3114
  %3168 = vmatpush.bf16.msra.mxu0 %v3112
  %3169 = vmatpush.bf16.msra.mxu0 %v3110
  %3170 = vmatpush.bf16.msra.mxu0 %v3108
  %3171 = vmatpush.bf16.msra.mxu0 %v3106
  %3172 = vmatpush.bf16.msra.mxu0 %v3104
  %3173 = vmatpush.bf16.msra.mxu0 %v3102
  %3174 = vmatpush.bf16.msra.mxu0 %v3100
  %3175 = vmatmul.bf16.gmra.mxu0 %v2952
  %v3176 = vpop.f32.mrf.mxu0
  %v3177 = vadd.f32 %v3158, %v3176
  %v3178 = vpop.f32.mrf.mxu0
  %v3179 = vadd.f32 %v3160, %v3178
  %3180 = vmatmul.bf16.gmra.mxu0 %v2954
  %v3181 = vpop.f32.mrf.mxu0
  %v3182 = vadd.f32 %v3163, %v3181
  %v3183 = vpop.f32.mrf.mxu0
  %v3184 = vadd.f32 %v3165, %v3183
  %3185 = vdwg.mxu0
  %3186 = vmatpush.bf16.msra.mxu0 %v3099
  %3187 = vmatpush.bf16.msra.mxu0 %v3097
  %3188 = vmatpush.bf16.msra.mxu0 %v3095
  %3189 = vmatpush.bf16.msra.mxu0 %v3093
  %3190 = vmatpush.bf16.msra.mxu0 %v3091
  %3191 = vmatpush.bf16.msra.mxu0 %v3089
  %3192 = vmatpush.bf16.msra.mxu0 %v3087
  %3193 = vmatpush.bf16.msra.mxu0 %v3085
  %3194 = vmatmul.bf16.gmra.mxu0 %v2951
  %v3195 = vpop.f32.mrf.mxu0
  %v3196 = vadd.f32 0.0, %v3195
  %v3197 = vpop.f32.mrf.mxu0
  %v3198 = vadd.f32 0.0, %v3197
  %3199 = vmatmul.bf16.gmra.mxu0 %v2953
  %v3200 = vpop.f32.mrf.mxu0
  %v3201 = vadd.f32 0.0, %v3200
  %v3202 = vpop.f32.mrf.mxu0
  %v3203 = vadd.f32 0.0, %v3202
  %3204 = vdwg.mxu0
  %3205 = vmatpush.bf16.msra.mxu0 %v3115
  %3206 = vmatpush.bf16.msra.mxu0 %v3113
  %3207 = vmatpush.bf16.msra.mxu0 %v3111
  %3208 = vmatpush.bf16.msra.mxu0 %v3109
  %3209 = vmatpush.bf16.msra.mxu0 %v3107
  %3210 = vmatpush.bf16.msra.mxu0 %v3105
  %3211 = vmatpush.bf16.msra.mxu0 %v3103
  %3212 = vmatpush.bf16.msra.mxu0 %v3101
  %3213 = vmatmul.bf16.gmra.mxu0 %v2952
  %v3214 = vpop.f32.mrf.mxu0
  %v3215 = vadd.f32 %v3196, %v3214
  %v3216 = vpop.f32.mrf.mxu0
  %v3217 = vadd.f32 %v3198, %v3216
  %3218 = vmatmul.bf16.gmra.mxu0 %v2954
  %v3219 = vpop.f32.mrf.mxu0
  %v3220 = vadd.f32 %v3201, %v3219
  %v3221 = vpop.f32.mrf.mxu0
  %v3222 = vadd.f32 %v3203, %v3221
  %3223 = vdwg.mxu0
  %v3224 = vadd.f32 %v2884, %v3177
  %v3225 = vadd.f32 %v2885, %v3215
  %v3226 = vadd.f32 %v2886, %v3179
  %v3227 = vadd.f32 %v2887, %v3217
  %v3228 = vadd.f32 %v2888, %v3182
  %v3229 = vadd.f32 %v2889, %v3220
  %v3230 = vadd.f32 %v2890, %v3184
  %v3231 = vadd.f32 %v2891, %v3222
  %v3232 = vadd.f32 %v3224, %v3226
  %v3233 = vadd.f32 %v3232, %v3228
  %v3234 = vadd.f32 %v3233, %v3230
  %v3235 = vrot.slane %v3234, 4
  %v3236 = vadd.f32 %v3234, %v3235
  %v3237 = vrot.slane %v3236, 2
  %v3238 = vadd.f32 %v3236, %v3237
  %v3239 = vrot.slane %v3238, 1
  %v3240 = vadd.f32 %v3238, %v3239
  %v3241 = vadd.f32 %v3225, %v3227
  %v3242 = vadd.f32 %v3241, %v3229
  %v3243 = vadd.f32 %v3242, %v3231
  %v3244 = vrot.slane %v3243, 4
  %v3245 = vadd.f32 %v3243, %v3244
  %v3246 = vrot.slane %v3245, 2
  %v3247 = vadd.f32 %v3245, %v3246
  %v3248 = vrot.slane %v3247, 1
  %v3249 = vadd.f32 %v3247, %v3248
  %v3250 = vmul.f32 %v3224, %v3224
  %v3251 = vmul.f32 %v3225, %v3225
  %v3252 = vmul.f32 %v3226, %v3226
  %v3253 = vmul.f32 %v3227, %v3227
  %v3254 = vmul.f32 %v3228, %v3228
  %v3255 = vmul.f32 %v3229, %v3229
  %v3256 = vmul.f32 %v3230, %v3230
  %v3257 = vmul.f32 %v3231, %v3231
  %v3258 = vadd.f32 %v3250, %v3252
  %v3259 = vadd.f32 %v3258, %v3254
  %v3260 = vadd.f32 %v3259, %v3256
  %v3261 = vrot.slane %v3260, 4
  %v3262 = vadd.f32 %v3260, %v3261
  %v3263 = vrot.slane %v3262, 2
  %v3264 = vadd.f32 %v3262, %v3263
  %v3265 = vrot.slane %v3264, 1
  %v3266 = vadd.f32 %v3264, %v3265
  %v3267 = vadd.f32 %v3251, %v3253
  %v3268 = vadd.f32 %v3267, %v3255
  %v3269 = vadd.f32 %v3268, %v3257
  %v3270 = vrot.slane %v3269, 4
  %v3271 = vadd.f32 %v3269, %v3270
  %v3272 = vrot.slane %v3271, 2
  %v3273 = vadd.f32 %v3271, %v3272
  %v3274 = vrot.slane %v3273, 1
  %v3275 = vadd.f32 %v3273, %v3274
  %v3276 = vld [vmem:[%s5] sm:$0xff]
  %v3277 = vld [vmem:[%s5 + $0x8] sm:$0xff]
  %v3278 = vld [vmem:[%s5 + $0x10] sm:$0xff]
  %v3279 = vld [vmem:[%s5 + $0x18] sm:$0xff]
  %v3280 = vld [vmem:[%s5 + $0x20] sm:$0xff]
  %v3281 = vld [vmem:[%s5 + $0x28] sm:$0xff]
  %v3282 = vld [vmem:[%s5 + $0x30] sm:$0xff]
  %v3283 = vld [vmem:[%s5 + $0x38] sm:$0xff]
  %v3284 = vld [vmem:[%s5 + $0x40] sm:$0xff]
  %v3285 = vld [vmem:[%s5 + $0x48] sm:$0xff]
  %v3286 = vld [vmem:[%s5 + $0x50] sm:$0xff]
  %v3287 = vld [vmem:[%s5 + $0x58] sm:$0xff]
  %v3288 = vld [vmem:[%s5 + $0x60] sm:$0xff]
  %v3289 = vld [vmem:[%s5 + $0x68] sm:$0xff]
  %v3290 = vld [vmem:[%s5 + $0x70] sm:$0xff]
  %v3291 = vld [vmem:[%s5 + $0x78] sm:$0xff]
  %v3292 = vld [vmem:[%s5 + $0x80] sm:$0xff]
  %v3293 = vld [vmem:[%s5 + $0x88] sm:$0xff]
  %v3294 = vld [vmem:[%s5 + $0x90] sm:$0xff]
  %v3295 = vld [vmem:[%s5 + $0x98] sm:$0xff]
  %v3296 = vld [vmem:[%s5 + $0xa0] sm:$0xff]
  %v3297 = vld [vmem:[%s5 + $0xa8] sm:$0xff]
  %v3298 = vld [vmem:[%s5 + $0xb0] sm:$0xff]
  %v3299 = vld [vmem:[%s5 + $0xb8] sm:$0xff]
  %v3300 = vld [vmem:[%s5 + $0xc0] sm:$0xff]
  %v3301 = vld [vmem:[%s5 + $0xc8] sm:$0xff]
  %v3302 = vld [vmem:[%s5 + $0xd0] sm:$0xff]
  %v3303 = vld [vmem:[%s5 + $0xd8] sm:$0xff]
  %v3304 = vld [vmem:[%s5 + $0xe0] sm:$0xff]
  %v3305 = vld [vmem:[%s5 + $0xe8] sm:$0xff]
  %v3306 = vld [vmem:[%s5 + $0xf0] sm:$0xff]
  %v3307 = vld [vmem:[%s5 + $0xf8] sm:$0xff]
  %3308 = vmatpush.msra.mxu0 %v3291
  %3309 = vmatpush.msra.mxu0 %v3290
  %3310 = vmatpush.msra.mxu0 %v3289
  %3311 = vmatpush.msra.mxu0 %v3288
  %3312 = vmatpush.msra.mxu0 %v3287
  %3313 = vmatpush.msra.mxu0 %v3286
  %3314 = vmatpush.msra.mxu0 %v3285
  %3315 = vmatpush.msra.mxu0 %v3284
  %3316 = vmatpush.msra.mxu0 %v3283
  %3317 = vmatpush.msra.mxu0 %v3282
  %3318 = vmatpush.msra.mxu0 %v3281
  %3319 = vmatpush.msra.mxu0 %v3280
  %3320 = vmatpush.msra.mxu0 %v3279
  %3321 = vmatpush.msra.mxu0 %v3278
  %3322 = vmatpush.msra.mxu0 %v3277
  %3323 = vmatpush.msra.mxu0 %v3276
  %3324 = vmatmul.f32.gmra.mxu0 %v3240
  %v3325 = vpop.f32.mrf.mxu0
  %v3326 = vadd.f32 0.0, %v3325
  %3327 = vdwg.mxu0
  %3328 = vmatpush.msra.mxu0 %v3307
  %3329 = vmatpush.msra.mxu0 %v3306
  %3330 = vmatpush.msra.mxu0 %v3305
  %3331 = vmatpush.msra.mxu0 %v3304
  %3332 = vmatpush.msra.mxu0 %v3303
  %3333 = vmatpush.msra.mxu0 %v3302
  %3334 = vmatpush.msra.mxu0 %v3301
  %3335 = vmatpush.msra.mxu0 %v3300
  %3336 = vmatpush.msra.mxu0 %v3299
  %3337 = vmatpush.msra.mxu0 %v3298
  %3338 = vmatpush.msra.mxu0 %v3297
  %3339 = vmatpush.msra.mxu0 %v3296
  %3340 = vmatpush.msra.mxu0 %v3295
  %3341 = vmatpush.msra.mxu0 %v3294
  %3342 = vmatpush.msra.mxu0 %v3293
  %3343 = vmatpush.msra.mxu0 %v3292
  %3344 = vmatmul.f32.gmra.mxu0 %v3249
  %v3345 = vpop.f32.mrf.mxu0
  %v3346 = vadd.f32 %v3326, %v3345
  %3347 = vdwg.mxu0
  %3348 = vmatpush.msra.mxu0 %v3291
  %3349 = vmatpush.msra.mxu0 %v3290
  %3350 = vmatpush.msra.mxu0 %v3289
  %3351 = vmatpush.msra.mxu0 %v3288
  %3352 = vmatpush.msra.mxu0 %v3287
  %3353 = vmatpush.msra.mxu0 %v3286
  %3354 = vmatpush.msra.mxu0 %v3285
  %3355 = vmatpush.msra.mxu0 %v3284
  %3356 = vmatpush.msra.mxu0 %v3283
  %3357 = vmatpush.msra.mxu0 %v3282
  %3358 = vmatpush.msra.mxu0 %v3281
  %3359 = vmatpush.msra.mxu0 %v3280
  %3360 = vmatpush.msra.mxu0 %v3279
  %3361 = vmatpush.msra.mxu0 %v3278
  %3362 = vmatpush.msra.mxu0 %v3277
  %3363 = vmatpush.msra.mxu0 %v3276
  %3364 = vmatmul.f32.gmra.mxu0 %v3266
  %v3365 = vpop.f32.mrf.mxu0
  %v3366 = vadd.f32 0.0, %v3365
  %3367 = vdwg.mxu0
  %3368 = vmatpush.msra.mxu0 %v3307
  %3369 = vmatpush.msra.mxu0 %v3306
  %3370 = vmatpush.msra.mxu0 %v3305
  %3371 = vmatpush.msra.mxu0 %v3304
  %3372 = vmatpush.msra.mxu0 %v3303
  %3373 = vmatpush.msra.mxu0 %v3302
  %3374 = vmatpush.msra.mxu0 %v3301
  %3375 = vmatpush.msra.mxu0 %v3300
  %3376 = vmatpush.msra.mxu0 %v3299
  %3377 = vmatpush.msra.mxu0 %v3298
  %3378 = vmatpush.msra.mxu0 %v3297
  %3379 = vmatpush.msra.mxu0 %v3296
  %3380 = vmatpush.msra.mxu0 %v3295
  %3381 = vmatpush.msra.mxu0 %v3294
  %3382 = vmatpush.msra.mxu0 %v3293
  %3383 = vmatpush.msra.mxu0 %v3292
  %3384 = vmatmul.f32.gmra.mxu0 %v3275
  %v3385 = vpop.f32.mrf.mxu0
  %v3386 = vadd.f32 %v3366, %v3385
  %3387 = vdwg.mxu0
  %v3388 = vmul.f32 %v3346, 0.001953125
  %v3389 = vmul.f32 %v3386, 0.001953125
  %v3390 = vmul.f32 %v3388, %v3388
  %v3391 = vsub.f32 %v3389, %v3390
  %v3392 = vmax.f32 %v3391, 0.0
  %v3393 = vld [vmem:[%s7] sm:$0x1]
  %v3394 = vadd.f32 %v3392, 1e-05
  %v3395 = vrsqrt.pop %v3394
  %v3396 = vmul.f32 %v3395, %v3394
  %v3397 = vmul.f32 %v3396, %v3395
  %v3398 = vmul.f32 0.5, %v3397
  %v3399 = vsub.f32 1.5, %v3398
  %v3400 = vmul.f32 %v3395, %v3399
  %vm3401 = vweird.f32 %v3394
  %vm3402 = vweird.f32 %v3395
  %vm3403 = vmor %vm3401, %vm3402
  %v3404 = vsel %vm3403, %v3395, %v3400
  %v3405 = vmul.f32 %v3393, %v3404
  %v3406 = vld [vmem:[%s8] sm:$0x1]
  %v3407 = vmul.f32 %v3388, %v3405
  %v3408 = vsub.f32 %v3406, %v3407
  %v3409 = vld [vmem:[%s6] sm:$0xff]
  %v3410 = vld [vmem:[%s6 + $0x8] sm:$0xff]
  %v3411 = vld [vmem:[%s6 + $0x10] sm:$0xff]
  %v3412 = vld [vmem:[%s6 + $0x18] sm:$0xff]
  %vm3413 = vcmask 130048
  %v3415 = vsel %vm3413, %v3405, 0
  %3417 = vmatpush.msra.mxu0 0.0
  %3418 = vmatpush.msra.mxu0 0.0
  %3419 = vmatpush.msra.mxu0 0.0
  %3420 = vmatpush.msra.mxu0 0.0
  %3421 = vmatpush.msra.mxu0 0.0
  %3422 = vmatpush.msra.mxu0 0.0
  %3423 = vmatpush.msra.mxu0 0.0
  %3424 = vmatpush.msra.mxu0 0.0
  %3425 = vmatpush.msra.mxu0 0.0
  %3426 = vmatpush.msra.mxu0 0.0
  %3427 = vmatpush.msra.mxu0 0.0
  %3428 = vmatpush.msra.mxu0 0.0
  %3429 = vmatpush.msra.mxu0 0.0
  %3430 = vmatpush.msra.mxu0 0.0
  %3431 = vmatpush.msra.mxu0 %v3411
  %3432 = vmatpush.msra.mxu0 %v3409
  %3433 = vmatmul.f32.gmra.mxu0 %v3415
  %v3434 = vpop.f32.mrf.mxu0
  %v3435 = vadd.f32 0.0, %v3434
  %3436 = vdwg.mxu0
  %3437 = vmatpush.msra.mxu0 0.0
  %3438 = vmatpush.msra.mxu0 0.0
  %3439 = vmatpush.msra.mxu0 0.0
  %3440 = vmatpush.msra.mxu0 0.0
  %3441 = vmatpush.msra.mxu0 0.0
  %3442 = vmatpush.msra.mxu0 0.0
  %3443 = vmatpush.msra.mxu0 0.0
  %3444 = vmatpush.msra.mxu0 0.0
  %3445 = vmatpush.msra.mxu0 0.0
  %3446 = vmatpush.msra.mxu0 0.0
  %3447 = vmatpush.msra.mxu0 0.0
  %3448 = vmatpush.msra.mxu0 0.0
  %3449 = vmatpush.msra.mxu0 0.0
  %3450 = vmatpush.msra.mxu0 0.0
  %3451 = vmatpush.msra.mxu0 %v3412
  %3452 = vmatpush.msra.mxu0 %v3410
  %3453 = vmatmul.f32.gmra.mxu0 %v3415
  %v3454 = vpop.f32.mrf.mxu0
  %v3455 = vadd.f32 0.0, %v3454
  %3456 = vdwg.mxu0
  %v3457 = vperm.slane %v3435, 0
  %v3458 = vperm.slane %v3455, 0
  %v3459 = vmul.f32 %v3224, %v3457
  %v3460 = vmul.f32 %v3225, %v3458
  %v3461 = vmul.f32 %v3226, %v3457
  %v3462 = vmul.f32 %v3227, %v3458
  %v3463 = vmul.f32 %v3228, %v3457
  %v3464 = vmul.f32 %v3229, %v3458
  %v3465 = vmul.f32 %v3230, %v3457
  %v3466 = vmul.f32 %v3231, %v3458
  %v3468 = vsel %vm3413, %v3408, 0
  %3470 = vmatpush.msra.mxu0 0.0
  %3471 = vmatpush.msra.mxu0 0.0
  %3472 = vmatpush.msra.mxu0 0.0
  %3473 = vmatpush.msra.mxu0 0.0
  %3474 = vmatpush.msra.mxu0 0.0
  %3475 = vmatpush.msra.mxu0 0.0
  %3476 = vmatpush.msra.mxu0 0.0
  %3477 = vmatpush.msra.mxu0 0.0
  %3478 = vmatpush.msra.mxu0 0.0
  %3479 = vmatpush.msra.mxu0 0.0
  %3480 = vmatpush.msra.mxu0 0.0
  %3481 = vmatpush.msra.mxu0 0.0
  %3482 = vmatpush.msra.mxu0 0.0
  %3483 = vmatpush.msra.mxu0 0.0
  %3484 = vmatpush.msra.mxu0 %v3411
  %3485 = vmatpush.msra.mxu0 %v3409
  %3486 = vmatmul.f32.gmra.mxu0 %v3468
  %v3487 = vpop.f32.mrf.mxu0
  %v3488 = vadd.f32 0.0, %v3487
  %3489 = vdwg.mxu0
  %3490 = vmatpush.msra.mxu0 0.0
  %3491 = vmatpush.msra.mxu0 0.0
  %3492 = vmatpush.msra.mxu0 0.0
  %3493 = vmatpush.msra.mxu0 0.0
  %3494 = vmatpush.msra.mxu0 0.0
  %3495 = vmatpush.msra.mxu0 0.0
  %3496 = vmatpush.msra.mxu0 0.0
  %3497 = vmatpush.msra.mxu0 0.0
  %3498 = vmatpush.msra.mxu0 0.0
  %3499 = vmatpush.msra.mxu0 0.0
  %3500 = vmatpush.msra.mxu0 0.0
  %3501 = vmatpush.msra.mxu0 0.0
  %3502 = vmatpush.msra.mxu0 0.0
  %3503 = vmatpush.msra.mxu0 0.0
  %3504 = vmatpush.msra.mxu0 %v3412
  %3505 = vmatpush.msra.mxu0 %v3410
  %3506 = vmatmul.f32.gmra.mxu0 %v3468
  %v3507 = vpop.f32.mrf.mxu0
  %v3508 = vadd.f32 0.0, %v3507
  %3509 = vdwg.mxu0
  %v3510 = vperm.slane %v3488, 0
  %v3511 = vperm.slane %v3508, 0
  %v3512 = vadd.f32 %v3459, %v3510
  %v3513 = vadd.f32 %v3460, %v3511
  %v3514 = vadd.f32 %v3461, %v3510
  %v3515 = vadd.f32 %v3462, %v3511
  %v3516 = vadd.f32 %v3463, %v3510
  %v3517 = vadd.f32 %v3464, %v3511
  %v3518 = vadd.f32 %v3465, %v3510
  %v3519 = vadd.f32 %v3466, %v3511
  %vm3520 = vcmp.ge.f32.partialorder %v3512, 0.0
  %vm3521 = vcmp.ge.f32.partialorder %v3513, 0.0
  %vm3522 = vcmp.ge.f32.partialorder %v3514, 0.0
  %vm3523 = vcmp.ge.f32.partialorder %v3515, 0.0
  %vm3524 = vcmp.ge.f32.partialorder %v3516, 0.0
  %vm3525 = vcmp.ge.f32.partialorder %v3517, 0.0
  %vm3526 = vcmp.ge.f32.partialorder %v3518, 0.0
  %vm3527 = vcmp.ge.f32.partialorder %v3519, 0.0
  %v3528 = vmul.f32 %v3512, 0.2
  %v3529 = vmul.f32 %v3513, 0.2
  %v3530 = vmul.f32 %v3514, 0.2
  %v3531 = vmul.f32 %v3515, 0.2
  %v3532 = vmul.f32 %v3516, 0.2
  %v3533 = vmul.f32 %v3517, 0.2
  %v3534 = vmul.f32 %v3518, 0.2
  %v3535 = vmul.f32 %v3519, 0.2
  %v3536 = vsel %vm3520, %v3512, %v3528
  %v3537 = vsel %vm3521, %v3513, %v3529
  %v3538 = vsel %vm3522, %v3514, %v3530
  %v3539 = vsel %vm3523, %v3515, %v3531
  %v3540 = vsel %vm3524, %v3516, %v3532
  %v3541 = vsel %vm3525, %v3517, %v3533
  %v3542 = vsel %vm3526, %v3518, %v3534
  %v3543 = vsel %vm3527, %v3519, %v3535
  %v3544 = vpack.c.bf16 %v3538, %v3536
  %v3545 = vpack.c.bf16 %v3539, %v3537
  %v3546 = vpack.c.bf16 %v3542, %v3540
  %v3547 = vpack.c.bf16 %v3543, %v3541
  %v3548 = vld [vmem:[%s9] sm:$0xf]
  %v3549 = vld [vmem:[%s9 + $0x4] sm:$0xf]
  %v3552 = vunpack.c.l.b16 %v3548
  %v3553 = vunpack.c.l.b16 %v3549
  %v3554 = vpack.c.b16 %v3553, %v3552
  %vm3555 = vcmask 261120
  %v3557 = vsel %vm3555, %v3554, 0
  %3559 = vmatpush.bf16.msra.mxu0 0
  %3560 = vmatpush.bf16.msra.mxu0 0
  %3561 = vmatpush.bf16.msra.mxu0 0
  %3562 = vmatpush.bf16.msra.mxu0 0
  %3563 = vmatpush.bf16.msra.mxu0 0
  %3564 = vmatpush.bf16.msra.mxu0 0
  %3565 = vmatpush.bf16.msra.mxu0 %v3546
  %3566 = vmatpush.bf16.msra.mxu0 %v3544
  %3567 = vmatmul.bf16.gmra.mxu0 %v3557
  %v3568 = vpop.f32.mrf.mxu0
  %v3569 = vadd.f32 0.0, %v3568
  %v3570 = vpop.f32.mrf.mxu0
  %v3571 = vadd.f32 0.0, %v3570
  %3572 = vdwg.mxu0
  %3573 = vmatpush.bf16.msra.mxu0 0
  %3574 = vmatpush.bf16.msra.mxu0 0
  %3575 = vmatpush.bf16.msra.mxu0 0
  %3576 = vmatpush.bf16.msra.mxu0 0
  %3577 = vmatpush.bf16.msra.mxu0 0
  %3578 = vmatpush.bf16.msra.mxu0 0
  %3579 = vmatpush.bf16.msra.mxu0 %v3547
  %3580 = vmatpush.bf16.msra.mxu0 %v3545
  %3581 = vmatmul.bf16.gmra.mxu0 %v3557
  %v3582 = vpop.f32.mrf.mxu0
  %v3583 = vadd.f32 0.0, %v3582
  %v3584 = vpop.f32.mrf.mxu0
  %v3585 = vadd.f32 0.0, %v3584
  %3586 = vdwg.mxu0
  %v3587 = vpack.c.bf16 %v3571, %v3569
  %v3588 = vpack.c.bf16 %v3585, %v3583
  %v3589 = vld [vmem:[%s10] sm:$0xff]
  %v3590 = vld [vmem:[%s10 + $0x8] sm:$0xff]
  %v3591 = vld [vmem:[%s10 + $0x10] sm:$0xff]
  %v3592 = vld [vmem:[%s10 + $0x18] sm:$0xff]
  %v3593 = vld [vmem:[%s10 + $0x20] sm:$0xff]
  %v3594 = vld [vmem:[%s10 + $0x28] sm:$0xff]
  %v3595 = vld [vmem:[%s10 + $0x30] sm:$0xff]
  %v3596 = vld [vmem:[%s10 + $0x38] sm:$0xff]
  %v3597 = vld [vmem:[%s10 + $0x40] sm:$0xff]
  %v3598 = vld [vmem:[%s10 + $0x48] sm:$0xff]
  %v3599 = vld [vmem:[%s10 + $0x50] sm:$0xff]
  %v3600 = vld [vmem:[%s10 + $0x58] sm:$0xff]
  %v3601 = vld [vmem:[%s10 + $0x60] sm:$0xff]
  %v3602 = vld [vmem:[%s10 + $0x68] sm:$0xff]
  %v3603 = vld [vmem:[%s10 + $0x70] sm:$0xff]
  %v3604 = vld [vmem:[%s10 + $0x78] sm:$0xff]
  %v3605 = vld [vmem:[%s10 + $0x80] sm:$0xff]
  %v3606 = vld [vmem:[%s10 + $0x88] sm:$0xff]
  %v3607 = vld [vmem:[%s10 + $0x90] sm:$0xff]
  %v3608 = vld [vmem:[%s10 + $0x98] sm:$0xff]
  %v3609 = vld [vmem:[%s10 + $0xa0] sm:$0xff]
  %v3610 = vld [vmem:[%s10 + $0xa8] sm:$0xff]
  %v3611 = vld [vmem:[%s10 + $0xb0] sm:$0xff]
  %v3612 = vld [vmem:[%s10 + $0xb8] sm:$0xff]
  %v3613 = vld [vmem:[%s10 + $0xc0] sm:$0xff]
  %v3614 = vld [vmem:[%s10 + $0xc8] sm:$0xff]
  %v3615 = vld [vmem:[%s10 + $0xd0] sm:$0xff]
  %v3616 = vld [vmem:[%s10 + $0xd8] sm:$0xff]
  %v3617 = vld [vmem:[%s10 + $0xe0] sm:$0xff]
  %v3618 = vld [vmem:[%s10 + $0xe8] sm:$0xff]
  %v3619 = vld [vmem:[%s10 + $0xf0] sm:$0xff]
  %v3620 = vld [vmem:[%s10 + $0xf8] sm:$0xff]
  %s3621 = scalar_lea.vmem %s9, 8
  %v3622 = vld [vmem:[%s3621] sm:$0xf]
  %v3623 = vld [vmem:[%s3621 + $0x4] sm:$0xf]
  %v3626 = vunpack.c.l.b16 %v3622
  %v3627 = vunpack.c.l.b16 %v3623
  %v3628 = vpack.c.b16 %v3627, %v3626
  %v3630 = vsel %vm3555, %v3628, 0
  %3632 = vmatpush.bf16.msra.mxu0 0
  %3633 = vmatpush.bf16.msra.mxu0 0
  %3634 = vmatpush.bf16.msra.mxu0 0
  %3635 = vmatpush.bf16.msra.mxu0 0
  %3636 = vmatpush.bf16.msra.mxu0 0
  %3637 = vmatpush.bf16.msra.mxu0 0
  %3638 = vmatpush.bf16.msra.mxu0 %v3546
  %3639 = vmatpush.bf16.msra.mxu0 %v3544
  %3640 = vmatmul.bf16.gmra.mxu0 %v3630
  %v3641 = vpop.f32.mrf.mxu0
  %v3642 = vadd.f32 0.0, %v3641
  %v3643 = vpop.f32.mrf.mxu0
  %v3644 = vadd.f32 0.0, %v3643
  %3645 = vdwg.mxu0
  %3646 = vmatpush.bf16.msra.mxu0 0
  %3647 = vmatpush.bf16.msra.mxu0 0
  %3648 = vmatpush.bf16.msra.mxu0 0
  %3649 = vmatpush.bf16.msra.mxu0 0
  %3650 = vmatpush.bf16.msra.mxu0 0
  %3651 = vmatpush.bf16.msra.mxu0 0
  %3652 = vmatpush.bf16.msra.mxu0 %v3547
  %3653 = vmatpush.bf16.msra.mxu0 %v3545
  %3654 = vmatmul.bf16.gmra.mxu0 %v3630
  %v3655 = vpop.f32.mrf.mxu0
  %v3656 = vadd.f32 0.0, %v3655
  %v3657 = vpop.f32.mrf.mxu0
  %v3658 = vadd.f32 0.0, %v3657
  %3659 = vdwg.mxu0
  %v3660 = vpack.c.bf16 %v3644, %v3642
  %v3661 = vpack.c.bf16 %v3658, %v3656
  %s3662 = scalar_lea.vmem %s10, 256
  %v3663 = vld [vmem:[%s3662] sm:$0xff]
  %v3664 = vld [vmem:[%s3662 + $0x8] sm:$0xff]
  %v3665 = vld [vmem:[%s3662 + $0x10] sm:$0xff]
  %v3666 = vld [vmem:[%s3662 + $0x18] sm:$0xff]
  %v3667 = vld [vmem:[%s3662 + $0x20] sm:$0xff]
  %v3668 = vld [vmem:[%s3662 + $0x28] sm:$0xff]
  %v3669 = vld [vmem:[%s3662 + $0x30] sm:$0xff]
  %v3670 = vld [vmem:[%s3662 + $0x38] sm:$0xff]
  %v3671 = vld [vmem:[%s3662 + $0x40] sm:$0xff]
  %v3672 = vld [vmem:[%s3662 + $0x48] sm:$0xff]
  %v3673 = vld [vmem:[%s3662 + $0x50] sm:$0xff]
  %v3674 = vld [vmem:[%s3662 + $0x58] sm:$0xff]
  %v3675 = vld [vmem:[%s3662 + $0x60] sm:$0xff]
  %v3676 = vld [vmem:[%s3662 + $0x68] sm:$0xff]
  %v3677 = vld [vmem:[%s3662 + $0x70] sm:$0xff]
  %v3678 = vld [vmem:[%s3662 + $0x78] sm:$0xff]
  %v3679 = vld [vmem:[%s3662 + $0x80] sm:$0xff]
  %v3680 = vld [vmem:[%s3662 + $0x88] sm:$0xff]
  %v3681 = vld [vmem:[%s3662 + $0x90] sm:$0xff]
  %v3682 = vld [vmem:[%s3662 + $0x98] sm:$0xff]
  %v3683 = vld [vmem:[%s3662 + $0xa0] sm:$0xff]
  %v3684 = vld [vmem:[%s3662 + $0xa8] sm:$0xff]
  %v3685 = vld [vmem:[%s3662 + $0xb0] sm:$0xff]
  %v3686 = vld [vmem:[%s3662 + $0xb8] sm:$0xff]
  %v3687 = vld [vmem:[%s3662 + $0xc0] sm:$0xff]
  %v3688 = vld [vmem:[%s3662 + $0xc8] sm:$0xff]
  %v3689 = vld [vmem:[%s3662 + $0xd0] sm:$0xff]
  %v3690 = vld [vmem:[%s3662 + $0xd8] sm:$0xff]
  %v3691 = vld [vmem:[%s3662 + $0xe0] sm:$0xff]
  %v3692 = vld [vmem:[%s3662 + $0xe8] sm:$0xff]
  %v3693 = vld [vmem:[%s3662 + $0xf0] sm:$0xff]
  %v3694 = vld [vmem:[%s3662 + $0xf8] sm:$0xff]
  %v3727 = vunpack.c.l.b16 %v3663
  %v3728 = vunpack.c.h.b16 %v3663
  %v3729 = vunpack.c.l.b16 %v3664
  %v3730 = vunpack.c.h.b16 %v3664
  %v3731 = vunpack.c.l.b16 %v3665
  %v3732 = vunpack.c.h.b16 %v3665
  %v3733 = vunpack.c.l.b16 %v3666
  %v3734 = vunpack.c.h.b16 %v3666
  %v3735 = vunpack.c.l.b16 %v3667
  %v3736 = vunpack.c.h.b16 %v3667
  %v3737 = vunpack.c.l.b16 %v3668
  %v3738 = vunpack.c.h.b16 %v3668
  %v3739 = vunpack.c.l.b16 %v3669
  %v3740 = vunpack.c.h.b16 %v3669
  %v3741 = vunpack.c.l.b16 %v3670
  %v3742 = vunpack.c.h.b16 %v3670
  %v3743 = vunpack.c.l.b16 %v3671
  %v3744 = vunpack.c.h.b16 %v3671
  %v3745 = vunpack.c.l.b16 %v3672
  %v3746 = vunpack.c.h.b16 %v3672
  %v3747 = vunpack.c.l.b16 %v3673
  %v3748 = vunpack.c.h.b16 %v3673
  %v3749 = vunpack.c.l.b16 %v3674
  %v3750 = vunpack.c.h.b16 %v3674
  %v3751 = vunpack.c.l.b16 %v3675
  %v3752 = vunpack.c.h.b16 %v3675
  %v3753 = vunpack.c.l.b16 %v3676
  %v3754 = vunpack.c.h.b16 %v3676
  %v3755 = vunpack.c.l.b16 %v3677
  %v3756 = vunpack.c.h.b16 %v3677
  %v3757 = vunpack.c.l.b16 %v3678
  %v3758 = vunpack.c.h.b16 %v3678
  %v3759 = vunpack.c.l.b16 %v3679
  %v3760 = vunpack.c.h.b16 %v3679
  %v3761 = vunpack.c.l.b16 %v3680
  %v3762 = vunpack.c.h.b16 %v3680
  %v3763 = vunpack.c.l.b16 %v3681
  %v3764 = vunpack.c.h.b16 %v3681
  %v3765 = vunpack.c.l.b16 %v3682
  %v3766 = vunpack.c.h.b16 %v3682
  %v3767 = vunpack.c.l.b16 %v3683
  %v3768 = vunpack.c.h.b16 %v3683
  %v3769 = vunpack.c.l.b16 %v3684
  %v3770 = vunpack.c.h.b16 %v3684
  %v3771 = vunpack.c.l.b16 %v3685
  %v3772 = vunpack.c.h.b16 %v3685
  %v3773 = vunpack.c.l.b16 %v3686
  %v3774 = vunpack.c.h.b16 %v3686
  %v3775 = vunpack.c.l.b16 %v3687
  %v3776 = vunpack.c.h.b16 %v3687
  %v3777 = vunpack.c.l.b16 %v3688
  %v3778 = vunpack.c.h.b16 %v3688
  %v3779 = vunpack.c.l.b16 %v3689
  %v3780 = vunpack.c.h.b16 %v3689
  %v3781 = vunpack.c.l.b16 %v3690
  %v3782 = vunpack.c.h.b16 %v3690
  %v3783 = vunpack.c.l.b16 %v3691
  %v3784 = vunpack.c.h.b16 %v3691
  %v3785 = vunpack.c.l.b16 %v3692
  %v3786 = vunpack.c.h.b16 %v3692
  %v3787 = vunpack.c.l.b16 %v3693
  %v3788 = vunpack.c.h.b16 %v3693
  %v3789 = vunpack.c.l.b16 %v3694
  %v3790 = vunpack.c.h.b16 %v3694
  %v3791 = vpack.c.b16 %v3729, %v3727
  %v3792 = vpack.c.b16 %v3730, %v3728
  %v3793 = vpack.c.b16 %v3733, %v3731
  %v3794 = vpack.c.b16 %v3734, %v3732
  %v3795 = vpack.c.b16 %v3737, %v3735
  %v3796 = vpack.c.b16 %v3738, %v3736
  %v3797 = vpack.c.b16 %v3741, %v3739
  %v3798 = vpack.c.b16 %v3742, %v3740
  %v3799 = vpack.c.b16 %v3745, %v3743
  %v3800 = vpack.c.b16 %v3746, %v3744
  %v3801 = vpack.c.b16 %v3749, %v3747
  %v3802 = vpack.c.b16 %v3750, %v3748
  %v3803 = vpack.c.b16 %v3753, %v3751
  %v3804 = vpack.c.b16 %v3754, %v3752
  %v3805 = vpack.c.b16 %v3757, %v3755
  %v3806 = vpack.c.b16 %v3758, %v3756
  %v3807 = vpack.c.b16 %v3761, %v3759
  %v3808 = vpack.c.b16 %v3762, %v3760
  %v3809 = vpack.c.b16 %v3765, %v3763
  %v3810 = vpack.c.b16 %v3766, %v3764
  %v3811 = vpack.c.b16 %v3769, %v3767
  %v3812 = vpack.c.b16 %v3770, %v3768
  %v3813 = vpack.c.b16 %v3773, %v3771
  %v3814 = vpack.c.b16 %v3774, %v3772
  %v3815 = vpack.c.b16 %v3777, %v3775
  %v3816 = vpack.c.b16 %v3778, %v3776
  %v3817 = vpack.c.b16 %v3781, %v3779
  %v3818 = vpack.c.b16 %v3782, %v3780
  %v3819 = vpack.c.b16 %v3785, %v3783
  %v3820 = vpack.c.b16 %v3786, %v3784
  %v3821 = vpack.c.b16 %v3789, %v3787
  %v3822 = vpack.c.b16 %v3790, %v3788
  %3855 = vmatpush.bf16.msra.mxu0 %v3805
  %3856 = vmatpush.bf16.msra.mxu0 %v3803
  %3857 = vmatpush.bf16.msra.mxu0 %v3801
  %3858 = vmatpush.bf16.msra.mxu0 %v3799
  %3859 = vmatpush.bf16.msra.mxu0 %v3797
  %3860 = vmatpush.bf16.msra.mxu0 %v3795
  %3861 = vmatpush.bf16.msra.mxu0 %v3793
  %3862 = vmatpush.bf16.msra.mxu0 %v3791
  %3863 = vmatmul.bf16.gmra.mxu0 %v3660
  %v3864 = vpop.f32.mrf.mxu0
  %v3865 = vadd.f32 0.0, %v3864
  %v3866 = vpop.f32.mrf.mxu0
  %v3867 = vadd.f32 0.0, %v3866
  %3868 = vdwg.mxu0
  %3869 = vmatpush.bf16.msra.mxu0 %v3821
  %3870 = vmatpush.bf16.msra.mxu0 %v3819
  %3871 = vmatpush.bf16.msra.mxu0 %v3817
  %3872 = vmatpush.bf16.msra.mxu0 %v3815
  %3873 = vmatpush.bf16.msra.mxu0 %v3813
  %3874 = vmatpush.bf16.msra.mxu0 %v3811
  %3875 = vmatpush.bf16.msra.mxu0 %v3809
  %3876 = vmatpush.bf16.msra.mxu0 %v3807
  %3877 = vmatmul.bf16.gmra.mxu0 %v3661
  %v3878 = vpop.f32.mrf.mxu0
  %v3879 = vadd.f32 %v3865, %v3878
  %v3880 = vpop.f32.mrf.mxu0
  %v3881 = vadd.f32 %v3867, %v3880
  %3882 = vdwg.mxu0
  %3883 = vmatpush.bf16.msra.mxu0 %v3806
  %3884 = vmatpush.bf16.msra.mxu0 %v3804
  %3885 = vmatpush.bf16.msra.mxu0 %v3802
  %3886 = vmatpush.bf16.msra.mxu0 %v3800
  %3887 = vmatpush.bf16.msra.mxu0 %v3798
  %3888 = vmatpush.bf16.msra.mxu0 %v3796
  %3889 = vmatpush.bf16.msra.mxu0 %v3794
  %3890 = vmatpush.bf16.msra.mxu0 %v3792
  %3891 = vmatmul.bf16.gmra.mxu0 %v3660
  %v3892 = vpop.f32.mrf.mxu0
  %v3893 = vadd.f32 0.0, %v3892
  %v3894 = vpop.f32.mrf.mxu0
  %v3895 = vadd.f32 0.0, %v3894
  %3896 = vdwg.mxu0
  %3897 = vmatpush.bf16.msra.mxu0 %v3822
  %3898 = vmatpush.bf16.msra.mxu0 %v3820
  %3899 = vmatpush.bf16.msra.mxu0 %v3818
  %3900 = vmatpush.bf16.msra.mxu0 %v3816
  %3901 = vmatpush.bf16.msra.mxu0 %v3814
  %3902 = vmatpush.bf16.msra.mxu0 %v3812
  %3903 = vmatpush.bf16.msra.mxu0 %v3810
  %3904 = vmatpush.bf16.msra.mxu0 %v3808
  %3905 = vmatmul.bf16.gmra.mxu0 %v3661
  %v3906 = vpop.f32.mrf.mxu0
  %v3907 = vadd.f32 %v3893, %v3906
  %v3908 = vpop.f32.mrf.mxu0
  %v3909 = vadd.f32 %v3895, %v3908
  %3910 = vdwg.mxu0
  %v3943 = vunpack.c.l.b16 %v3589
  %v3944 = vunpack.c.h.b16 %v3589
  %v3945 = vunpack.c.l.b16 %v3590
  %v3946 = vunpack.c.h.b16 %v3590
  %v3947 = vunpack.c.l.b16 %v3591
  %v3948 = vunpack.c.h.b16 %v3591
  %v3949 = vunpack.c.l.b16 %v3592
  %v3950 = vunpack.c.h.b16 %v3592
  %v3951 = vunpack.c.l.b16 %v3593
  %v3952 = vunpack.c.h.b16 %v3593
  %v3953 = vunpack.c.l.b16 %v3594
  %v3954 = vunpack.c.h.b16 %v3594
  %v3955 = vunpack.c.l.b16 %v3595
  %v3956 = vunpack.c.h.b16 %v3595
  %v3957 = vunpack.c.l.b16 %v3596
  %v3958 = vunpack.c.h.b16 %v3596
  %v3959 = vunpack.c.l.b16 %v3597
  %v3960 = vunpack.c.h.b16 %v3597
  %v3961 = vunpack.c.l.b16 %v3598
  %v3962 = vunpack.c.h.b16 %v3598
  %v3963 = vunpack.c.l.b16 %v3599
  %v3964 = vunpack.c.h.b16 %v3599
  %v3965 = vunpack.c.l.b16 %v3600
  %v3966 = vunpack.c.h.b16 %v3600
  %v3967 = vunpack.c.l.b16 %v3601
  %v3968 = vunpack.c.h.b16 %v3601
  %v3969 = vunpack.c.l.b16 %v3602
  %v3970 = vunpack.c.h.b16 %v3602
  %v3971 = vunpack.c.l.b16 %v3603
  %v3972 = vunpack.c.h.b16 %v3603
  %v3973 = vunpack.c.l.b16 %v3604
  %v3974 = vunpack.c.h.b16 %v3604
  %v3975 = vunpack.c.l.b16 %v3605
  %v3976 = vunpack.c.h.b16 %v3605
  %v3977 = vunpack.c.l.b16 %v3606
  %v3978 = vunpack.c.h.b16 %v3606
  %v3979 = vunpack.c.l.b16 %v3607
  %v3980 = vunpack.c.h.b16 %v3607
  %v3981 = vunpack.c.l.b16 %v3608
  %v3982 = vunpack.c.h.b16 %v3608
  %v3983 = vunpack.c.l.b16 %v3609
  %v3984 = vunpack.c.h.b16 %v3609
  %v3985 = vunpack.c.l.b16 %v3610
  %v3986 = vunpack.c.h.b16 %v3610
  %v3987 = vunpack.c.l.b16 %v3611
  %v3988 = vunpack.c.h.b16 %v3611
  %v3989 = vunpack.c.l.b16 %v3612
  %v3990 = vunpack.c.h.b16 %v3612
  %v3991 = vunpack.c.l.b16 %v3613
  %v3992 = vunpack.c.h.b16 %v3613
  %v3993 = vunpack.c.l.b16 %v3614
  %v3994 = vunpack.c.h.b16 %v3614
  %v3995 = vunpack.c.l.b16 %v3615
  %v3996 = vunpack.c.h.b16 %v3615
  %v3997 = vunpack.c.l.b16 %v3616
  %v3998 = vunpack.c.h.b16 %v3616
  %v3999 = vunpack.c.l.b16 %v3617
  %v4000 = vunpack.c.h.b16 %v3617
  %v4001 = vunpack.c.l.b16 %v3618
  %v4002 = vunpack.c.h.b16 %v3618
  %v4003 = vunpack.c.l.b16 %v3619
  %v4004 = vunpack.c.h.b16 %v3619
  %v4005 = vunpack.c.l.b16 %v3620
  %v4006 = vunpack.c.h.b16 %v3620
  %v4007 = vpack.c.b16 %v3945, %v3943
  %v4008 = vpack.c.b16 %v3946, %v3944
  %v4009 = vpack.c.b16 %v3949, %v3947
  %v4010 = vpack.c.b16 %v3950, %v3948
  %v4011 = vpack.c.b16 %v3953, %v3951
  %v4012 = vpack.c.b16 %v3954, %v3952
  %v4013 = vpack.c.b16 %v3957, %v3955
  %v4014 = vpack.c.b16 %v3958, %v3956
  %v4015 = vpack.c.b16 %v3961, %v3959
  %v4016 = vpack.c.b16 %v3962, %v3960
  %v4017 = vpack.c.b16 %v3965, %v3963
  %v4018 = vpack.c.b16 %v3966, %v3964
  %v4019 = vpack.c.b16 %v3969, %v3967
  %v4020 = vpack.c.b16 %v3970, %v3968
  %v4021 = vpack.c.b16 %v3973, %v3971
  %v4022 = vpack.c.b16 %v3974, %v3972
  %v4023 = vpack.c.b16 %v3977, %v3975
  %v4024 = vpack.c.b16 %v3978, %v3976
  %v4025 = vpack.c.b16 %v3981, %v3979
  %v4026 = vpack.c.b16 %v3982, %v3980
  %v4027 = vpack.c.b16 %v3985, %v3983
  %v4028 = vpack.c.b16 %v3986, %v3984
  %v4029 = vpack.c.b16 %v3989, %v3987
  %v4030 = vpack.c.b16 %v3990, %v3988
  %v4031 = vpack.c.b16 %v3993, %v3991
  %v4032 = vpack.c.b16 %v3994, %v3992
  %v4033 = vpack.c.b16 %v3997, %v3995
  %v4034 = vpack.c.b16 %v3998, %v3996
  %v4035 = vpack.c.b16 %v4001, %v3999
  %v4036 = vpack.c.b16 %v4002, %v4000
  %v4037 = vpack.c.b16 %v4005, %v4003
  %v4038 = vpack.c.b16 %v4006, %v4004
  %4071 = vmatpush.bf16.msra.mxu0 %v4021
  %4072 = vmatpush.bf16.msra.mxu0 %v4019
  %4073 = vmatpush.bf16.msra.mxu0 %v4017
  %4074 = vmatpush.bf16.msra.mxu0 %v4015
  %4075 = vmatpush.bf16.msra.mxu0 %v4013
  %4076 = vmatpush.bf16.msra.mxu0 %v4011
  %4077 = vmatpush.bf16.msra.mxu0 %v4009
  %4078 = vmatpush.bf16.msra.mxu0 %v4007
  %4079 = vmatmul.bf16.gmra.mxu0 %v3587
  %v4080 = vpop.f32.mrf.mxu0
  %v4081 = vadd.f32 %v3879, %v4080
  %v4082 = vpop.f32.mrf.mxu0
  %v4083 = vadd.f32 %v3881, %v4082
  %4084 = vdwg.mxu0
  %4085 = vmatpush.bf16.msra.mxu0 %v4037
  %4086 = vmatpush.bf16.msra.mxu0 %v4035
  %4087 = vmatpush.bf16.msra.mxu0 %v4033
  %4088 = vmatpush.bf16.msra.mxu0 %v4031
  %4089 = vmatpush.bf16.msra.mxu0 %v4029
  %4090 = vmatpush.bf16.msra.mxu0 %v4027
  %4091 = vmatpush.bf16.msra.mxu0 %v4025
  %4092 = vmatpush.bf16.msra.mxu0 %v4023
  %4093 = vmatmul.bf16.gmra.mxu0 %v3588
  %v4094 = vpop.f32.mrf.mxu0
  %v4095 = vadd.f32 %v4081, %v4094
  %v4096 = vpop.f32.mrf.mxu0
  %v4097 = vadd.f32 %v4083, %v4096
  %4098 = vdwg.mxu0
  %4099 = vmatpush.bf16.msra.mxu0 %v4022
  %4100 = vmatpush.bf16.msra.mxu0 %v4020
  %4101 = vmatpush.bf16.msra.mxu0 %v4018
  %4102 = vmatpush.bf16.msra.mxu0 %v4016
  %4103 = vmatpush.bf16.msra.mxu0 %v4014
  %4104 = vmatpush.bf16.msra.mxu0 %v4012
  %4105 = vmatpush.bf16.msra.mxu0 %v4010
  %4106 = vmatpush.bf16.msra.mxu0 %v4008
  %4107 = vmatmul.bf16.gmra.mxu0 %v3587
  %v4108 = vpop.f32.mrf.mxu0
  %v4109 = vadd.f32 %v3907, %v4108
  %v4110 = vpop.f32.mrf.mxu0
  %v4111 = vadd.f32 %v3909, %v4110
  %4112 = vdwg.mxu0
  %4113 = vmatpush.bf16.msra.mxu0 %v4038
  %4114 = vmatpush.bf16.msra.mxu0 %v4036
  %4115 = vmatpush.bf16.msra.mxu0 %v4034
  %4116 = vmatpush.bf16.msra.mxu0 %v4032
  %4117 = vmatpush.bf16.msra.mxu0 %v4030
  %4118 = vmatpush.bf16.msra.mxu0 %v4028
  %4119 = vmatpush.bf16.msra.mxu0 %v4026
  %4120 = vmatpush.bf16.msra.mxu0 %v4024
  %4121 = vmatmul.bf16.gmra.mxu0 %v3588
  %v4122 = vpop.f32.mrf.mxu0
  %v4123 = vadd.f32 %v4109, %v4122
  %v4124 = vpop.f32.mrf.mxu0
  %v4125 = vadd.f32 %v4111, %v4124
  %4126 = vdwg.mxu0
  %s4127 = scalar_lea.vmem %s9, 16
  %v4128 = vld [vmem:[%s4127] sm:$0xf]
  %v4129 = vld [vmem:[%s4127 + $0x4] sm:$0xf]
  %v4132 = vunpack.c.l.b16 %v4128
  %v4133 = vunpack.c.l.b16 %v4129
  %v4134 = vpack.c.b16 %v4133, %v4132
  %v4136 = vsel %vm3555, %v4134, 0
  %4138 = vmatpush.bf16.msra.mxu0 0
  %4139 = vmatpush.bf16.msra.mxu0 0
  %4140 = vmatpush.bf16.msra.mxu0 0
  %4141 = vmatpush.bf16.msra.mxu0 0
  %4142 = vmatpush.bf16.msra.mxu0 0
  %4143 = vmatpush.bf16.msra.mxu0 0
  %4144 = vmatpush.bf16.msra.mxu0 %v3546
  %4145 = vmatpush.bf16.msra.mxu0 %v3544
  %4146 = vmatmul.bf16.gmra.mxu0 %v4136
  %v4147 = vpop.f32.mrf.mxu0
  %v4148 = vadd.f32 0.0, %v4147
  %v4149 = vpop.f32.mrf.mxu0
  %v4150 = vadd.f32 0.0, %v4149
  %4151 = vdwg.mxu0
  %4152 = vmatpush.bf16.msra.mxu0 0
  %4153 = vmatpush.bf16.msra.mxu0 0
  %4154 = vmatpush.bf16.msra.mxu0 0
  %4155 = vmatpush.bf16.msra.mxu0 0
  %4156 = vmatpush.bf16.msra.mxu0 0
  %4157 = vmatpush.bf16.msra.mxu0 0
  %4158 = vmatpush.bf16.msra.mxu0 %v3547
  %4159 = vmatpush.bf16.msra.mxu0 %v3545
  %4160 = vmatmul.bf16.gmra.mxu0 %v4136
  %v4161 = vpop.f32.mrf.mxu0
  %v4162 = vadd.f32 0.0, %v4161
  %v4163 = vpop.f32.mrf.mxu0
  %v4164 = vadd.f32 0.0, %v4163
  %4165 = vdwg.mxu0
  %v4166 = vpack.c.bf16 %v4150, %v4148
  %v4167 = vpack.c.bf16 %v4164, %v4162
  %s4168 = scalar_lea.vmem %s10, 512
  %v4169 = vld [vmem:[%s4168] sm:$0xff]
  %v4170 = vld [vmem:[%s4168 + $0x8] sm:$0xff]
  %v4171 = vld [vmem:[%s4168 + $0x10] sm:$0xff]
  %v4172 = vld [vmem:[%s4168 + $0x18] sm:$0xff]
  %v4173 = vld [vmem:[%s4168 + $0x20] sm:$0xff]
  %v4174 = vld [vmem:[%s4168 + $0x28] sm:$0xff]
  %v4175 = vld [vmem:[%s4168 + $0x30] sm:$0xff]
  %v4176 = vld [vmem:[%s4168 + $0x38] sm:$0xff]
  %v4177 = vld [vmem:[%s4168 + $0x40] sm:$0xff]
  %v4178 = vld [vmem:[%s4168 + $0x48] sm:$0xff]
  %v4179 = vld [vmem:[%s4168 + $0x50] sm:$0xff]
  %v4180 = vld [vmem:[%s4168 + $0x58] sm:$0xff]
  %v4181 = vld [vmem:[%s4168 + $0x60] sm:$0xff]
  %v4182 = vld [vmem:[%s4168 + $0x68] sm:$0xff]
  %v4183 = vld [vmem:[%s4168 + $0x70] sm:$0xff]
  %v4184 = vld [vmem:[%s4168 + $0x78] sm:$0xff]
  %v4185 = vld [vmem:[%s4168 + $0x80] sm:$0xff]
  %v4186 = vld [vmem:[%s4168 + $0x88] sm:$0xff]
  %v4187 = vld [vmem:[%s4168 + $0x90] sm:$0xff]
  %v4188 = vld [vmem:[%s4168 + $0x98] sm:$0xff]
  %v4189 = vld [vmem:[%s4168 + $0xa0] sm:$0xff]
  %v4190 = vld [vmem:[%s4168 + $0xa8] sm:$0xff]
  %v4191 = vld [vmem:[%s4168 + $0xb0] sm:$0xff]
  %v4192 = vld [vmem:[%s4168 + $0xb8] sm:$0xff]
  %v4193 = vld [vmem:[%s4168 + $0xc0] sm:$0xff]
  %v4194 = vld [vmem:[%s4168 + $0xc8] sm:$0xff]
  %v4195 = vld [vmem:[%s4168 + $0xd0] sm:$0xff]
  %v4196 = vld [vmem:[%s4168 + $0xd8] sm:$0xff]
  %v4197 = vld [vmem:[%s4168 + $0xe0] sm:$0xff]
  %v4198 = vld [vmem:[%s4168 + $0xe8] sm:$0xff]
  %v4199 = vld [vmem:[%s4168 + $0xf0] sm:$0xff]
  %v4200 = vld [vmem:[%s4168 + $0xf8] sm:$0xff]
  %v4233 = vunpack.c.l.b16 %v4169
  %v4234 = vunpack.c.h.b16 %v4169
  %v4235 = vunpack.c.l.b16 %v4170
  %v4236 = vunpack.c.h.b16 %v4170
  %v4237 = vunpack.c.l.b16 %v4171
  %v4238 = vunpack.c.h.b16 %v4171
  %v4239 = vunpack.c.l.b16 %v4172
  %v4240 = vunpack.c.h.b16 %v4172
  %v4241 = vunpack.c.l.b16 %v4173
  %v4242 = vunpack.c.h.b16 %v4173
  %v4243 = vunpack.c.l.b16 %v4174
  %v4244 = vunpack.c.h.b16 %v4174
  %v4245 = vunpack.c.l.b16 %v4175
  %v4246 = vunpack.c.h.b16 %v4175
  %v4247 = vunpack.c.l.b16 %v4176
  %v4248 = vunpack.c.h.b16 %v4176
  %v4249 = vunpack.c.l.b16 %v4177
  %v4250 = vunpack.c.h.b16 %v4177
  %v4251 = vunpack.c.l.b16 %v4178
  %v4252 = vunpack.c.h.b16 %v4178
  %v4253 = vunpack.c.l.b16 %v4179
  %v4254 = vunpack.c.h.b16 %v4179
  %v4255 = vunpack.c.l.b16 %v4180
  %v4256 = vunpack.c.h.b16 %v4180
  %v4257 = vunpack.c.l.b16 %v4181
  %v4258 = vunpack.c.h.b16 %v4181
  %v4259 = vunpack.c.l.b16 %v4182
  %v4260 = vunpack.c.h.b16 %v4182
  %v4261 = vunpack.c.l.b16 %v4183
  %v4262 = vunpack.c.h.b16 %v4183
  %v4263 = vunpack.c.l.b16 %v4184
  %v4264 = vunpack.c.h.b16 %v4184
  %v4265 = vunpack.c.l.b16 %v4185
  %v4266 = vunpack.c.h.b16 %v4185
  %v4267 = vunpack.c.l.b16 %v4186
  %v4268 = vunpack.c.h.b16 %v4186
  %v4269 = vunpack.c.l.b16 %v4187
  %v4270 = vunpack.c.h.b16 %v4187
  %v4271 = vunpack.c.l.b16 %v4188
  %v4272 = vunpack.c.h.b16 %v4188
  %v4273 = vunpack.c.l.b16 %v4189
  %v4274 = vunpack.c.h.b16 %v4189
  %v4275 = vunpack.c.l.b16 %v4190
  %v4276 = vunpack.c.h.b16 %v4190
  %v4277 = vunpack.c.l.b16 %v4191
  %v4278 = vunpack.c.h.b16 %v4191
  %v4279 = vunpack.c.l.b16 %v4192
  %v4280 = vunpack.c.h.b16 %v4192
  %v4281 = vunpack.c.l.b16 %v4193
  %v4282 = vunpack.c.h.b16 %v4193
  %v4283 = vunpack.c.l.b16 %v4194
  %v4284 = vunpack.c.h.b16 %v4194
  %v4285 = vunpack.c.l.b16 %v4195
  %v4286 = vunpack.c.h.b16 %v4195
  %v4287 = vunpack.c.l.b16 %v4196
  %v4288 = vunpack.c.h.b16 %v4196
  %v4289 = vunpack.c.l.b16 %v4197
  %v4290 = vunpack.c.h.b16 %v4197
  %v4291 = vunpack.c.l.b16 %v4198
  %v4292 = vunpack.c.h.b16 %v4198
  %v4293 = vunpack.c.l.b16 %v4199
  %v4294 = vunpack.c.h.b16 %v4199
  %v4295 = vunpack.c.l.b16 %v4200
  %v4296 = vunpack.c.h.b16 %v4200
  %v4297 = vpack.c.b16 %v4235, %v4233
  %v4298 = vpack.c.b16 %v4236, %v4234
  %v4299 = vpack.c.b16 %v4239, %v4237
  %v4300 = vpack.c.b16 %v4240, %v4238
  %v4301 = vpack.c.b16 %v4243, %v4241
  %v4302 = vpack.c.b16 %v4244, %v4242
  %v4303 = vpack.c.b16 %v4247, %v4245
  %v4304 = vpack.c.b16 %v4248, %v4246
  %v4305 = vpack.c.b16 %v4251, %v4249
  %v4306 = vpack.c.b16 %v4252, %v4250
  %v4307 = vpack.c.b16 %v4255, %v4253
  %v4308 = vpack.c.b16 %v4256, %v4254
  %v4309 = vpack.c.b16 %v4259, %v4257
  %v4310 = vpack.c.b16 %v4260, %v4258
  %v4311 = vpack.c.b16 %v4263, %v4261
  %v4312 = vpack.c.b16 %v4264, %v4262
  %v4313 = vpack.c.b16 %v4267, %v4265
  %v4314 = vpack.c.b16 %v4268, %v4266
  %v4315 = vpack.c.b16 %v4271, %v4269
  %v4316 = vpack.c.b16 %v4272, %v4270
  %v4317 = vpack.c.b16 %v4275, %v4273
  %v4318 = vpack.c.b16 %v4276, %v4274
  %v4319 = vpack.c.b16 %v4279, %v4277
  %v4320 = vpack.c.b16 %v4280, %v4278
  %v4321 = vpack.c.b16 %v4283, %v4281
  %v4322 = vpack.c.b16 %v4284, %v4282
  %v4323 = vpack.c.b16 %v4287, %v4285
  %v4324 = vpack.c.b16 %v4288, %v4286
  %v4325 = vpack.c.b16 %v4291, %v4289
  %v4326 = vpack.c.b16 %v4292, %v4290
  %v4327 = vpack.c.b16 %v4295, %v4293
  %v4328 = vpack.c.b16 %v4296, %v4294
  %4361 = vmatpush.bf16.msra.mxu0 %v4311
  %4362 = vmatpush.bf16.msra.mxu0 %v4309
  %4363 = vmatpush.bf16.msra.mxu0 %v4307
  %4364 = vmatpush.bf16.msra.mxu0 %v4305
  %4365 = vmatpush.bf16.msra.mxu0 %v4303
  %4366 = vmatpush.bf16.msra.mxu0 %v4301
  %4367 = vmatpush.bf16.msra.mxu0 %v4299
  %4368 = vmatpush.bf16.msra.mxu0 %v4297
  %4369 = vmatmul.bf16.gmra.mxu0 %v4166
  %v4370 = vpop.f32.mrf.mxu0
  %v4371 = vadd.f32 0.0, %v4370
  %v4372 = vpop.f32.mrf.mxu0
  %v4373 = vadd.f32 0.0, %v4372
  %4374 = vdwg.mxu0
  %4375 = vmatpush.bf16.msra.mxu0 %v4327
  %4376 = vmatpush.bf16.msra.mxu0 %v4325
  %4377 = vmatpush.bf16.msra.mxu0 %v4323
  %4378 = vmatpush.bf16.msra.mxu0 %v4321
  %4379 = vmatpush.bf16.msra.mxu0 %v4319
  %4380 = vmatpush.bf16.msra.mxu0 %v4317
  %4381 = vmatpush.bf16.msra.mxu0 %v4315
  %4382 = vmatpush.bf16.msra.mxu0 %v4313
  %4383 = vmatmul.bf16.gmra.mxu0 %v4167
  %v4384 = vpop.f32.mrf.mxu0
  %v4385 = vadd.f32 %v4371, %v4384
  %v4386 = vpop.f32.mrf.mxu0
  %v4387 = vadd.f32 %v4373, %v4386
  %4388 = vdwg.mxu0
  %4389 = vmatpush.bf16.msra.mxu0 %v4312
  %4390 = vmatpush.bf16.msra.mxu0 %v4310
  %4391 = vmatpush.bf16.msra.mxu0 %v4308
  %4392 = vmatpush.bf16.msra.mxu0 %v4306
  %4393 = vmatpush.bf16.msra.mxu0 %v4304
  %4394 = vmatpush.bf16.msra.mxu0 %v4302
  %4395 = vmatpush.bf16.msra.mxu0 %v4300
  %4396 = vmatpush.bf16.msra.mxu0 %v4298
  %4397 = vmatmul.bf16.gmra.mxu0 %v4166
  %v4398 = vpop.f32.mrf.mxu0
  %v4399 = vadd.f32 0.0, %v4398
  %v4400 = vpop.f32.mrf.mxu0
  %v4401 = vadd.f32 0.0, %v4400
  %4402 = vdwg.mxu0
  %4403 = vmatpush.bf16.msra.mxu0 %v4328
  %4404 = vmatpush.bf16.msra.mxu0 %v4326
  %4405 = vmatpush.bf16.msra.mxu0 %v4324
  %4406 = vmatpush.bf16.msra.mxu0 %v4322
  %4407 = vmatpush.bf16.msra.mxu0 %v4320
  %4408 = vmatpush.bf16.msra.mxu0 %v4318
  %4409 = vmatpush.bf16.msra.mxu0 %v4316
  %4410 = vmatpush.bf16.msra.mxu0 %v4314
  %4411 = vmatmul.bf16.gmra.mxu0 %v4167
  %v4412 = vpop.f32.mrf.mxu0
  %v4413 = vadd.f32 %v4399, %v4412
  %v4414 = vpop.f32.mrf.mxu0
  %v4415 = vadd.f32 %v4401, %v4414
  %4416 = vdwg.mxu0
  %v4417 = vadd.f32 %v4095, %v4385
  %v4418 = vadd.f32 %v4123, %v4413
  %v4419 = vadd.f32 %v4097, %v4387
  %v4420 = vadd.f32 %v4125, %v4415
  %s4421 = scalar_lea.vmem %s9, 24
  %v4422 = vld [vmem:[%s4421] sm:$0xf]
  %v4423 = vld [vmem:[%s4421 + $0x4] sm:$0xf]
  %v4426 = vunpack.c.l.b16 %v4422
  %v4427 = vunpack.c.l.b16 %v4423
  %v4428 = vpack.c.b16 %v4427, %v4426
  %v4430 = vsel %vm3555, %v4428, 0
  %4432 = vmatpush.bf16.msra.mxu0 0
  %4433 = vmatpush.bf16.msra.mxu0 0
  %4434 = vmatpush.bf16.msra.mxu0 0
  %4435 = vmatpush.bf16.msra.mxu0 0
  %4436 = vmatpush.bf16.msra.mxu0 0
  %4437 = vmatpush.bf16.msra.mxu0 0
  %4438 = vmatpush.bf16.msra.mxu0 %v3546
  %4439 = vmatpush.bf16.msra.mxu0 %v3544
  %4440 = vmatmul.bf16.gmra.mxu0 %v4430
  %v4441 = vpop.f32.mrf.mxu0
  %v4442 = vadd.f32 0.0, %v4441
  %v4443 = vpop.f32.mrf.mxu0
  %v4444 = vadd.f32 0.0, %v4443
  %4445 = vdwg.mxu0
  %4446 = vmatpush.bf16.msra.mxu0 0
  %4447 = vmatpush.bf16.msra.mxu0 0
  %4448 = vmatpush.bf16.msra.mxu0 0
  %4449 = vmatpush.bf16.msra.mxu0 0
  %4450 = vmatpush.bf16.msra.mxu0 0
  %4451 = vmatpush.bf16.msra.mxu0 0
  %4452 = vmatpush.bf16.msra.mxu0 %v3547
  %4453 = vmatpush.bf16.msra.mxu0 %v3545
  %4454 = vmatmul.bf16.gmra.mxu0 %v4430
  %v4455 = vpop.f32.mrf.mxu0
  %v4456 = vadd.f32 0.0, %v4455
  %v4457 = vpop.f32.mrf.mxu0
  %v4458 = vadd.f32 0.0, %v4457
  %4459 = vdwg.mxu0
  %v4460 = vpack.c.bf16 %v4444, %v4442
  %v4461 = vpack.c.bf16 %v4458, %v4456
  %s4462 = scalar_lea.vmem %s10, 768
  %v4463 = vld [vmem:[%s4462] sm:$0xff]
  %v4464 = vld [vmem:[%s4462 + $0x8] sm:$0xff]
  %v4465 = vld [vmem:[%s4462 + $0x10] sm:$0xff]
  %v4466 = vld [vmem:[%s4462 + $0x18] sm:$0xff]
  %v4467 = vld [vmem:[%s4462 + $0x20] sm:$0xff]
  %v4468 = vld [vmem:[%s4462 + $0x28] sm:$0xff]
  %v4469 = vld [vmem:[%s4462 + $0x30] sm:$0xff]
  %v4470 = vld [vmem:[%s4462 + $0x38] sm:$0xff]
  %v4471 = vld [vmem:[%s4462 + $0x40] sm:$0xff]
  %v4472 = vld [vmem:[%s4462 + $0x48] sm:$0xff]
  %v4473 = vld [vmem:[%s4462 + $0x50] sm:$0xff]
  %v4474 = vld [vmem:[%s4462 + $0x58] sm:$0xff]
  %v4475 = vld [vmem:[%s4462 + $0x60] sm:$0xff]
  %v4476 = vld [vmem:[%s4462 + $0x68] sm:$0xff]
  %v4477 = vld [vmem:[%s4462 + $0x70] sm:$0xff]
  %v4478 = vld [vmem:[%s4462 + $0x78] sm:$0xff]
  %v4479 = vld [vmem:[%s4462 + $0x80] sm:$0xff]
  %v4480 = vld [vmem:[%s4462 + $0x88] sm:$0xff]
  %v4481 = vld [vmem:[%s4462 + $0x90] sm:$0xff]
  %v4482 = vld [vmem:[%s4462 + $0x98] sm:$0xff]
  %v4483 = vld [vmem:[%s4462 + $0xa0] sm:$0xff]
  %v4484 = vld [vmem:[%s4462 + $0xa8] sm:$0xff]
  %v4485 = vld [vmem:[%s4462 + $0xb0] sm:$0xff]
  %v4486 = vld [vmem:[%s4462 + $0xb8] sm:$0xff]
  %v4487 = vld [vmem:[%s4462 + $0xc0] sm:$0xff]
  %v4488 = vld [vmem:[%s4462 + $0xc8] sm:$0xff]
  %v4489 = vld [vmem:[%s4462 + $0xd0] sm:$0xff]
  %v4490 = vld [vmem:[%s4462 + $0xd8] sm:$0xff]
  %v4491 = vld [vmem:[%s4462 + $0xe0] sm:$0xff]
  %v4492 = vld [vmem:[%s4462 + $0xe8] sm:$0xff]
  %v4493 = vld [vmem:[%s4462 + $0xf0] sm:$0xff]
  %v4494 = vld [vmem:[%s4462 + $0xf8] sm:$0xff]
  %v4527 = vunpack.c.l.b16 %v4463
  %v4528 = vunpack.c.h.b16 %v4463
  %v4529 = vunpack.c.l.b16 %v4464
  %v4530 = vunpack.c.h.b16 %v4464
  %v4531 = vunpack.c.l.b16 %v4465
  %v4532 = vunpack.c.h.b16 %v4465
  %v4533 = vunpack.c.l.b16 %v4466
  %v4534 = vunpack.c.h.b16 %v4466
  %v4535 = vunpack.c.l.b16 %v4467
  %v4536 = vunpack.c.h.b16 %v4467
  %v4537 = vunpack.c.l.b16 %v4468
  %v4538 = vunpack.c.h.b16 %v4468
  %v4539 = vunpack.c.l.b16 %v4469
  %v4540 = vunpack.c.h.b16 %v4469
  %v4541 = vunpack.c.l.b16 %v4470
  %v4542 = vunpack.c.h.b16 %v4470
  %v4543 = vunpack.c.l.b16 %v4471
  %v4544 = vunpack.c.h.b16 %v4471
  %v4545 = vunpack.c.l.b16 %v4472
  %v4546 = vunpack.c.h.b16 %v4472
  %v4547 = vunpack.c.l.b16 %v4473
  %v4548 = vunpack.c.h.b16 %v4473
  %v4549 = vunpack.c.l.b16 %v4474
  %v4550 = vunpack.c.h.b16 %v4474
  %v4551 = vunpack.c.l.b16 %v4475
  %v4552 = vunpack.c.h.b16 %v4475
  %v4553 = vunpack.c.l.b16 %v4476
  %v4554 = vunpack.c.h.b16 %v4476
  %v4555 = vunpack.c.l.b16 %v4477
  %v4556 = vunpack.c.h.b16 %v4477
  %v4557 = vunpack.c.l.b16 %v4478
  %v4558 = vunpack.c.h.b16 %v4478
  %v4559 = vunpack.c.l.b16 %v4479
  %v4560 = vunpack.c.h.b16 %v4479
  %v4561 = vunpack.c.l.b16 %v4480
  %v4562 = vunpack.c.h.b16 %v4480
  %v4563 = vunpack.c.l.b16 %v4481
  %v4564 = vunpack.c.h.b16 %v4481
  %v4565 = vunpack.c.l.b16 %v4482
  %v4566 = vunpack.c.h.b16 %v4482
  %v4567 = vunpack.c.l.b16 %v4483
  %v4568 = vunpack.c.h.b16 %v4483
  %v4569 = vunpack.c.l.b16 %v4484
  %v4570 = vunpack.c.h.b16 %v4484
  %v4571 = vunpack.c.l.b16 %v4485
  %v4572 = vunpack.c.h.b16 %v4485
  %v4573 = vunpack.c.l.b16 %v4486
  %v4574 = vunpack.c.h.b16 %v4486
  %v4575 = vunpack.c.l.b16 %v4487
  %v4576 = vunpack.c.h.b16 %v4487
  %v4577 = vunpack.c.l.b16 %v4488
  %v4578 = vunpack.c.h.b16 %v4488
  %v4579 = vunpack.c.l.b16 %v4489
  %v4580 = vunpack.c.h.b16 %v4489
  %v4581 = vunpack.c.l.b16 %v4490
  %v4582 = vunpack.c.h.b16 %v4490
  %v4583 = vunpack.c.l.b16 %v4491
  %v4584 = vunpack.c.h.b16 %v4491
  %v4585 = vunpack.c.l.b16 %v4492
  %v4586 = vunpack.c.h.b16 %v4492
  %v4587 = vunpack.c.l.b16 %v4493
  %v4588 = vunpack.c.h.b16 %v4493
  %v4589 = vunpack.c.l.b16 %v4494
  %v4590 = vunpack.c.h.b16 %v4494
  %v4591 = vpack.c.b16 %v4529, %v4527
  %v4592 = vpack.c.b16 %v4530, %v4528
  %v4593 = vpack.c.b16 %v4533, %v4531
  %v4594 = vpack.c.b16 %v4534, %v4532
  %v4595 = vpack.c.b16 %v4537, %v4535
  %v4596 = vpack.c.b16 %v4538, %v4536
  %v4597 = vpack.c.b16 %v4541, %v4539
  %v4598 = vpack.c.b16 %v4542, %v4540
  %v4599 = vpack.c.b16 %v4545, %v4543
  %v4600 = vpack.c.b16 %v4546, %v4544
  %v4601 = vpack.c.b16 %v4549, %v4547
  %v4602 = vpack.c.b16 %v4550, %v4548
  %v4603 = vpack.c.b16 %v4553, %v4551
  %v4604 = vpack.c.b16 %v4554, %v4552
  %v4605 = vpack.c.b16 %v4557, %v4555
  %v4606 = vpack.c.b16 %v4558, %v4556
  %v4607 = vpack.c.b16 %v4561, %v4559
  %v4608 = vpack.c.b16 %v4562, %v4560
  %v4609 = vpack.c.b16 %v4565, %v4563
  %v4610 = vpack.c.b16 %v4566, %v4564
  %v4611 = vpack.c.b16 %v4569, %v4567
  %v4612 = vpack.c.b16 %v4570, %v4568
  %v4613 = vpack.c.b16 %v4573, %v4571
  %v4614 = vpack.c.b16 %v4574, %v4572
  %v4615 = vpack.c.b16 %v4577, %v4575
  %v4616 = vpack.c.b16 %v4578, %v4576
  %v4617 = vpack.c.b16 %v4581, %v4579
  %v4618 = vpack.c.b16 %v4582, %v4580
  %v4619 = vpack.c.b16 %v4585, %v4583
  %v4620 = vpack.c.b16 %v4586, %v4584
  %v4621 = vpack.c.b16 %v4589, %v4587
  %v4622 = vpack.c.b16 %v4590, %v4588
  %4655 = vmatpush.bf16.msra.mxu0 %v4605
  %4656 = vmatpush.bf16.msra.mxu0 %v4603
  %4657 = vmatpush.bf16.msra.mxu0 %v4601
  %4658 = vmatpush.bf16.msra.mxu0 %v4599
  %4659 = vmatpush.bf16.msra.mxu0 %v4597
  %4660 = vmatpush.bf16.msra.mxu0 %v4595
  %4661 = vmatpush.bf16.msra.mxu0 %v4593
  %4662 = vmatpush.bf16.msra.mxu0 %v4591
  %4663 = vmatmul.bf16.gmra.mxu0 %v4460
  %v4664 = vpop.f32.mrf.mxu0
  %v4665 = vadd.f32 0.0, %v4664
  %v4666 = vpop.f32.mrf.mxu0
  %v4667 = vadd.f32 0.0, %v4666
  %4668 = vdwg.mxu0
  %4669 = vmatpush.bf16.msra.mxu0 %v4621
  %4670 = vmatpush.bf16.msra.mxu0 %v4619
  %4671 = vmatpush.bf16.msra.mxu0 %v4617
  %4672 = vmatpush.bf16.msra.mxu0 %v4615
  %4673 = vmatpush.bf16.msra.mxu0 %v4613
  %4674 = vmatpush.bf16.msra.mxu0 %v4611
  %4675 = vmatpush.bf16.msra.mxu0 %v4609
  %4676 = vmatpush.bf16.msra.mxu0 %v4607
  %4677 = vmatmul.bf16.gmra.mxu0 %v4461
  %v4678 = vpop.f32.mrf.mxu0
  %v4679 = vadd.f32 %v4665, %v4678
  %v4680 = vpop.f32.mrf.mxu0
  %v4681 = vadd.f32 %v4667, %v4680
  %4682 = vdwg.mxu0
  %4683 = vmatpush.bf16.msra.mxu0 %v4606
  %4684 = vmatpush.bf16.msra.mxu0 %v4604
  %4685 = vmatpush.bf16.msra.mxu0 %v4602
  %4686 = vmatpush.bf16.msra.mxu0 %v4600
  %4687 = vmatpush.bf16.msra.mxu0 %v4598
  %4688 = vmatpush.bf16.msra.mxu0 %v4596
  %4689 = vmatpush.bf16.msra.mxu0 %v4594
  %4690 = vmatpush.bf16.msra.mxu0 %v4592
  %4691 = vmatmul.bf16.gmra.mxu0 %v4460
  %v4692 = vpop.f32.mrf.mxu0
  %v4693 = vadd.f32 0.0, %v4692
  %v4694 = vpop.f32.mrf.mxu0
  %v4695 = vadd.f32 0.0, %v4694
  %4696 = vdwg.mxu0
  %4697 = vmatpush.bf16.msra.mxu0 %v4622
  %4698 = vmatpush.bf16.msra.mxu0 %v4620
  %4699 = vmatpush.bf16.msra.mxu0 %v4618
  %4700 = vmatpush.bf16.msra.mxu0 %v4616
  %4701 = vmatpush.bf16.msra.mxu0 %v4614
  %4702 = vmatpush.bf16.msra.mxu0 %v4612
  %4703 = vmatpush.bf16.msra.mxu0 %v4610
  %4704 = vmatpush.bf16.msra.mxu0 %v4608
  %4705 = vmatmul.bf16.gmra.mxu0 %v4461
  %v4706 = vpop.f32.mrf.mxu0
  %v4707 = vadd.f32 %v4693, %v4706
  %v4708 = vpop.f32.mrf.mxu0
  %v4709 = vadd.f32 %v4695, %v4708
  %4710 = vdwg.mxu0
  %v4711 = vadd.f32 %v4417, %v4679
  %v4712 = vadd.f32 %v4418, %v4707
  %v4713 = vadd.f32 %v4419, %v4681
  %v4714 = vadd.f32 %v4420, %v4709
  %v4715 = vadd.f32 %v4711, %v4713
  %v4716 = vrot.slane %v4715, 4
  %v4717 = vadd.f32 %v4715, %v4716
  %v4718 = vrot.slane %v4717, 2
  %v4719 = vadd.f32 %v4717, %v4718
  %v4720 = vrot.slane %v4719, 1
  %v4721 = vadd.f32 %v4719, %v4720
  %v4722 = vadd.f32 %v4712, %v4714
  %v4723 = vrot.slane %v4722, 4
  %v4724 = vadd.f32 %v4722, %v4723
  %v4725 = vrot.slane %v4724, 2
  %v4726 = vadd.f32 %v4724, %v4725
  %v4727 = vrot.slane %v4726, 1
  %v4728 = vadd.f32 %v4726, %v4727
  %v4729 = vmul.f32 %v4711, %v4711
  %v4730 = vmul.f32 %v4712, %v4712
  %v4731 = vmul.f32 %v4713, %v4713
  %v4732 = vmul.f32 %v4714, %v4714
  %v4733 = vadd.f32 %v4729, %v4731
  %v4734 = vrot.slane %v4733, 4
  %v4735 = vadd.f32 %v4733, %v4734
  %v4736 = vrot.slane %v4735, 2
  %v4737 = vadd.f32 %v4735, %v4736
  %v4738 = vrot.slane %v4737, 1
  %v4739 = vadd.f32 %v4737, %v4738
  %v4740 = vadd.f32 %v4730, %v4732
  %v4741 = vrot.slane %v4740, 4
  %v4742 = vadd.f32 %v4740, %v4741
  %v4743 = vrot.slane %v4742, 2
  %v4744 = vadd.f32 %v4742, %v4743
  %v4745 = vrot.slane %v4744, 1
  %v4746 = vadd.f32 %v4744, %v4745
  %v4747 = vld [vmem:[%s11] sm:$0xff]
  %v4748 = vld [vmem:[%s11 + $0x8] sm:$0xff]
  %v4749 = vld [vmem:[%s11 + $0x10] sm:$0xff]
  %v4750 = vld [vmem:[%s11 + $0x18] sm:$0xff]
  %v4751 = vld [vmem:[%s11 + $0x20] sm:$0xff]
  %v4752 = vld [vmem:[%s11 + $0x28] sm:$0xff]
  %v4753 = vld [vmem:[%s11 + $0x30] sm:$0xff]
  %v4754 = vld [vmem:[%s11 + $0x38] sm:$0xff]
  %v4755 = vld [vmem:[%s11 + $0x40] sm:$0xff]
  %v4756 = vld [vmem:[%s11 + $0x48] sm:$0xff]
  %v4757 = vld [vmem:[%s11 + $0x50] sm:$0xff]
  %v4758 = vld [vmem:[%s11 + $0x58] sm:$0xff]
  %v4759 = vld [vmem:[%s11 + $0x60] sm:$0xff]
  %v4760 = vld [vmem:[%s11 + $0x68] sm:$0xff]
  %v4761 = vld [vmem:[%s11 + $0x70] sm:$0xff]
  %v4762 = vld [vmem:[%s11 + $0x78] sm:$0xff]
  %v4763 = vld [vmem:[%s11 + $0x80] sm:$0xff]
  %v4764 = vld [vmem:[%s11 + $0x88] sm:$0xff]
  %v4765 = vld [vmem:[%s11 + $0x90] sm:$0xff]
  %v4766 = vld [vmem:[%s11 + $0x98] sm:$0xff]
  %v4767 = vld [vmem:[%s11 + $0xa0] sm:$0xff]
  %v4768 = vld [vmem:[%s11 + $0xa8] sm:$0xff]
  %v4769 = vld [vmem:[%s11 + $0xb0] sm:$0xff]
  %v4770 = vld [vmem:[%s11 + $0xb8] sm:$0xff]
  %v4771 = vld [vmem:[%s11 + $0xc0] sm:$0xff]
  %v4772 = vld [vmem:[%s11 + $0xc8] sm:$0xff]
  %v4773 = vld [vmem:[%s11 + $0xd0] sm:$0xff]
  %v4774 = vld [vmem:[%s11 + $0xd8] sm:$0xff]
  %v4775 = vld [vmem:[%s11 + $0xe0] sm:$0xff]
  %v4776 = vld [vmem:[%s11 + $0xe8] sm:$0xff]
  %v4777 = vld [vmem:[%s11 + $0xf0] sm:$0xff]
  %v4778 = vld [vmem:[%s11 + $0xf8] sm:$0xff]
  %4779 = vmatpush.msra.mxu0 %v4762
  %4780 = vmatpush.msra.mxu0 %v4761
  %4781 = vmatpush.msra.mxu0 %v4760
  %4782 = vmatpush.msra.mxu0 %v4759
  %4783 = vmatpush.msra.mxu0 %v4758
  %4784 = vmatpush.msra.mxu0 %v4757
  %4785 = vmatpush.msra.mxu0 %v4756
  %4786 = vmatpush.msra.mxu0 %v4755
  %4787 = vmatpush.msra.mxu0 %v4754
  %4788 = vmatpush.msra.mxu0 %v4753
  %4789 = vmatpush.msra.mxu0 %v4752
  %4790 = vmatpush.msra.mxu0 %v4751
  %4791 = vmatpush.msra.mxu0 %v4750
  %4792 = vmatpush.msra.mxu0 %v4749
  %4793 = vmatpush.msra.mxu0 %v4748
  %4794 = vmatpush.msra.mxu0 %v4747
  %4795 = vmatmul.f32.gmra.mxu0 %v4721
  %v4796 = vpop.f32.mrf.mxu0
  %v4797 = vadd.f32 0.0, %v4796
  %4798 = vdwg.mxu0
  %4799 = vmatpush.msra.mxu0 %v4778
  %4800 = vmatpush.msra.mxu0 %v4777
  %4801 = vmatpush.msra.mxu0 %v4776
  %4802 = vmatpush.msra.mxu0 %v4775
  %4803 = vmatpush.msra.mxu0 %v4774
  %4804 = vmatpush.msra.mxu0 %v4773
  %4805 = vmatpush.msra.mxu0 %v4772
  %4806 = vmatpush.msra.mxu0 %v4771
  %4807 = vmatpush.msra.mxu0 %v4770
  %4808 = vmatpush.msra.mxu0 %v4769
  %4809 = vmatpush.msra.mxu0 %v4768
  %4810 = vmatpush.msra.mxu0 %v4767
  %4811 = vmatpush.msra.mxu0 %v4766
  %4812 = vmatpush.msra.mxu0 %v4765
  %4813 = vmatpush.msra.mxu0 %v4764
  %4814 = vmatpush.msra.mxu0 %v4763
  %4815 = vmatmul.f32.gmra.mxu0 %v4728
  %v4816 = vpop.f32.mrf.mxu0
  %v4817 = vadd.f32 %v4797, %v4816
  %4818 = vdwg.mxu0
  %4819 = vmatpush.msra.mxu0 %v4762
  %4820 = vmatpush.msra.mxu0 %v4761
  %4821 = vmatpush.msra.mxu0 %v4760
  %4822 = vmatpush.msra.mxu0 %v4759
  %4823 = vmatpush.msra.mxu0 %v4758
  %4824 = vmatpush.msra.mxu0 %v4757
  %4825 = vmatpush.msra.mxu0 %v4756
  %4826 = vmatpush.msra.mxu0 %v4755
  %4827 = vmatpush.msra.mxu0 %v4754
  %4828 = vmatpush.msra.mxu0 %v4753
  %4829 = vmatpush.msra.mxu0 %v4752
  %4830 = vmatpush.msra.mxu0 %v4751
  %4831 = vmatpush.msra.mxu0 %v4750
  %4832 = vmatpush.msra.mxu0 %v4749
  %4833 = vmatpush.msra.mxu0 %v4748
  %4834 = vmatpush.msra.mxu0 %v4747
  %4835 = vmatmul.f32.gmra.mxu0 %v4739
  %v4836 = vpop.f32.mrf.mxu0
  %v4837 = vadd.f32 0.0, %v4836
  %4838 = vdwg.mxu0
  %4839 = vmatpush.msra.mxu0 %v4778
  %4840 = vmatpush.msra.mxu0 %v4777
  %4841 = vmatpush.msra.mxu0 %v4776
  %4842 = vmatpush.msra.mxu0 %v4775
  %4843 = vmatpush.msra.mxu0 %v4774
  %4844 = vmatpush.msra.mxu0 %v4773
  %4845 = vmatpush.msra.mxu0 %v4772
  %4846 = vmatpush.msra.mxu0 %v4771
  %4847 = vmatpush.msra.mxu0 %v4770
  %4848 = vmatpush.msra.mxu0 %v4769
  %4849 = vmatpush.msra.mxu0 %v4768
  %4850 = vmatpush.msra.mxu0 %v4767
  %4851 = vmatpush.msra.mxu0 %v4766
  %4852 = vmatpush.msra.mxu0 %v4765
  %4853 = vmatpush.msra.mxu0 %v4764
  %4854 = vmatpush.msra.mxu0 %v4763
  %4855 = vmatmul.f32.gmra.mxu0 %v4746
  %v4856 = vpop.f32.mrf.mxu0
  %v4857 = vadd.f32 %v4837, %v4856
  %4858 = vdwg.mxu0
  %v4859 = vmul.f32 %v4817, 0.0078125
  %v4860 = vmul.f32 %v4857, 0.0078125
  %v4861 = vmul.f32 %v4859, %v4859
  %v4862 = vsub.f32 %v4860, %v4861
  %v4863 = vmax.f32 %v4862, 0.0
  %v4864 = vld [vmem:[%s13] sm:$0x1]
  %v4865 = vadd.f32 %v4863, 1e-05
  %v4866 = vrsqrt.pop %v4865
  %v4867 = vmul.f32 %v4866, %v4865
  %v4868 = vmul.f32 %v4867, %v4866
  %v4869 = vmul.f32 0.5, %v4868
  %v4870 = vsub.f32 1.5, %v4869
  %v4871 = vmul.f32 %v4866, %v4870
  %vm4872 = vweird.f32 %v4865
  %vm4873 = vweird.f32 %v4866
  %vm4874 = vmor %vm4872, %vm4873
  %v4875 = vsel %vm4874, %v4866, %v4871
  %v4876 = vmul.f32 %v4864, %v4875
  %v4877 = vld [vmem:[%s14] sm:$0x1]
  %v4878 = vmul.f32 %v4859, %v4876
  %v4879 = vsub.f32 %v4877, %v4878
  %v4880 = vld [vmem:[%s12] sm:$0xff]
  %v4881 = vld [vmem:[%s12 + $0x8] sm:$0xff]
  %v4882 = vld [vmem:[%s12 + $0x10] sm:$0xff]
  %v4883 = vld [vmem:[%s12 + $0x18] sm:$0xff]
  %v4884 = vld [vmem:[%s12 + $0x20] sm:$0xff]
  %v4885 = vld [vmem:[%s12 + $0x28] sm:$0xff]
  %v4886 = vld [vmem:[%s12 + $0x30] sm:$0xff]
  %v4887 = vld [vmem:[%s12 + $0x38] sm:$0xff]
  %v4889 = vsel %vm3555, %v4876, 0
  %4891 = vmatpush.msra.mxu0 0.0
  %4892 = vmatpush.msra.mxu0 0.0
  %4893 = vmatpush.msra.mxu0 0.0
  %4894 = vmatpush.msra.mxu0 0.0
  %4895 = vmatpush.msra.mxu0 0.0
  %4896 = vmatpush.msra.mxu0 0.0
  %4897 = vmatpush.msra.mxu0 0.0
  %4898 = vmatpush.msra.mxu0 0.0
  %4899 = vmatpush.msra.mxu0 0.0
  %4900 = vmatpush.msra.mxu0 0.0
  %4901 = vmatpush.msra.mxu0 0.0
  %4902 = vmatpush.msra.mxu0 0.0
  %4903 = vmatpush.msra.mxu0 %v4886
  %4904 = vmatpush.msra.mxu0 %v4884
  %4905 = vmatpush.msra.mxu0 %v4882
  %4906 = vmatpush.msra.mxu0 %v4880
  %4907 = vmatmul.f32.gmra.mxu0 %v4889
  %v4908 = vpop.f32.mrf.mxu0
  %v4909 = vadd.f32 0.0, %v4908
  %4910 = vdwg.mxu0
  %4911 = vmatpush.msra.mxu0 0.0
  %4912 = vmatpush.msra.mxu0 0.0
  %4913 = vmatpush.msra.mxu0 0.0
  %4914 = vmatpush.msra.mxu0 0.0
  %4915 = vmatpush.msra.mxu0 0.0
  %4916 = vmatpush.msra.mxu0 0.0
  %4917 = vmatpush.msra.mxu0 0.0
  %4918 = vmatpush.msra.mxu0 0.0
  %4919 = vmatpush.msra.mxu0 0.0
  %4920 = vmatpush.msra.mxu0 0.0
  %4921 = vmatpush.msra.mxu0 0.0
  %4922 = vmatpush.msra.mxu0 0.0
  %4923 = vmatpush.msra.mxu0 %v4887
  %4924 = vmatpush.msra.mxu0 %v4885
  %4925 = vmatpush.msra.mxu0 %v4883
  %4926 = vmatpush.msra.mxu0 %v4881
  %4927 = vmatmul.f32.gmra.mxu0 %v4889
  %v4928 = vpop.f32.mrf.mxu0
  %v4929 = vadd.f32 0.0, %v4928
  %4930 = vdwg.mxu0
  %v4931 = vperm.slane %v4909, 0
  %v4932 = vperm.slane %v4929, 0
  %v4933 = vmul.f32 %v4711, %v4931
  %v4934 = vmul.f32 %v4712, %v4932
  %v4935 = vmul.f32 %v4713, %v4931
  %v4936 = vmul.f32 %v4714, %v4932
  %v4938 = vsel %vm3555, %v4879, 0
  %4940 = vmatpush.msra.mxu0 0.0
  %4941 = vmatpush.msra.mxu0 0.0
  %4942 = vmatpush.msra.mxu0 0.0
  %4943 = vmatpush.msra.mxu0 0.0
  %4944 = vmatpush.msra.mxu0 0.0
  %4945 = vmatpush.msra.mxu0 0.0
  %4946 = vmatpush.msra.mxu0 0.0
  %4947 = vmatpush.msra.mxu0 0.0
  %4948 = vmatpush.msra.mxu0 0.0
  %4949 = vmatpush.msra.mxu0 0.0
  %4950 = vmatpush.msra.mxu0 0.0
  %4951 = vmatpush.msra.mxu0 0.0
  %4952 = vmatpush.msra.mxu0 %v4886
  %4953 = vmatpush.msra.mxu0 %v4884
  %4954 = vmatpush.msra.mxu0 %v4882
  %4955 = vmatpush.msra.mxu0 %v4880
  %4956 = vmatmul.f32.gmra.mxu0 %v4938
  %v4957 = vpop.f32.mrf.mxu0
  %v4958 = vadd.f32 0.0, %v4957
  %4959 = vdwg.mxu0
  %4960 = vmatpush.msra.mxu0 0.0
  %4961 = vmatpush.msra.mxu0 0.0
  %4962 = vmatpush.msra.mxu0 0.0
  %4963 = vmatpush.msra.mxu0 0.0
  %4964 = vmatpush.msra.mxu0 0.0
  %4965 = vmatpush.msra.mxu0 0.0
  %4966 = vmatpush.msra.mxu0 0.0
  %4967 = vmatpush.msra.mxu0 0.0
  %4968 = vmatpush.msra.mxu0 0.0
  %4969 = vmatpush.msra.mxu0 0.0
  %4970 = vmatpush.msra.mxu0 0.0
  %4971 = vmatpush.msra.mxu0 0.0
  %4972 = vmatpush.msra.mxu0 %v4887
  %4973 = vmatpush.msra.mxu0 %v4885
  %4974 = vmatpush.msra.mxu0 %v4883
  %4975 = vmatpush.msra.mxu0 %v4881
  %4976 = vmatmul.f32.gmra.mxu0 %v4938
  %v4977 = vpop.f32.mrf.mxu0
  %v4978 = vadd.f32 0.0, %v4977
  %4979 = vdwg.mxu0
  %v4980 = vperm.slane %v4958, 0
  %v4981 = vperm.slane %v4978, 0
  %v4982 = vadd.f32 %v4933, %v4980
  %v4983 = vadd.f32 %v4934, %v4981
  %v4984 = vadd.f32 %v4935, %v4980
  %v4985 = vadd.f32 %v4936, %v4981
  %vm4986 = vcmp.ge.f32.partialorder %v4982, 0.0
  %vm4987 = vcmp.ge.f32.partialorder %v4983, 0.0
  %vm4988 = vcmp.ge.f32.partialorder %v4984, 0.0
  %vm4989 = vcmp.ge.f32.partialorder %v4985, 0.0
  %v4990 = vmul.f32 %v4982, 0.2
  %v4991 = vmul.f32 %v4983, 0.2
  %v4992 = vmul.f32 %v4984, 0.2
  %v4993 = vmul.f32 %v4985, 0.2
  %v4994 = vsel %vm4986, %v4982, %v4990
  %v4995 = vsel %vm4987, %v4983, %v4991
  %v4996 = vsel %vm4988, %v4984, %v4992
  %v4997 = vsel %vm4989, %v4985, %v4993
  %v4998 = vpack.c.bf16 %v4996, %v4994
  %v4999 = vpack.c.bf16 %v4997, %v4995
  %v5000 = vld [vmem:[%s15] sm:$0xf]
  %v5002 = vsel %vm3413, %v5000, 0
  %5004 = vmatpush.bf16.msra.mxu0 0
  %5005 = vmatpush.bf16.msra.mxu0 0
  %5006 = vmatpush.bf16.msra.mxu0 0
  %5007 = vmatpush.bf16.msra.mxu0 0
  %5008 = vmatpush.bf16.msra.mxu0 0
  %5009 = vmatpush.bf16.msra.mxu0 0
  %5010 = vmatpush.bf16.msra.mxu0 0
  %5011 = vmatpush.bf16.msra.mxu0 %v4998
  %5012 = vmatmul.bf16.gmra.mxu0 %v5002
  %v5013 = vpop.f32.mrf.mxu0
  %v5014 = vadd.f32 0.0, %v5013
  %v5015 = vpop.f32.mrf.mxu0
  %5016 = vdwg.mxu0
  %5017 = vmatpush.bf16.msra.mxu0 0
  %5018 = vmatpush.bf16.msra.mxu0 0
  %5019 = vmatpush.bf16.msra.mxu0 0
  %5020 = vmatpush.bf16.msra.mxu0 0
  %5021 = vmatpush.bf16.msra.mxu0 0
  %5022 = vmatpush.bf16.msra.mxu0 0
  %5023 = vmatpush.bf16.msra.mxu0 0
  %5024 = vmatpush.bf16.msra.mxu0 %v4999
  %5025 = vmatmul.bf16.gmra.mxu0 %v5002
  %v5026 = vpop.f32.mrf.mxu0
  %v5027 = vadd.f32 0.0, %v5026
  %v5028 = vpop.f32.mrf.mxu0
  %5029 = vdwg.mxu0
  %v5030 = vpack.c.bf16 %v5014, %v5014
  %v5031 = vpack.c.bf16 %v5027, %v5027
  %v5032 = vld [vmem:[%s16] sm:$0xff]
  %v5033 = vld [vmem:[%s16 + $0x8] sm:$0xff]
  %v5034 = vld [vmem:[%s16 + $0x10] sm:$0xff]
  %v5035 = vld [vmem:[%s16 + $0x18] sm:$0xff]
  %v5036 = vld [vmem:[%s16 + $0x20] sm:$0xff]
  %v5037 = vld [vmem:[%s16 + $0x28] sm:$0xff]
  %v5038 = vld [vmem:[%s16 + $0x30] sm:$0xff]
  %v5039 = vld [vmem:[%s16 + $0x38] sm:$0xff]
  %v5040 = vld [vmem:[%s16 + $0x40] sm:$0xff]
  %v5041 = vld [vmem:[%s16 + $0x48] sm:$0xff]
  %v5042 = vld [vmem:[%s16 + $0x50] sm:$0xff]
  %v5043 = vld [vmem:[%s16 + $0x58] sm:$0xff]
  %v5044 = vld [vmem:[%s16 + $0x60] sm:$0xff]
  %v5045 = vld [vmem:[%s16 + $0x68] sm:$0xff]
  %v5046 = vld [vmem:[%s16 + $0x70] sm:$0xff]
  %v5047 = vld [vmem:[%s16 + $0x78] sm:$0xff]
  %v5048 = vld [vmem:[%s16 + $0x80] sm:$0xff]
  %v5049 = vld [vmem:[%s16 + $0x88] sm:$0xff]
  %v5050 = vld [vmem:[%s16 + $0x90] sm:$0xff]
  %v5051 = vld [vmem:[%s16 + $0x98] sm:$0xff]
  %v5052 = vld [vmem:[%s16 + $0xa0] sm:$0xff]
  %v5053 = vld [vmem:[%s16 + $0xa8] sm:$0xff]
  %v5054 = vld [vmem:[%s16 + $0xb0] sm:$0xff]
  %v5055 = vld [vmem:[%s16 + $0xb8] sm:$0xff]
  %v5056 = vld [vmem:[%s16 + $0xc0] sm:$0xff]
  %v5057 = vld [vmem:[%s16 + $0xc8] sm:$0xff]
  %v5058 = vld [vmem:[%s16 + $0xd0] sm:$0xff]
  %v5059 = vld [vmem:[%s16 + $0xd8] sm:$0xff]
  %v5060 = vld [vmem:[%s16 + $0xe0] sm:$0xff]
  %v5061 = vld [vmem:[%s16 + $0xe8] sm:$0xff]
  %v5062 = vld [vmem:[%s16 + $0xf0] sm:$0xff]
  %v5063 = vld [vmem:[%s16 + $0xf8] sm:$0xff]
  %s5064 = scalar_lea.vmem %s15, 4
  %v5065 = vld [vmem:[%s5064] sm:$0xf]
  %v5067 = vsel %vm3413, %v5065, 0
  %5069 = vmatpush.bf16.msra.mxu0 0
  %5070 = vmatpush.bf16.msra.mxu0 0
  %5071 = vmatpush.bf16.msra.mxu0 0
  %5072 = vmatpush.bf16.msra.mxu0 0
  %5073 = vmatpush.bf16.msra.mxu0 0
  %5074 = vmatpush.bf16.msra.mxu0 0
  %5075 = vmatpush.bf16.msra.mxu0 0
  %5076 = vmatpush.bf16.msra.mxu0 %v4998
  %5077 = vmatmul.bf16.gmra.mxu0 %v5067
  %v5078 = vpop.f32.mrf.mxu0
  %v5079 = vadd.f32 0.0, %v5078
  %v5080 = vpop.f32.mrf.mxu0
  %5081 = vdwg.mxu0
  %5082 = vmatpush.bf16.msra.mxu0 0
  %5083 = vmatpush.bf16.msra.mxu0 0
  %5084 = vmatpush.bf16.msra.mxu0 0
  %5085 = vmatpush.bf16.msra.mxu0 0
  %5086 = vmatpush.bf16.msra.mxu0 0
  %5087 = vmatpush.bf16.msra.mxu0 0
  %5088 = vmatpush.bf16.msra.mxu0 0
  %5089 = vmatpush.bf16.msra.mxu0 %v4999
  %5090 = vmatmul.bf16.gmra.mxu0 %v5067
  %v5091 = vpop.f32.mrf.mxu0
  %v5092 = vadd.f32 0.0, %v5091
  %v5093 = vpop.f32.mrf.mxu0
  %5094 = vdwg.mxu0
  %v5095 = vpack.c.bf16 %v5079, %v5079
  %v5096 = vpack.c.bf16 %v5092, %v5092
  %s5097 = scalar_lea.vmem %s16, 256
  %v5098 = vld [vmem:[%s5097] sm:$0xff]
  %v5099 = vld [vmem:[%s5097 + $0x8] sm:$0xff]
  %v5100 = vld [vmem:[%s5097 + $0x10] sm:$0xff]
  %v5101 = vld [vmem:[%s5097 + $0x18] sm:$0xff]
  %v5102 = vld [vmem:[%s5097 + $0x20] sm:$0xff]
  %v5103 = vld [vmem:[%s5097 + $0x28] sm:$0xff]
  %v5104 = vld [vmem:[%s5097 + $0x30] sm:$0xff]
  %v5105 = vld [vmem:[%s5097 + $0x38] sm:$0xff]
  %v5106 = vld [vmem:[%s5097 + $0x40] sm:$0xff]
  %v5107 = vld [vmem:[%s5097 + $0x48] sm:$0xff]
  %v5108 = vld [vmem:[%s5097 + $0x50] sm:$0xff]
  %v5109 = vld [vmem:[%s5097 + $0x58] sm:$0xff]
  %v5110 = vld [vmem:[%s5097 + $0x60] sm:$0xff]
  %v5111 = vld [vmem:[%s5097 + $0x68] sm:$0xff]
  %v5112 = vld [vmem:[%s5097 + $0x70] sm:$0xff]
  %v5113 = vld [vmem:[%s5097 + $0x78] sm:$0xff]
  %v5114 = vld [vmem:[%s5097 + $0x80] sm:$0xff]
  %v5115 = vld [vmem:[%s5097 + $0x88] sm:$0xff]
  %v5116 = vld [vmem:[%s5097 + $0x90] sm:$0xff]
  %v5117 = vld [vmem:[%s5097 + $0x98] sm:$0xff]
  %v5118 = vld [vmem:[%s5097 + $0xa0] sm:$0xff]
  %v5119 = vld [vmem:[%s5097 + $0xa8] sm:$0xff]
  %v5120 = vld [vmem:[%s5097 + $0xb0] sm:$0xff]
  %v5121 = vld [vmem:[%s5097 + $0xb8] sm:$0xff]
  %v5122 = vld [vmem:[%s5097 + $0xc0] sm:$0xff]
  %v5123 = vld [vmem:[%s5097 + $0xc8] sm:$0xff]
  %v5124 = vld [vmem:[%s5097 + $0xd0] sm:$0xff]
  %v5125 = vld [vmem:[%s5097 + $0xd8] sm:$0xff]
  %v5126 = vld [vmem:[%s5097 + $0xe0] sm:$0xff]
  %v5127 = vld [vmem:[%s5097 + $0xe8] sm:$0xff]
  %v5128 = vld [vmem:[%s5097 + $0xf0] sm:$0xff]
  %v5129 = vld [vmem:[%s5097 + $0xf8] sm:$0xff]
  %v5162 = vunpack.c.l.b16 %v5098
  %v5163 = vunpack.c.h.b16 %v5098
  %v5164 = vunpack.c.l.b16 %v5099
  %v5165 = vunpack.c.h.b16 %v5099
  %v5166 = vunpack.c.l.b16 %v5100
  %v5167 = vunpack.c.h.b16 %v5100
  %v5168 = vunpack.c.l.b16 %v5101
  %v5169 = vunpack.c.h.b16 %v5101
  %v5170 = vunpack.c.l.b16 %v5102
  %v5171 = vunpack.c.h.b16 %v5102
  %v5172 = vunpack.c.l.b16 %v5103
  %v5173 = vunpack.c.h.b16 %v5103
  %v5174 = vunpack.c.l.b16 %v5104
  %v5175 = vunpack.c.h.b16 %v5104
  %v5176 = vunpack.c.l.b16 %v5105
  %v5177 = vunpack.c.h.b16 %v5105
  %v5178 = vunpack.c.l.b16 %v5106
  %v5179 = vunpack.c.h.b16 %v5106
  %v5180 = vunpack.c.l.b16 %v5107
  %v5181 = vunpack.c.h.b16 %v5107
  %v5182 = vunpack.c.l.b16 %v5108
  %v5183 = vunpack.c.h.b16 %v5108
  %v5184 = vunpack.c.l.b16 %v5109
  %v5185 = vunpack.c.h.b16 %v5109
  %v5186 = vunpack.c.l.b16 %v5110
  %v5187 = vunpack.c.h.b16 %v5110
  %v5188 = vunpack.c.l.b16 %v5111
  %v5189 = vunpack.c.h.b16 %v5111
  %v5190 = vunpack.c.l.b16 %v5112
  %v5191 = vunpack.c.h.b16 %v5112
  %v5192 = vunpack.c.l.b16 %v5113
  %v5193 = vunpack.c.h.b16 %v5113
  %v5194 = vunpack.c.l.b16 %v5114
  %v5195 = vunpack.c.h.b16 %v5114
  %v5196 = vunpack.c.l.b16 %v5115
  %v5197 = vunpack.c.h.b16 %v5115
  %v5198 = vunpack.c.l.b16 %v5116
  %v5199 = vunpack.c.h.b16 %v5116
  %v5200 = vunpack.c.l.b16 %v5117
  %v5201 = vunpack.c.h.b16 %v5117
  %v5202 = vunpack.c.l.b16 %v5118
  %v5203 = vunpack.c.h.b16 %v5118
  %v5204 = vunpack.c.l.b16 %v5119
  %v5205 = vunpack.c.h.b16 %v5119
  %v5206 = vunpack.c.l.b16 %v5120
  %v5207 = vunpack.c.h.b16 %v5120
  %v5208 = vunpack.c.l.b16 %v5121
  %v5209 = vunpack.c.h.b16 %v5121
  %v5210 = vunpack.c.l.b16 %v5122
  %v5211 = vunpack.c.h.b16 %v5122
  %v5212 = vunpack.c.l.b16 %v5123
  %v5213 = vunpack.c.h.b16 %v5123
  %v5214 = vunpack.c.l.b16 %v5124
  %v5215 = vunpack.c.h.b16 %v5124
  %v5216 = vunpack.c.l.b16 %v5125
  %v5217 = vunpack.c.h.b16 %v5125
  %v5218 = vunpack.c.l.b16 %v5126
  %v5219 = vunpack.c.h.b16 %v5126
  %v5220 = vunpack.c.l.b16 %v5127
  %v5221 = vunpack.c.h.b16 %v5127
  %v5222 = vunpack.c.l.b16 %v5128
  %v5223 = vunpack.c.h.b16 %v5128
  %v5224 = vunpack.c.l.b16 %v5129
  %v5225 = vunpack.c.h.b16 %v5129
  %v5226 = vpack.c.b16 %v5164, %v5162
  %v5227 = vpack.c.b16 %v5165, %v5163
  %v5228 = vpack.c.b16 %v5168, %v5166
  %v5229 = vpack.c.b16 %v5169, %v5167
  %v5230 = vpack.c.b16 %v5172, %v5170
  %v5231 = vpack.c.b16 %v5173, %v5171
  %v5232 = vpack.c.b16 %v5176, %v5174
  %v5233 = vpack.c.b16 %v5177, %v5175
  %v5234 = vpack.c.b16 %v5180, %v5178
  %v5235 = vpack.c.b16 %v5181, %v5179
  %v5236 = vpack.c.b16 %v5184, %v5182
  %v5237 = vpack.c.b16 %v5185, %v5183
  %v5238 = vpack.c.b16 %v5188, %v5186
  %v5239 = vpack.c.b16 %v5189, %v5187
  %v5240 = vpack.c.b16 %v5192, %v5190
  %v5241 = vpack.c.b16 %v5193, %v5191
  %v5242 = vpack.c.b16 %v5196, %v5194
  %v5243 = vpack.c.b16 %v5197, %v5195
  %v5244 = vpack.c.b16 %v5200, %v5198
  %v5245 = vpack.c.b16 %v5201, %v5199
  %v5246 = vpack.c.b16 %v5204, %v5202
  %v5247 = vpack.c.b16 %v5205, %v5203
  %v5248 = vpack.c.b16 %v5208, %v5206
  %v5249 = vpack.c.b16 %v5209, %v5207
  %v5250 = vpack.c.b16 %v5212, %v5210
  %v5251 = vpack.c.b16 %v5213, %v5211
  %v5252 = vpack.c.b16 %v5216, %v5214
  %v5253 = vpack.c.b16 %v5217, %v5215
  %v5254 = vpack.c.b16 %v5220, %v5218
  %v5255 = vpack.c.b16 %v5221, %v5219
  %v5256 = vpack.c.b16 %v5224, %v5222
  %v5257 = vpack.c.b16 %v5225, %v5223
  %5290 = vmatpush.bf16.msra.mxu0 %v5240
  %5291 = vmatpush.bf16.msra.mxu0 %v5238
  %5292 = vmatpush.bf16.msra.mxu0 %v5236
  %5293 = vmatpush.bf16.msra.mxu0 %v5234
  %5294 = vmatpush.bf16.msra.mxu0 %v5232
  %5295 = vmatpush.bf16.msra.mxu0 %v5230
  %5296 = vmatpush.bf16.msra.mxu0 %v5228
  %5297 = vmatpush.bf16.msra.mxu0 %v5226
  %5298 = vmatmul.bf16.gmra.mxu0 %v5095
  %v5299 = vpop.f32.mrf.mxu0
  %v5300 = vadd.f32 0.0, %v5299
  %v5301 = vpop.f32.mrf.mxu0
  %5302 = vdwg.mxu0
  %5303 = vmatpush.bf16.msra.mxu0 %v5256
  %5304 = vmatpush.bf16.msra.mxu0 %v5254
  %5305 = vmatpush.bf16.msra.mxu0 %v5252
  %5306 = vmatpush.bf16.msra.mxu0 %v5250
  %5307 = vmatpush.bf16.msra.mxu0 %v5248
  %5308 = vmatpush.bf16.msra.mxu0 %v5246
  %5309 = vmatpush.bf16.msra.mxu0 %v5244
  %5310 = vmatpush.bf16.msra.mxu0 %v5242
  %5311 = vmatmul.bf16.gmra.mxu0 %v5096
  %v5312 = vpop.f32.mrf.mxu0
  %v5313 = vadd.f32 %v5300, %v5312
  %v5314 = vpop.f32.mrf.mxu0
  %5315 = vdwg.mxu0
  %5316 = vmatpush.bf16.msra.mxu0 %v5241
  %5317 = vmatpush.bf16.msra.mxu0 %v5239
  %5318 = vmatpush.bf16.msra.mxu0 %v5237
  %5319 = vmatpush.bf16.msra.mxu0 %v5235
  %5320 = vmatpush.bf16.msra.mxu0 %v5233
  %5321 = vmatpush.bf16.msra.mxu0 %v5231
  %5322 = vmatpush.bf16.msra.mxu0 %v5229
  %5323 = vmatpush.bf16.msra.mxu0 %v5227
  %5324 = vmatmul.bf16.gmra.mxu0 %v5095
  %v5325 = vpop.f32.mrf.mxu0
  %v5326 = vadd.f32 0.0, %v5325
  %v5327 = vpop.f32.mrf.mxu0
  %5328 = vdwg.mxu0
  %5329 = vmatpush.bf16.msra.mxu0 %v5257
  %5330 = vmatpush.bf16.msra.mxu0 %v5255
  %5331 = vmatpush.bf16.msra.mxu0 %v5253
  %5332 = vmatpush.bf16.msra.mxu0 %v5251
  %5333 = vmatpush.bf16.msra.mxu0 %v5249
  %5334 = vmatpush.bf16.msra.mxu0 %v5247
  %5335 = vmatpush.bf16.msra.mxu0 %v5245
  %5336 = vmatpush.bf16.msra.mxu0 %v5243
  %5337 = vmatmul.bf16.gmra.mxu0 %v5096
  %v5338 = vpop.f32.mrf.mxu0
  %v5339 = vadd.f32 %v5326, %v5338
  %v5340 = vpop.f32.mrf.mxu0
  %5341 = vdwg.mxu0
  %v5374 = vunpack.c.l.b16 %v5032
  %v5375 = vunpack.c.h.b16 %v5032
  %v5376 = vunpack.c.l.b16 %v5033
  %v5377 = vunpack.c.h.b16 %v5033
  %v5378 = vunpack.c.l.b16 %v5034
  %v5379 = vunpack.c.h.b16 %v5034
  %v5380 = vunpack.c.l.b16 %v5035
  %v5381 = vunpack.c.h.b16 %v5035
  %v5382 = vunpack.c.l.b16 %v5036
  %v5383 = vunpack.c.h.b16 %v5036
  %v5384 = vunpack.c.l.b16 %v5037
  %v5385 = vunpack.c.h.b16 %v5037
  %v5386 = vunpack.c.l.b16 %v5038
  %v5387 = vunpack.c.h.b16 %v5038
  %v5388 = vunpack.c.l.b16 %v5039
  %v5389 = vunpack.c.h.b16 %v5039
  %v5390 = vunpack.c.l.b16 %v5040
  %v5391 = vunpack.c.h.b16 %v5040
  %v5392 = vunpack.c.l.b16 %v5041
  %v5393 = vunpack.c.h.b16 %v5041
  %v5394 = vunpack.c.l.b16 %v5042
  %v5395 = vunpack.c.h.b16 %v5042
  %v5396 = vunpack.c.l.b16 %v5043
  %v5397 = vunpack.c.h.b16 %v5043
  %v5398 = vunpack.c.l.b16 %v5044
  %v5399 = vunpack.c.h.b16 %v5044
  %v5400 = vunpack.c.l.b16 %v5045
  %v5401 = vunpack.c.h.b16 %v5045
  %v5402 = vunpack.c.l.b16 %v5046
  %v5403 = vunpack.c.h.b16 %v5046
  %v5404 = vunpack.c.l.b16 %v5047
  %v5405 = vunpack.c.h.b16 %v5047
  %v5406 = vunpack.c.l.b16 %v5048
  %v5407 = vunpack.c.h.b16 %v5048
  %v5408 = vunpack.c.l.b16 %v5049
  %v5409 = vunpack.c.h.b16 %v5049
  %v5410 = vunpack.c.l.b16 %v5050
  %v5411 = vunpack.c.h.b16 %v5050
  %v5412 = vunpack.c.l.b16 %v5051
  %v5413 = vunpack.c.h.b16 %v5051
  %v5414 = vunpack.c.l.b16 %v5052
  %v5415 = vunpack.c.h.b16 %v5052
  %v5416 = vunpack.c.l.b16 %v5053
  %v5417 = vunpack.c.h.b16 %v5053
  %v5418 = vunpack.c.l.b16 %v5054
  %v5419 = vunpack.c.h.b16 %v5054
  %v5420 = vunpack.c.l.b16 %v5055
  %v5421 = vunpack.c.h.b16 %v5055
  %v5422 = vunpack.c.l.b16 %v5056
  %v5423 = vunpack.c.h.b16 %v5056
  %v5424 = vunpack.c.l.b16 %v5057
  %v5425 = vunpack.c.h.b16 %v5057
  %v5426 = vunpack.c.l.b16 %v5058
  %v5427 = vunpack.c.h.b16 %v5058
  %v5428 = vunpack.c.l.b16 %v5059
  %v5429 = vunpack.c.h.b16 %v5059
  %v5430 = vunpack.c.l.b16 %v5060
  %v5431 = vunpack.c.h.b16 %v5060
  %v5432 = vunpack.c.l.b16 %v5061
  %v5433 = vunpack.c.h.b16 %v5061
  %v5434 = vunpack.c.l.b16 %v5062
  %v5435 = vunpack.c.h.b16 %v5062
  %v5436 = vunpack.c.l.b16 %v5063
  %v5437 = vunpack.c.h.b16 %v5063
  %v5438 = vpack.c.b16 %v5376, %v5374
  %v5439 = vpack.c.b16 %v5377, %v5375
  %v5440 = vpack.c.b16 %v5380, %v5378
  %v5441 = vpack.c.b16 %v5381, %v5379
  %v5442 = vpack.c.b16 %v5384, %v5382
  %v5443 = vpack.c.b16 %v5385, %v5383
  %v5444 = vpack.c.b16 %v5388, %v5386
  %v5445 = vpack.c.b16 %v5389, %v5387
  %v5446 = vpack.c.b16 %v5392, %v5390
  %v5447 = vpack.c.b16 %v5393, %v5391
  %v5448 = vpack.c.b16 %v5396, %v5394
  %v5449 = vpack.c.b16 %v5397, %v5395
  %v5450 = vpack.c.b16 %v5400, %v5398
  %v5451 = vpack.c.b16 %v5401, %v5399
  %v5452 = vpack.c.b16 %v5404, %v5402
  %v5453 = vpack.c.b16 %v5405, %v5403
  %v5454 = vpack.c.b16 %v5408, %v5406
  %v5455 = vpack.c.b16 %v5409, %v5407
  %v5456 = vpack.c.b16 %v5412, %v5410
  %v5457 = vpack.c.b16 %v5413, %v5411
  %v5458 = vpack.c.b16 %v5416, %v5414
  %v5459 = vpack.c.b16 %v5417, %v5415
  %v5460 = vpack.c.b16 %v5420, %v5418
  %v5461 = vpack.c.b16 %v5421, %v5419
  %v5462 = vpack.c.b16 %v5424, %v5422
  %v5463 = vpack.c.b16 %v5425, %v5423
  %v5464 = vpack.c.b16 %v5428, %v5426
  %v5465 = vpack.c.b16 %v5429, %v5427
  %v5466 = vpack.c.b16 %v5432, %v5430
  %v5467 = vpack.c.b16 %v5433, %v5431
  %v5468 = vpack.c.b16 %v5436, %v5434
  %v5469 = vpack.c.b16 %v5437, %v5435
  %5502 = vmatpush.bf16.msra.mxu0 %v5452
  %5503 = vmatpush.bf16.msra.mxu0 %v5450
  %5504 = vmatpush.bf16.msra.mxu0 %v5448
  %5505 = vmatpush.bf16.msra.mxu0 %v5446
  %5506 = vmatpush.bf16.msra.mxu0 %v5444
  %5507 = vmatpush.bf16.msra.mxu0 %v5442
  %5508 = vmatpush.bf16.msra.mxu0 %v5440
  %5509 = vmatpush.bf16.msra.mxu0 %v5438
  %5510 = vmatmul.bf16.gmra.mxu0 %v5030
  %v5511 = vpop.f32.mrf.mxu0
  %v5512 = vadd.f32 %v5313, %v5511
  %v5513 = vpop.f32.mrf.mxu0
  %5514 = vdwg.mxu0
  %5515 = vmatpush.bf16.msra.mxu0 %v5468
  %5516 = vmatpush.bf16.msra.mxu0 %v5466
  %5517 = vmatpush.bf16.msra.mxu0 %v5464
  %5518 = vmatpush.bf16.msra.mxu0 %v5462
  %5519 = vmatpush.bf16.msra.mxu0 %v5460
  %5520 = vmatpush.bf16.msra.mxu0 %v5458
  %5521 = vmatpush.bf16.msra.mxu0 %v5456
  %5522 = vmatpush.bf16.msra.mxu0 %v5454
  %5523 = vmatmul.bf16.gmra.mxu0 %v5031
  %v5524 = vpop.f32.mrf.mxu0
  %v5525 = vadd.f32 %v5512, %v5524
  %v5526 = vpop.f32.mrf.mxu0
  %5527 = vdwg.mxu0
  %5528 = vmatpush.bf16.msra.mxu0 %v5453
  %5529 = vmatpush.bf16.msra.mxu0 %v5451
  %5530 = vmatpush.bf16.msra.mxu0 %v5449
  %5531 = vmatpush.bf16.msra.mxu0 %v5447
  %5532 = vmatpush.bf16.msra.mxu0 %v5445
  %5533 = vmatpush.bf16.msra.mxu0 %v5443
  %5534 = vmatpush.bf16.msra.mxu0 %v5441
  %5535 = vmatpush.bf16.msra.mxu0 %v5439
  %5536 = vmatmul.bf16.gmra.mxu0 %v5030
  %v5537 = vpop.f32.mrf.mxu0
  %v5538 = vadd.f32 %v5339, %v5537
  %v5539 = vpop.f32.mrf.mxu0
  %5540 = vdwg.mxu0
  %5541 = vmatpush.bf16.msra.mxu0 %v5469
  %5542 = vmatpush.bf16.msra.mxu0 %v5467
  %5543 = vmatpush.bf16.msra.mxu0 %v5465
  %5544 = vmatpush.bf16.msra.mxu0 %v5463
  %5545 = vmatpush.bf16.msra.mxu0 %v5461
  %5546 = vmatpush.bf16.msra.mxu0 %v5459
  %5547 = vmatpush.bf16.msra.mxu0 %v5457
  %5548 = vmatpush.bf16.msra.mxu0 %v5455
  %5549 = vmatmul.bf16.gmra.mxu0 %v5031
  %v5550 = vpop.f32.mrf.mxu0
  %v5551 = vadd.f32 %v5538, %v5550
  %v5552 = vpop.f32.mrf.mxu0
  %5553 = vdwg.mxu0
  %s5554 = scalar_lea.vmem %s15, 8
  %v5555 = vld [vmem:[%s5554] sm:$0xf]
  %v5557 = vsel %vm3413, %v5555, 0
  %5559 = vmatpush.bf16.msra.mxu0 0
  %5560 = vmatpush.bf16.msra.mxu0 0
  %5561 = vmatpush.bf16.msra.mxu0 0
  %5562 = vmatpush.bf16.msra.mxu0 0
  %5563 = vmatpush.bf16.msra.mxu0 0
  %5564 = vmatpush.bf16.msra.mxu0 0
  %5565 = vmatpush.bf16.msra.mxu0 0
  %5566 = vmatpush.bf16.msra.mxu0 %v4998
  %5567 = vmatmul.bf16.gmra.mxu0 %v5557
  %v5568 = vpop.f32.mrf.mxu0
  %v5569 = vadd.f32 0.0, %v5568
  %v5570 = vpop.f32.mrf.mxu0
  %5571 = vdwg.mxu0
  %5572 = vmatpush.bf16.msra.mxu0 0
  %5573 = vmatpush.bf16.msra.mxu0 0
  %5574 = vmatpush.bf16.msra.mxu0 0
  %5575 = vmatpush.bf16.msra.mxu0 0
  %5576 = vmatpush.bf16.msra.mxu0 0
  %5577 = vmatpush.bf16.msra.mxu0 0
  %5578 = vmatpush.bf16.msra.mxu0 0
  %5579 = vmatpush.bf16.msra.mxu0 %v4999
  %5580 = vmatmul.bf16.gmra.mxu0 %v5557
  %v5581 = vpop.f32.mrf.mxu0
  %v5582 = vadd.f32 0.0, %v5581
  %v5583 = vpop.f32.mrf.mxu0
  %5584 = vdwg.mxu0
  %v5585 = vpack.c.bf16 %v5569, %v5569
  %v5586 = vpack.c.bf16 %v5582, %v5582
  %s5587 = scalar_lea.vmem %s16, 512
  %v5588 = vld [vmem:[%s5587] sm:$0xff]
  %v5589 = vld [vmem:[%s5587 + $0x8] sm:$0xff]
  %v5590 = vld [vmem:[%s5587 + $0x10] sm:$0xff]
  %v5591 = vld [vmem:[%s5587 + $0x18] sm:$0xff]
  %v5592 = vld [vmem:[%s5587 + $0x20] sm:$0xff]
  %v5593 = vld [vmem:[%s5587 + $0x28] sm:$0xff]
  %v5594 = vld [vmem:[%s5587 + $0x30] sm:$0xff]
  %v5595 = vld [vmem:[%s5587 + $0x38] sm:$0xff]
  %v5596 = vld [vmem:[%s5587 + $0x40] sm:$0xff]
  %v5597 = vld [vmem:[%s5587 + $0x48] sm:$0xff]
  %v5598 = vld [vmem:[%s5587 + $0x50] sm:$0xff]
  %v5599 = vld [vmem:[%s5587 + $0x58] sm:$0xff]
  %v5600 = vld [vmem:[%s5587 + $0x60] sm:$0xff]
  %v5601 = vld [vmem:[%s5587 + $0x68] sm:$0xff]
  %v5602 = vld [vmem:[%s5587 + $0x70] sm:$0xff]
  %v5603 = vld [vmem:[%s5587 + $0x78] sm:$0xff]
  %v5604 = vld [vmem:[%s5587 + $0x80] sm:$0xff]
  %v5605 = vld [vmem:[%s5587 + $0x88] sm:$0xff]
  %v5606 = vld [vmem:[%s5587 + $0x90] sm:$0xff]
  %v5607 = vld [vmem:[%s5587 + $0x98] sm:$0xff]
  %v5608 = vld [vmem:[%s5587 + $0xa0] sm:$0xff]
  %v5609 = vld [vmem:[%s5587 + $0xa8] sm:$0xff]
  %v5610 = vld [vmem:[%s5587 + $0xb0] sm:$0xff]
  %v5611 = vld [vmem:[%s5587 + $0xb8] sm:$0xff]
  %v5612 = vld [vmem:[%s5587 + $0xc0] sm:$0xff]
  %v5613 = vld [vmem:[%s5587 + $0xc8] sm:$0xff]
  %v5614 = vld [vmem:[%s5587 + $0xd0] sm:$0xff]
  %v5615 = vld [vmem:[%s5587 + $0xd8] sm:$0xff]
  %v5616 = vld [vmem:[%s5587 + $0xe0] sm:$0xff]
  %v5617 = vld [vmem:[%s5587 + $0xe8] sm:$0xff]
  %v5618 = vld [vmem:[%s5587 + $0xf0] sm:$0xff]
  %v5619 = vld [vmem:[%s5587 + $0xf8] sm:$0xff]
  %v5652 = vunpack.c.l.b16 %v5588
  %v5653 = vunpack.c.h.b16 %v5588
  %v5654 = vunpack.c.l.b16 %v5589
  %v5655 = vunpack.c.h.b16 %v5589
  %v5656 = vunpack.c.l.b16 %v5590
  %v5657 = vunpack.c.h.b16 %v5590
  %v5658 = vunpack.c.l.b16 %v5591
  %v5659 = vunpack.c.h.b16 %v5591
  %v5660 = vunpack.c.l.b16 %v5592
  %v5661 = vunpack.c.h.b16 %v5592
  %v5662 = vunpack.c.l.b16 %v5593
  %v5663 = vunpack.c.h.b16 %v5593
  %v5664 = vunpack.c.l.b16 %v5594
  %v5665 = vunpack.c.h.b16 %v5594
  %v5666 = vunpack.c.l.b16 %v5595
  %v5667 = vunpack.c.h.b16 %v5595
  %v5668 = vunpack.c.l.b16 %v5596
  %v5669 = vunpack.c.h.b16 %v5596
  %v5670 = vunpack.c.l.b16 %v5597
  %v5671 = vunpack.c.h.b16 %v5597
  %v5672 = vunpack.c.l.b16 %v5598
  %v5673 = vunpack.c.h.b16 %v5598
  %v5674 = vunpack.c.l.b16 %v5599
  %v5675 = vunpack.c.h.b16 %v5599
  %v5676 = vunpack.c.l.b16 %v5600
  %v5677 = vunpack.c.h.b16 %v5600
  %v5678 = vunpack.c.l.b16 %v5601
  %v5679 = vunpack.c.h.b16 %v5601
  %v5680 = vunpack.c.l.b16 %v5602
  %v5681 = vunpack.c.h.b16 %v5602
  %v5682 = vunpack.c.l.b16 %v5603
  %v5683 = vunpack.c.h.b16 %v5603
  %v5684 = vunpack.c.l.b16 %v5604
  %v5685 = vunpack.c.h.b16 %v5604
  %v5686 = vunpack.c.l.b16 %v5605
  %v5687 = vunpack.c.h.b16 %v5605
  %v5688 = vunpack.c.l.b16 %v5606
  %v5689 = vunpack.c.h.b16 %v5606
  %v5690 = vunpack.c.l.b16 %v5607
  %v5691 = vunpack.c.h.b16 %v5607
  %v5692 = vunpack.c.l.b16 %v5608
  %v5693 = vunpack.c.h.b16 %v5608
  %v5694 = vunpack.c.l.b16 %v5609
  %v5695 = vunpack.c.h.b16 %v5609
  %v5696 = vunpack.c.l.b16 %v5610
  %v5697 = vunpack.c.h.b16 %v5610
  %v5698 = vunpack.c.l.b16 %v5611
  %v5699 = vunpack.c.h.b16 %v5611
  %v5700 = vunpack.c.l.b16 %v5612
  %v5701 = vunpack.c.h.b16 %v5612
  %v5702 = vunpack.c.l.b16 %v5613
  %v5703 = vunpack.c.h.b16 %v5613
  %v5704 = vunpack.c.l.b16 %v5614
  %v5705 = vunpack.c.h.b16 %v5614
  %v5706 = vunpack.c.l.b16 %v5615
  %v5707 = vunpack.c.h.b16 %v5615
  %v5708 = vunpack.c.l.b16 %v5616
  %v5709 = vunpack.c.h.b16 %v5616
  %v5710 = vunpack.c.l.b16 %v5617
  %v5711 = vunpack.c.h.b16 %v5617
  %v5712 = vunpack.c.l.b16 %v5618
  %v5713 = vunpack.c.h.b16 %v5618
  %v5714 = vunpack.c.l.b16 %v5619
  %v5715 = vunpack.c.h.b16 %v5619
  %v5716 = vpack.c.b16 %v5654, %v5652
  %v5717 = vpack.c.b16 %v5655, %v5653
  %v5718 = vpack.c.b16 %v5658, %v5656
  %v5719 = vpack.c.b16 %v5659, %v5657
  %v5720 = vpack.c.b16 %v5662, %v5660
  %v5721 = vpack.c.b16 %v5663, %v5661
  %v5722 = vpack.c.b16 %v5666, %v5664
  %v5723 = vpack.c.b16 %v5667, %v5665
  %v5724 = vpack.c.b16 %v5670, %v5668
  %v5725 = vpack.c.b16 %v5671, %v5669
  %v5726 = vpack.c.b16 %v5674, %v5672
  %v5727 = vpack.c.b16 %v5675, %v5673
  %v5728 = vpack.c.b16 %v5678, %v5676
  %v5729 = vpack.c.b16 %v5679, %v5677
  %v5730 = vpack.c.b16 %v5682, %v5680
  %v5731 = vpack.c.b16 %v5683, %v5681
  %v5732 = vpack.c.b16 %v5686, %v5684
  %v5733 = vpack.c.b16 %v5687, %v5685
  %v5734 = vpack.c.b16 %v5690, %v5688
  %v5735 = vpack.c.b16 %v5691, %v5689
  %v5736 = vpack.c.b16 %v5694, %v5692
  %v5737 = vpack.c.b16 %v5695, %v5693
  %v5738 = vpack.c.b16 %v5698, %v5696
  %v5739 = vpack.c.b16 %v5699, %v5697
  %v5740 = vpack.c.b16 %v5702, %v5700
  %v5741 = vpack.c.b16 %v5703, %v5701
  %v5742 = vpack.c.b16 %v5706, %v5704
  %v5743 = vpack.c.b16 %v5707, %v5705
  %v5744 = vpack.c.b16 %v5710, %v5708
  %v5745 = vpack.c.b16 %v5711, %v5709
  %v5746 = vpack.c.b16 %v5714, %v5712
  %v5747 = vpack.c.b16 %v5715, %v5713
  %5780 = vmatpush.bf16.msra.mxu0 %v5730
  %5781 = vmatpush.bf16.msra.mxu0 %v5728
  %5782 = vmatpush.bf16.msra.mxu0 %v5726
  %5783 = vmatpush.bf16.msra.mxu0 %v5724
  %5784 = vmatpush.bf16.msra.mxu0 %v5722
  %5785 = vmatpush.bf16.msra.mxu0 %v5720
  %5786 = vmatpush.bf16.msra.mxu0 %v5718
  %5787 = vmatpush.bf16.msra.mxu0 %v5716
  %5788 = vmatmul.bf16.gmra.mxu0 %v5585
  %v5789 = vpop.f32.mrf.mxu0
  %v5790 = vadd.f32 0.0, %v5789
  %v5791 = vpop.f32.mrf.mxu0
  %5792 = vdwg.mxu0
  %5793 = vmatpush.bf16.msra.mxu0 %v5746
  %5794 = vmatpush.bf16.msra.mxu0 %v5744
  %5795 = vmatpush.bf16.msra.mxu0 %v5742
  %5796 = vmatpush.bf16.msra.mxu0 %v5740
  %5797 = vmatpush.bf16.msra.mxu0 %v5738
  %5798 = vmatpush.bf16.msra.mxu0 %v5736
  %5799 = vmatpush.bf16.msra.mxu0 %v5734
  %5800 = vmatpush.bf16.msra.mxu0 %v5732
  %5801 = vmatmul.bf16.gmra.mxu0 %v5586
  %v5802 = vpop.f32.mrf.mxu0
  %v5803 = vadd.f32 %v5790, %v5802
  %v5804 = vpop.f32.mrf.mxu0
  %5805 = vdwg.mxu0
  %5806 = vmatpush.bf16.msra.mxu0 %v5731
  %5807 = vmatpush.bf16.msra.mxu0 %v5729
  %5808 = vmatpush.bf16.msra.mxu0 %v5727
  %5809 = vmatpush.bf16.msra.mxu0 %v5725
  %5810 = vmatpush.bf16.msra.mxu0 %v5723
  %5811 = vmatpush.bf16.msra.mxu0 %v5721
  %5812 = vmatpush.bf16.msra.mxu0 %v5719
  %5813 = vmatpush.bf16.msra.mxu0 %v5717
  %5814 = vmatmul.bf16.gmra.mxu0 %v5585
  %v5815 = vpop.f32.mrf.mxu0
  %v5816 = vadd.f32 0.0, %v5815
  %v5817 = vpop.f32.mrf.mxu0
  %5818 = vdwg.mxu0
  %5819 = vmatpush.bf16.msra.mxu0 %v5747
  %5820 = vmatpush.bf16.msra.mxu0 %v5745
  %5821 = vmatpush.bf16.msra.mxu0 %v5743
  %5822 = vmatpush.bf16.msra.mxu0 %v5741
  %5823 = vmatpush.bf16.msra.mxu0 %v5739
  %5824 = vmatpush.bf16.msra.mxu0 %v5737
  %5825 = vmatpush.bf16.msra.mxu0 %v5735
  %5826 = vmatpush.bf16.msra.mxu0 %v5733
  %5827 = vmatmul.bf16.gmra.mxu0 %v5586
  %v5828 = vpop.f32.mrf.mxu0
  %v5829 = vadd.f32 %v5816, %v5828
  %v5830 = vpop.f32.mrf.mxu0
  %5831 = vdwg.mxu0
  %v5832 = vadd.f32 %v5525, %v5803
  %v5833 = vadd.f32 %v5551, %v5829
  %s5834 = scalar_lea.vmem %s15, 12
  %v5835 = vld [vmem:[%s5834] sm:$0xf]
  %v5837 = vsel %vm3413, %v5835, 0
  %5839 = vmatpush.bf16.msra.mxu0 0
  %5840 = vmatpush.bf16.msra.mxu0 0
  %5841 = vmatpush.bf16.msra.mxu0 0
  %5842 = vmatpush.bf16.msra.mxu0 0
  %5843 = vmatpush.bf16.msra.mxu0 0
  %5844 = vmatpush.bf16.msra.mxu0 0
  %5845 = vmatpush.bf16.msra.mxu0 0
  %5846 = vmatpush.bf16.msra.mxu0 %v4998
  %5847 = vmatmul.bf16.gmra.mxu0 %v5837
  %v5848 = vpop.f32.mrf.mxu0
  %v5849 = vadd.f32 0.0, %v5848
  %v5850 = vpop.f32.mrf.mxu0
  %5851 = vdwg.mxu0
  %5852 = vmatpush.bf16.msra.mxu0 0
  %5853 = vmatpush.bf16.msra.mxu0 0
  %5854 = vmatpush.bf16.msra.mxu0 0
  %5855 = vmatpush.bf16.msra.mxu0 0
  %5856 = vmatpush.bf16.msra.mxu0 0
  %5857 = vmatpush.bf16.msra.mxu0 0
  %5858 = vmatpush.bf16.msra.mxu0 0
  %5859 = vmatpush.bf16.msra.mxu0 %v4999
  %5860 = vmatmul.bf16.gmra.mxu0 %v5837
  %v5861 = vpop.f32.mrf.mxu0
  %v5862 = vadd.f32 0.0, %v5861
  %v5863 = vpop.f32.mrf.mxu0
  %5864 = vdwg.mxu0
  %v5865 = vpack.c.bf16 %v5849, %v5849
  %v5866 = vpack.c.bf16 %v5862, %v5862
  %s5867 = scalar_lea.vmem %s16, 768
  %v5868 = vld [vmem:[%s5867] sm:$0xff]
  %v5869 = vld [vmem:[%s5867 + $0x8] sm:$0xff]
  %v5870 = vld [vmem:[%s5867 + $0x10] sm:$0xff]
  %v5871 = vld [vmem:[%s5867 + $0x18] sm:$0xff]
  %v5872 = vld [vmem:[%s5867 + $0x20] sm:$0xff]
  %v5873 = vld [vmem:[%s5867 + $0x28] sm:$0xff]
  %v5874 = vld [vmem:[%s5867 + $0x30] sm:$0xff]
  %v5875 = vld [vmem:[%s5867 + $0x38] sm:$0xff]
  %v5876 = vld [vmem:[%s5867 + $0x40] sm:$0xff]
  %v5877 = vld [vmem:[%s5867 + $0x48] sm:$0xff]
  %v5878 = vld [vmem:[%s5867 + $0x50] sm:$0xff]
  %v5879 = vld [vmem:[%s5867 + $0x58] sm:$0xff]
  %v5880 = vld [vmem:[%s5867 + $0x60] sm:$0xff]
  %v5881 = vld [vmem:[%s5867 + $0x68] sm:$0xff]
  %v5882 = vld [vmem:[%s5867 + $0x70] sm:$0xff]
  %v5883 = vld [vmem:[%s5867 + $0x78] sm:$0xff]
  %v5884 = vld [vmem:[%s5867 + $0x80] sm:$0xff]
  %v5885 = vld [vmem:[%s5867 + $0x88] sm:$0xff]
  %v5886 = vld [vmem:[%s5867 + $0x90] sm:$0xff]
  %v5887 = vld [vmem:[%s5867 + $0x98] sm:$0xff]
  %v5888 = vld [vmem:[%s5867 + $0xa0] sm:$0xff]
  %v5889 = vld [vmem:[%s5867 + $0xa8] sm:$0xff]
  %v5890 = vld [vmem:[%s5867 + $0xb0] sm:$0xff]
  %v5891 = vld [vmem:[%s5867 + $0xb8] sm:$0xff]
  %v5892 = vld [vmem:[%s5867 + $0xc0] sm:$0xff]
  %v5893 = vld [vmem:[%s5867 + $0xc8] sm:$0xff]
  %v5894 = vld [vmem:[%s5867 + $0xd0] sm:$0xff]
  %v5895 = vld [vmem:[%s5867 + $0xd8] sm:$0xff]
  %v5896 = vld [vmem:[%s5867 + $0xe0] sm:$0xff]
  %v5897 = vld [vmem:[%s5867 + $0xe8] sm:$0xff]
  %v5898 = vld [vmem:[%s5867 + $0xf0] sm:$0xff]
  %v5899 = vld [vmem:[%s5867 + $0xf8] sm:$0xff]
  %v5932 = vunpack.c.l.b16 %v5868
  %v5933 = vunpack.c.h.b16 %v5868
  %v5934 = vunpack.c.l.b16 %v5869
  %v5935 = vunpack.c.h.b16 %v5869
  %v5936 = vunpack.c.l.b16 %v5870
  %v5937 = vunpack.c.h.b16 %v5870
  %v5938 = vunpack.c.l.b16 %v5871
  %v5939 = vunpack.c.h.b16 %v5871
  %v5940 = vunpack.c.l.b16 %v5872
  %v5941 = vunpack.c.h.b16 %v5872
  %v5942 = vunpack.c.l.b16 %v5873
  %v5943 = vunpack.c.h.b16 %v5873
  %v5944 = vunpack.c.l.b16 %v5874
  %v5945 = vunpack.c.h.b16 %v5874
  %v5946 = vunpack.c.l.b16 %v5875
  %v5947 = vunpack.c.h.b16 %v5875
  %v5948 = vunpack.c.l.b16 %v5876
  %v5949 = vunpack.c.h.b16 %v5876
  %v5950 = vunpack.c.l.b16 %v5877
  %v5951 = vunpack.c.h.b16 %v5877
  %v5952 = vunpack.c.l.b16 %v5878
  %v5953 = vunpack.c.h.b16 %v5878
  %v5954 = vunpack.c.l.b16 %v5879
  %v5955 = vunpack.c.h.b16 %v5879
  %v5956 = vunpack.c.l.b16 %v5880
  %v5957 = vunpack.c.h.b16 %v5880
  %v5958 = vunpack.c.l.b16 %v5881
  %v5959 = vunpack.c.h.b16 %v5881
  %v5960 = vunpack.c.l.b16 %v5882
  %v5961 = vunpack.c.h.b16 %v5882
  %v5962 = vunpack.c.l.b16 %v5883
  %v5963 = vunpack.c.h.b16 %v5883
  %v5964 = vunpack.c.l.b16 %v5884
  %v5965 = vunpack.c.h.b16 %v5884
  %v5966 = vunpack.c.l.b16 %v5885
  %v5967 = vunpack.c.h.b16 %v5885
  %v5968 = vunpack.c.l.b16 %v5886
  %v5969 = vunpack.c.h.b16 %v5886
  %v5970 = vunpack.c.l.b16 %v5887
  %v5971 = vunpack.c.h.b16 %v5887
  %v5972 = vunpack.c.l.b16 %v5888
  %v5973 = vunpack.c.h.b16 %v5888
  %v5974 = vunpack.c.l.b16 %v5889
  %v5975 = vunpack.c.h.b16 %v5889
  %v5976 = vunpack.c.l.b16 %v5890
  %v5977 = vunpack.c.h.b16 %v5890
  %v5978 = vunpack.c.l.b16 %v5891
  %v5979 = vunpack.c.h.b16 %v5891
  %v5980 = vunpack.c.l.b16 %v5892
  %v5981 = vunpack.c.h.b16 %v5892
  %v5982 = vunpack.c.l.b16 %v5893
  %v5983 = vunpack.c.h.b16 %v5893
  %v5984 = vunpack.c.l.b16 %v5894
  %v5985 = vunpack.c.h.b16 %v5894
  %v5986 = vunpack.c.l.b16 %v5895
  %v5987 = vunpack.c.h.b16 %v5895
  %v5988 = vunpack.c.l.b16 %v5896
  %v5989 = vunpack.c.h.b16 %v5896
  %v5990 = vunpack.c.l.b16 %v5897
  %v5991 = vunpack.c.h.b16 %v5897
  %v5992 = vunpack.c.l.b16 %v5898
  %v5993 = vunpack.c.h.b16 %v5898
  %v5994 = vunpack.c.l.b16 %v5899
  %v5995 = vunpack.c.h.b16 %v5899
  %v5996 = vpack.c.b16 %v5934, %v5932
  %v5997 = vpack.c.b16 %v5935, %v5933
  %v5998 = vpack.c.b16 %v5938, %v5936
  %v5999 = vpack.c.b16 %v5939, %v5937
  %v6000 = vpack.c.b16 %v5942, %v5940
  %v6001 = vpack.c.b16 %v5943, %v5941
  %v6002 = vpack.c.b16 %v5946, %v5944
  %v6003 = vpack.c.b16 %v5947, %v5945
  %v6004 = vpack.c.b16 %v5950, %v5948
  %v6005 = vpack.c.b16 %v5951, %v5949
  %v6006 = vpack.c.b16 %v5954, %v5952
  %v6007 = vpack.c.b16 %v5955, %v5953
  %v6008 = vpack.c.b16 %v5958, %v5956
  %v6009 = vpack.c.b16 %v5959, %v5957
  %v6010 = vpack.c.b16 %v5962, %v5960
  %v6011 = vpack.c.b16 %v5963, %v5961
  %v6012 = vpack.c.b16 %v5966, %v5964
  %v6013 = vpack.c.b16 %v5967, %v5965
  %v6014 = vpack.c.b16 %v5970, %v5968
  %v6015 = vpack.c.b16 %v5971, %v5969
  %v6016 = vpack.c.b16 %v5974, %v5972
  %v6017 = vpack.c.b16 %v5975, %v5973
  %v6018 = vpack.c.b16 %v5978, %v5976
  %v6019 = vpack.c.b16 %v5979, %v5977
  %v6020 = vpack.c.b16 %v5982, %v5980
  %v6021 = vpack.c.b16 %v5983, %v5981
  %v6022 = vpack.c.b16 %v5986, %v5984
  %v6023 = vpack.c.b16 %v5987, %v5985
  %v6024 = vpack.c.b16 %v5990, %v5988
  %v6025 = vpack.c.b16 %v5991, %v5989
  %v6026 = vpack.c.b16 %v5994, %v5992
  %v6027 = vpack.c.b16 %v5995, %v5993
  %6060 = vmatpush.bf16.msra.mxu0 %v6010
  %6061 = vmatpush.bf16.msra.mxu0 %v6008
  %6062 = vmatpush.bf16.msra.mxu0 %v6006
  %6063 = vmatpush.bf16.msra.mxu0 %v6004
  %6064 = vmatpush.bf16.msra.mxu0 %v6002
  %6065 = vmatpush.bf16.msra.mxu0 %v6000
  %6066 = vmatpush.bf16.msra.mxu0 %v5998
  %6067 = vmatpush.bf16.msra.mxu0 %v5996
  %6068 = vmatmul.bf16.gmra.mxu0 %v5865
  %v6069 = vpop.f32.mrf.mxu0
  %v6070 = vadd.f32 0.0, %v6069
  %v6071 = vpop.f32.mrf.mxu0
  %6072 = vdwg.mxu0
  %6073 = vmatpush.bf16.msra.mxu0 %v6026
  %6074 = vmatpush.bf16.msra.mxu0 %v6024
  %6075 = vmatpush.bf16.msra.mxu0 %v6022
  %6076 = vmatpush.bf16.msra.mxu0 %v6020
  %6077 = vmatpush.bf16.msra.mxu0 %v6018
  %6078 = vmatpush.bf16.msra.mxu0 %v6016
  %6079 = vmatpush.bf16.msra.mxu0 %v6014
  %6080 = vmatpush.bf16.msra.mxu0 %v6012
  %6081 = vmatmul.bf16.gmra.mxu0 %v5866
  %v6082 = vpop.f32.mrf.mxu0
  %v6083 = vadd.f32 %v6070, %v6082
  %v6084 = vpop.f32.mrf.mxu0
  %6085 = vdwg.mxu0
  %6086 = vmatpush.bf16.msra.mxu0 %v6011
  %6087 = vmatpush.bf16.msra.mxu0 %v6009
  %6088 = vmatpush.bf16.msra.mxu0 %v6007
  %6089 = vmatpush.bf16.msra.mxu0 %v6005
  %6090 = vmatpush.bf16.msra.mxu0 %v6003
  %6091 = vmatpush.bf16.msra.mxu0 %v6001
  %6092 = vmatpush.bf16.msra.mxu0 %v5999
  %6093 = vmatpush.bf16.msra.mxu0 %v5997
  %6094 = vmatmul.bf16.gmra.mxu0 %v5865
  %v6095 = vpop.f32.mrf.mxu0
  %v6096 = vadd.f32 0.0, %v6095
  %v6097 = vpop.f32.mrf.mxu0
  %6098 = vdwg.mxu0
  %6099 = vmatpush.bf16.msra.mxu0 %v6027
  %6100 = vmatpush.bf16.msra.mxu0 %v6025
  %6101 = vmatpush.bf16.msra.mxu0 %v6023
  %6102 = vmatpush.bf16.msra.mxu0 %v6021
  %6103 = vmatpush.bf16.msra.mxu0 %v6019
  %6104 = vmatpush.bf16.msra.mxu0 %v6017
  %6105 = vmatpush.bf16.msra.mxu0 %v6015
  %6106 = vmatpush.bf16.msra.mxu0 %v6013
  %6107 = vmatmul.bf16.gmra.mxu0 %v5866
  %v6108 = vpop.f32.mrf.mxu0
  %v6109 = vadd.f32 %v6096, %v6108
  %v6110 = vpop.f32.mrf.mxu0
  %6111 = vdwg.mxu0
  %v6112 = vadd.f32 %v5832, %v6083
  %v6113 = vadd.f32 %v5833, %v6109
  %v6114 = vrot.slane %v6112, 4
  %v6115 = vadd.f32 %v6112, %v6114
  %v6116 = vrot.slane %v6115, 2
  %v6117 = vadd.f32 %v6115, %v6116
  %v6118 = vrot.slane %v6117, 1
  %v6119 = vadd.f32 %v6117, %v6118
  %v6120 = vrot.slane %v6113, 4
  %v6121 = vadd.f32 %v6113, %v6120
  %v6122 = vrot.slane %v6121, 2
  %v6123 = vadd.f32 %v6121, %v6122
  %v6124 = vrot.slane %v6123, 1
  %v6125 = vadd.f32 %v6123, %v6124
  %v6126 = vmul.f32 %v6112, %v6112
  %v6127 = vmul.f32 %v6113, %v6113
  %v6128 = vrot.slane %v6126, 4
  %v6129 = vadd.f32 %v6126, %v6128
  %v6130 = vrot.slane %v6129, 2
  %v6131 = vadd.f32 %v6129, %v6130
  %v6132 = vrot.slane %v6131, 1
  %v6133 = vadd.f32 %v6131, %v6132
  %v6134 = vrot.slane %v6127, 4
  %v6135 = vadd.f32 %v6127, %v6134
  %v6136 = vrot.slane %v6135, 2
  %v6137 = vadd.f32 %v6135, %v6136
  %v6138 = vrot.slane %v6137, 1
  %v6139 = vadd.f32 %v6137, %v6138
  %v6140 = vld [vmem:[%s17] sm:$0xff]
  %v6141 = vld [vmem:[%s17 + $0x8] sm:$0xff]
  %v6142 = vld [vmem:[%s17 + $0x10] sm:$0xff]
  %v6143 = vld [vmem:[%s17 + $0x18] sm:$0xff]
  %v6144 = vld [vmem:[%s17 + $0x20] sm:$0xff]
  %v6145 = vld [vmem:[%s17 + $0x28] sm:$0xff]
  %v6146 = vld [vmem:[%s17 + $0x30] sm:$0xff]
  %v6147 = vld [vmem:[%s17 + $0x38] sm:$0xff]
  %v6148 = vld [vmem:[%s17 + $0x40] sm:$0xff]
  %v6149 = vld [vmem:[%s17 + $0x48] sm:$0xff]
  %v6150 = vld [vmem:[%s17 + $0x50] sm:$0xff]
  %v6151 = vld [vmem:[%s17 + $0x58] sm:$0xff]
  %v6152 = vld [vmem:[%s17 + $0x60] sm:$0xff]
  %v6153 = vld [vmem:[%s17 + $0x68] sm:$0xff]
  %v6154 = vld [vmem:[%s17 + $0x70] sm:$0xff]
  %v6155 = vld [vmem:[%s17 + $0x78] sm:$0xff]
  %v6156 = vld [vmem:[%s17 + $0x80] sm:$0xff]
  %v6157 = vld [vmem:[%s17 + $0x88] sm:$0xff]
  %v6158 = vld [vmem:[%s17 + $0x90] sm:$0xff]
  %v6159 = vld [vmem:[%s17 + $0x98] sm:$0xff]
  %v6160 = vld [vmem:[%s17 + $0xa0] sm:$0xff]
  %v6161 = vld [vmem:[%s17 + $0xa8] sm:$0xff]
  %v6162 = vld [vmem:[%s17 + $0xb0] sm:$0xff]
  %v6163 = vld [vmem:[%s17 + $0xb8] sm:$0xff]
  %v6164 = vld [vmem:[%s17 + $0xc0] sm:$0xff]
  %v6165 = vld [vmem:[%s17 + $0xc8] sm:$0xff]
  %v6166 = vld [vmem:[%s17 + $0xd0] sm:$0xff]
  %v6167 = vld [vmem:[%s17 + $0xd8] sm:$0xff]
  %v6168 = vld [vmem:[%s17 + $0xe0] sm:$0xff]
  %v6169 = vld [vmem:[%s17 + $0xe8] sm:$0xff]
  %v6170 = vld [vmem:[%s17 + $0xf0] sm:$0xff]
  %v6171 = vld [vmem:[%s17 + $0xf8] sm:$0xff]
  %6172 = vmatpush.msra.mxu0 %v6155
  %6173 = vmatpush.msra.mxu0 %v6154
  %6174 = vmatpush.msra.mxu0 %v6153
  %6175 = vmatpush.msra.mxu0 %v6152
  %6176 = vmatpush.msra.mxu0 %v6151
  %6177 = vmatpush.msra.mxu0 %v6150
  %6178 = vmatpush.msra.mxu0 %v6149
  %6179 = vmatpush.msra.mxu0 %v6148
  %6180 = vmatpush.msra.mxu0 %v6147
  %6181 = vmatpush.msra.mxu0 %v6146
  %6182 = vmatpush.msra.mxu0 %v6145
  %6183 = vmatpush.msra.mxu0 %v6144
  %6184 = vmatpush.msra.mxu0 %v6143
  %6185 = vmatpush.msra.mxu0 %v6142
  %6186 = vmatpush.msra.mxu0 %v6141
  %6187 = vmatpush.msra.mxu0 %v6140
  %6188 = vmatmul.f32.gmra.mxu0 %v6119
  %v6189 = vpop.f32.mrf.mxu0
  %v6190 = vadd.f32 0.0, %v6189
  %6191 = vdwg.mxu0
  %6192 = vmatpush.msra.mxu0 %v6171
  %6193 = vmatpush.msra.mxu0 %v6170
  %6194 = vmatpush.msra.mxu0 %v6169
  %6195 = vmatpush.msra.mxu0 %v6168
  %6196 = vmatpush.msra.mxu0 %v6167
  %6197 = vmatpush.msra.mxu0 %v6166
  %6198 = vmatpush.msra.mxu0 %v6165
  %6199 = vmatpush.msra.mxu0 %v6164
  %6200 = vmatpush.msra.mxu0 %v6163
  %6201 = vmatpush.msra.mxu0 %v6162
  %6202 = vmatpush.msra.mxu0 %v6161
  %6203 = vmatpush.msra.mxu0 %v6160
  %6204 = vmatpush.msra.mxu0 %v6159
  %6205 = vmatpush.msra.mxu0 %v6158
  %6206 = vmatpush.msra.mxu0 %v6157
  %6207 = vmatpush.msra.mxu0 %v6156
  %6208 = vmatmul.f32.gmra.mxu0 %v6125
  %v6209 = vpop.f32.mrf.mxu0
  %v6210 = vadd.f32 %v6190, %v6209
  %6211 = vdwg.mxu0
  %6212 = vmatpush.msra.mxu0 %v6155
  %6213 = vmatpush.msra.mxu0 %v6154
  %6214 = vmatpush.msra.mxu0 %v6153
  %6215 = vmatpush.msra.mxu0 %v6152
  %6216 = vmatpush.msra.mxu0 %v6151
  %6217 = vmatpush.msra.mxu0 %v6150
  %6218 = vmatpush.msra.mxu0 %v6149
  %6219 = vmatpush.msra.mxu0 %v6148
  %6220 = vmatpush.msra.mxu0 %v6147
  %6221 = vmatpush.msra.mxu0 %v6146
  %6222 = vmatpush.msra.mxu0 %v6145
  %6223 = vmatpush.msra.mxu0 %v6144
  %6224 = vmatpush.msra.mxu0 %v6143
  %6225 = vmatpush.msra.mxu0 %v6142
  %6226 = vmatpush.msra.mxu0 %v6141
  %6227 = vmatpush.msra.mxu0 %v6140
  %6228 = vmatmul.f32.gmra.mxu0 %v6133
  %v6229 = vpop.f32.mrf.mxu0
  %v6230 = vadd.f32 0.0, %v6229
  %6231 = vdwg.mxu0
  %6232 = vmatpush.msra.mxu0 %v6171
  %6233 = vmatpush.msra.mxu0 %v6170
  %6234 = vmatpush.msra.mxu0 %v6169
  %6235 = vmatpush.msra.mxu0 %v6168
  %6236 = vmatpush.msra.mxu0 %v6167
  %6237 = vmatpush.msra.mxu0 %v6166
  %6238 = vmatpush.msra.mxu0 %v6165
  %6239 = vmatpush.msra.mxu0 %v6164
  %6240 = vmatpush.msra.mxu0 %v6163
  %6241 = vmatpush.msra.mxu0 %v6162
  %6242 = vmatpush.msra.mxu0 %v6161
  %6243 = vmatpush.msra.mxu0 %v6160
  %6244 = vmatpush.msra.mxu0 %v6159
  %6245 = vmatpush.msra.mxu0 %v6158
  %6246 = vmatpush.msra.mxu0 %v6157
  %6247 = vmatpush.msra.mxu0 %v6156
  %6248 = vmatmul.f32.gmra.mxu0 %v6139
  %v6249 = vpop.f32.mrf.mxu0
  %v6250 = vadd.f32 %v6230, %v6249
  %6251 = vdwg.mxu0
  %v6252 = vmul.f32 %v6210, 0.03125
  %v6253 = vmul.f32 %v6250, 0.03125
  %v6254 = vmul.f32 %v6252, %v6252
  %v6255 = vsub.f32 %v6253, %v6254
  %v6256 = vmax.f32 %v6255, 0.0
  %v6257 = vld [vmem:[%s19] sm:$0x1]
  %v6258 = vadd.f32 %v6256, 1e-05
  %v6259 = vrsqrt.pop %v6258
  %v6260 = vmul.f32 %v6259, %v6258
  %v6261 = vmul.f32 %v6260, %v6259
  %v6262 = vmul.f32 0.5, %v6261
  %v6263 = vsub.f32 1.5, %v6262
  %v6264 = vmul.f32 %v6259, %v6263
  %vm6265 = vweird.f32 %v6258
  %vm6266 = vweird.f32 %v6259
  %vm6267 = vmor %vm6265, %vm6266
  %v6268 = vsel %vm6267, %v6259, %v6264
  %v6269 = vmul.f32 %v6257, %v6268
  %v6270 = vld [vmem:[%s20] sm:$0x1]
  %v6271 = vmul.f32 %v6252, %v6269
  %v6272 = vsub.f32 %v6270, %v6271
  %v6273 = vld [vmem:[%s18] sm:$0xff]
  %v6274 = vld [vmem:[%s18 + $0x8] sm:$0xff]
  %v6275 = vld [vmem:[%s18 + $0x10] sm:$0xff]
  %v6276 = vld [vmem:[%s18 + $0x18] sm:$0xff]
  %v6277 = vld [vmem:[%s18 + $0x20] sm:$0xff]
  %v6278 = vld [vmem:[%s18 + $0x28] sm:$0xff]
  %v6279 = vld [vmem:[%s18 + $0x30] sm:$0xff]
  %v6280 = vld [vmem:[%s18 + $0x38] sm:$0xff]
  %v6281 = vld [vmem:[%s18 + $0x40] sm:$0xff]
  %v6282 = vld [vmem:[%s18 + $0x48] sm:$0xff]
  %v6283 = vld [vmem:[%s18 + $0x50] sm:$0xff]
  %v6284 = vld [vmem:[%s18 + $0x58] sm:$0xff]
  %v6285 = vld [vmem:[%s18 + $0x60] sm:$0xff]
  %v6286 = vld [vmem:[%s18 + $0x68] sm:$0xff]
  %v6287 = vld [vmem:[%s18 + $0x70] sm:$0xff]
  %v6288 = vld [vmem:[%s18 + $0x78] sm:$0xff]
  %v6290 = vsel %vm1903, %v6269, 0
  %6292 = vmatpush.msra.mxu0 0.0
  %6293 = vmatpush.msra.mxu0 0.0
  %6294 = vmatpush.msra.mxu0 0.0
  %6295 = vmatpush.msra.mxu0 0.0
  %6296 = vmatpush.msra.mxu0 0.0
  %6297 = vmatpush.msra.mxu0 0.0
  %6298 = vmatpush.msra.mxu0 0.0
  %6299 = vmatpush.msra.mxu0 0.0
  %6300 = vmatpush.msra.mxu0 %v6287
  %6301 = vmatpush.msra.mxu0 %v6285
  %6302 = vmatpush.msra.mxu0 %v6283
  %6303 = vmatpush.msra.mxu0 %v6281
  %6304 = vmatpush.msra.mxu0 %v6279
  %6305 = vmatpush.msra.mxu0 %v6277
  %6306 = vmatpush.msra.mxu0 %v6275
  %6307 = vmatpush.msra.mxu0 %v6273
  %6308 = vmatmul.f32.gmra.mxu0 %v6290
  %v6309 = vpop.f32.mrf.mxu0
  %v6310 = vadd.f32 0.0, %v6309
  %6311 = vdwg.mxu0
  %6312 = vmatpush.msra.mxu0 0.0
  %6313 = vmatpush.msra.mxu0 0.0
  %6314 = vmatpush.msra.mxu0 0.0
  %6315 = vmatpush.msra.mxu0 0.0
  %6316 = vmatpush.msra.mxu0 0.0
  %6317 = vmatpush.msra.mxu0 0.0
  %6318 = vmatpush.msra.mxu0 0.0
  %6319 = vmatpush.msra.mxu0 0.0
  %6320 = vmatpush.msra.mxu0 %v6288
  %6321 = vmatpush.msra.mxu0 %v6286
  %6322 = vmatpush.msra.mxu0 %v6284
  %6323 = vmatpush.msra.mxu0 %v6282
  %6324 = vmatpush.msra.mxu0 %v6280
  %6325 = vmatpush.msra.mxu0 %v6278
  %6326 = vmatpush.msra.mxu0 %v6276
  %6327 = vmatpush.msra.mxu0 %v6274
  %6328 = vmatmul.f32.gmra.mxu0 %v6290
  %v6329 = vpop.f32.mrf.mxu0
  %v6330 = vadd.f32 0.0, %v6329
  %6331 = vdwg.mxu0
  %v6332 = vperm.slane %v6310, 0
  %v6333 = vperm.slane %v6330, 0
  %v6334 = vmul.f32 %v6112, %v6332
  %v6335 = vmul.f32 %v6113, %v6333
  %v6337 = vsel %vm1903, %v6272, 0
  %6339 = vmatpush.msra.mxu0 0.0
  %6340 = vmatpush.msra.mxu0 0.0
  %6341 = vmatpush.msra.mxu0 0.0
  %6342 = vmatpush.msra.mxu0 0.0
  %6343 = vmatpush.msra.mxu0 0.0
  %6344 = vmatpush.msra.mxu0 0.0
  %6345 = vmatpush.msra.mxu0 0.0
  %6346 = vmatpush.msra.mxu0 0.0
  %6347 = vmatpush.msra.mxu0 %v6287
  %6348 = vmatpush.msra.mxu0 %v6285
  %6349 = vmatpush.msra.mxu0 %v6283
  %6350 = vmatpush.msra.mxu0 %v6281
  %6351 = vmatpush.msra.mxu0 %v6279
  %6352 = vmatpush.msra.mxu0 %v6277
  %6353 = vmatpush.msra.mxu0 %v6275
  %6354 = vmatpush.msra.mxu0 %v6273
  %6355 = vmatmul.f32.gmra.mxu0 %v6337
  %v6356 = vpop.f32.mrf.mxu0
  %v6357 = vadd.f32 0.0, %v6356
  %6358 = vdwg.mxu0
  %6359 = vmatpush.msra.mxu0 0.0
  %6360 = vmatpush.msra.mxu0 0.0
  %6361 = vmatpush.msra.mxu0 0.0
  %6362 = vmatpush.msra.mxu0 0.0
  %6363 = vmatpush.msra.mxu0 0.0
  %6364 = vmatpush.msra.mxu0 0.0
  %6365 = vmatpush.msra.mxu0 0.0
  %6366 = vmatpush.msra.mxu0 0.0
  %6367 = vmatpush.msra.mxu0 %v6288
  %6368 = vmatpush.msra.mxu0 %v6286
  %6369 = vmatpush.msra.mxu0 %v6284
  %6370 = vmatpush.msra.mxu0 %v6282
  %6371 = vmatpush.msra.mxu0 %v6280
  %6372 = vmatpush.msra.mxu0 %v6278
  %6373 = vmatpush.msra.mxu0 %v6276
  %6374 = vmatpush.msra.mxu0 %v6274
  %6375 = vmatmul.f32.gmra.mxu0 %v6337
  %v6376 = vpop.f32.mrf.mxu0
  %v6377 = vadd.f32 0.0, %v6376
  %6378 = vdwg.mxu0
  %v6379 = vperm.slane %v6357, 0
  %v6380 = vperm.slane %v6377, 0
  %v6381 = vadd.f32 %v6334, %v6379
  %v6382 = vadd.f32 %v6335, %v6380
  %vm6383 = vcmp.ge.f32.partialorder %v6381, 0.0
  %vm6384 = vcmp.ge.f32.partialorder %v6382, 0.0
  %v6385 = vmul.f32 %v6381, 0.2
  %v6386 = vmul.f32 %v6382, 0.2
  %v6387 = vsel %vm6383, %v6381, %v6385
  %v6388 = vsel %vm6384, %v6382, %v6386
  %v6389 = vld [vmem:[%s21] sm:$0xff]
  %v6390 = vld [vmem:[%s21 + $0x8] sm:$0xff]
  %v6391 = vmul.f32 %v6387, %v6389
  %v6392 = vmul.f32 %v6388, %v6390
  %v6393 = vld [vmem:[%s22] sm:$0x3]
  %vm6394 = vcmask 64512
  %v6396 = vsel %vm6394, %v6393, 0
  %6398 = vmatpush.msra.mxu0 0.0
  %6399 = vmatpush.msra.mxu0 0.0
  %6400 = vmatpush.msra.mxu0 0.0
  %6401 = vmatpush.msra.mxu0 0.0
  %6402 = vmatpush.msra.mxu0 0.0
  %6403 = vmatpush.msra.mxu0 0.0
  %6404 = vmatpush.msra.mxu0 0.0
  %6405 = vmatpush.msra.mxu0 0.0
  %6406 = vmatpush.msra.mxu0 0.0
  %6407 = vmatpush.msra.mxu0 0.0
  %6408 = vmatpush.msra.mxu0 0.0
  %6409 = vmatpush.msra.mxu0 0.0
  %6410 = vmatpush.msra.mxu0 0.0
  %6411 = vmatpush.msra.mxu0 0.0
  %6412 = vmatpush.msra.mxu0 0.0
  %6413 = vmatpush.msra.mxu0 %v6391
  %6414 = vmatmul.f32.gmra.mxu0 %v6396
  %v6415 = vpop.f32.mrf.mxu0
  %v6416 = vadd.f32 0.0, %v6415
  %6417 = vdwg.mxu0
  %6418 = vmatpush.msra.mxu0 0.0
  %6419 = vmatpush.msra.mxu0 0.0
  %6420 = vmatpush.msra.mxu0 0.0
  %6421 = vmatpush.msra.mxu0 0.0
  %6422 = vmatpush.msra.mxu0 0.0
  %6423 = vmatpush.msra.mxu0 0.0
  %6424 = vmatpush.msra.mxu0 0.0
  %6425 = vmatpush.msra.mxu0 0.0
  %6426 = vmatpush.msra.mxu0 0.0
  %6427 = vmatpush.msra.mxu0 0.0
  %6428 = vmatpush.msra.mxu0 0.0
  %6429 = vmatpush.msra.mxu0 0.0
  %6430 = vmatpush.msra.mxu0 0.0
  %6431 = vmatpush.msra.mxu0 0.0
  %6432 = vmatpush.msra.mxu0 0.0
  %6433 = vmatpush.msra.mxu0 %v6392
  %6434 = vmatmul.f32.gmra.mxu0 %v6396
  %v6435 = vpop.f32.mrf.mxu0
  %v6436 = vadd.f32 0.0, %v6435
  %6437 = vdwg.mxu0
  %vm6438 = vcmask 1041408
  %v6439 = vsel %vm6438, %v6416, 0.0
  %v6440 = vsel %vm6438, %v6436, 0.0
  %v6441 = vadd.f32 %v6439, %v6440
  %6442 = vadd.xlane.f32.xlu0 %v6441
  %v6443 = vpop.xlane.xlu0 %6442
  %v6444 = vsub.f32 0.0, %v6443
  %v6445 = vmul.f32 %v6444, 1.442695
  %v6446 = vpow.pop %v6445
  %v6447 = vadd.f32 %v6446, 1.0
  %v6448 = vrcp.pop %v6447
  %v6449 = vmul.f32 %v6447, %v6448
  %v6450 = vsub.f32 1.0, %v6449
  %v6451 = vmul.f32 %v6448, %v6450
  %v6452 = vadd.f32 %v6448, %v6451
  %vm6453 = vweird.f32 %v6447
  %vm6454 = vweird.f32 %v6448
  %vm6455 = vmor %vm6453, %vm6454
  %v6456 = vsel %vm6455, %v6448, %v6452
  %v6457 = vand.u32 2147483647, %v6447
  %vm6458 = vcmp.eq.f32.partialorder %v6457, 8.507059e+37
  %v6459 = vand.u32 %v6447, 2147483648
  %v6460 = vor.u32 1.1754944e-38, %v6459
  %v6461 = vsel %vm6458, %v6460, %v6456
  %v6462 = vmul.f32 1.0, %v6461
  %vm6463 = vcmask 1024
  %6464 = vst.msk [vmem:[%s23] sm:$0x3] %vm6463, %v6462
  // Predicated region
  $region94: #{discriminator_forward.1} parent=0 // pred_check
    _
  $region95: #{discriminator_forward.1} parent=0 // pred_check_branch
    %6466 = sbr.rel (0) target = $region97
  $region96: #{discriminator_forward.1} parent=0 // pred_region
    _
  $region97: #{discriminator_forward.1} parent=0 // pred_fallthru
    _
  // Predicated region
  $region98: #{discriminator_forward.1} parent=0 // pred_check
    _
  $region99: #{discriminator_forward.1} parent=0 // pred_check_branch
    %6468 = sbr.rel (0) target = $region101
  $region100: #{discriminator_forward.1} parent=0 // pred_region
    _
  $region101: #{discriminator_forward.1} parent=0 // pred_fallthru
    _

</llo_original>
